<compile_context>
chip_gen: v7x
topology: tpu7x:2x2x1
jax: 0.10.0
libtpu: 0.0.40
codegen_flags: <defaults>
</compile_context>

<pallas_src>
import jax
import jax.numpy as jnp
from jax.experimental import pallas as pl
from jax.experimental.pallas import tpu as pltpu


def _sigmoid_mul_kernel(g_ref, x_ref, o_ref):
    # g_ref: (TILE_C, 1) gate logits; x_ref: (TILE_C, HW) activations.
    g = g_ref[...].astype(jnp.float32)
    gate = jax.nn.sigmoid(g)                          # exp -> EUP, numerically safe
    x = x_ref[...].astype(jnp.float32)
    o_ref[...] = (gate * x).astype(o_ref.dtype)       # broadcast over the lane axis


def sigmoid_mul(x697, x693, *, num_blocks=1):
    """x697: (1, C, 1, 1) gate logits, x693: (1, C, H, W) activations -> (1, C, H, W).

    num_blocks: number of channel blocks / grid steps.  1 (default) is best on
    v5e/v6e; 2 lets the two v7x TensorCores each take one block.
    """
    assert x697.shape[0] == 1 and x693.shape[0] == 1
    _, C, H, W = x693.shape
    assert x697.shape == (1, C, 1, 1)
    HW = H * W

    # Choose the channel tile: full C unless a clean multi-block split is requested.
    sublane = 16 if x693.dtype == jnp.bfloat16 else 8
    if num_blocks > 1 and C % num_blocks == 0 and (C // num_blocks) % sublane == 0:
        tile_c = C // num_blocks
    else:
        tile_c = C
    grid_n = C // tile_c

    g2d = x697.reshape(C, 1)
    x2d = x693.reshape(C, HW)

    out2d = pl.pallas_call(
        _sigmoid_mul_kernel,
        out_shape=jax.ShapeDtypeStruct((C, HW), x693.dtype),
        grid_spec=pltpu.PrefetchScalarGridSpec(
            num_scalar_prefetch=0,
            grid=(grid_n,),
            in_specs=[
                pl.BlockSpec((tile_c, 1), lambda i: (i, 0)),
                pl.BlockSpec((tile_c, HW), lambda i: (i, 0)),
            ],
            out_specs=pl.BlockSpec((tile_c, HW), lambda i: (i, 0)),
        ),
        compiler_params=pltpu.CompilerParams(
            dimension_semantics=("parallel",),
        ),
    )(g2d, x2d)

    return out2d.reshape(1, C, H, W)


if __name__ == "__main__":
    # Deterministic inputs matching the module's forward:
    # gate (1, 2304, 1, 1) and activation (1, 2304, 7, 7).
    key = jax.random.PRNGKey(0)
    k1, k2 = jax.random.split(key)
    C, H, W = 2304, 7, 7
    x697 = jax.random.normal(k1, (1, C, 1, 1), dtype=jnp.float32)
    x693 = jax.random.normal(k2, (1, C, H, W), dtype=jnp.float32)

    out = sigmoid_mul(x697, x693)          # default: single-block grid
    out = jax.block_until_ready(out)

    # Also exercise the 2-block (v7x megacore) path for correctness.
    out2 = jax.block_until_ready(sigmoid_mul(x697, x693, num_blocks=2))

    # Reference check (plain JAX)
    ref = jax.nn.sigmoid(x697) * x693
    assert out.shape == ref.shape and out.dtype == ref.dtype
    assert jnp.allclose(out, ref, atol=1e-6, rtol=1e-6), "mismatch vs reference"
    assert jnp.allclose(out2, ref, atol=1e-6, rtol=1e-6), "mismatch vs reference (2 blocks)"

    print("KERNEL_OK")
</pallas_src>

<mosaic_0001>
module attributes {stable_mosaic.version = 11 : i64} {
  func.func @_sigmoid_mul_kernel(%arg0: i32, %arg1: memref<2304x1xf32, #tpu.memory_space<vmem>>, %arg2: memref<2304x49xf32, #tpu.memory_space<vmem>>, %arg3: memref<2304x49xf32, #tpu.memory_space<vmem>>) attributes {dimension_semantics = [#tpu.dimension_semantics<parallel>], iteration_bounds = array<i64: 1>, scalar_prefetch = 0 : i64, scratch_operands = 0 : i64, tpu.core_type = #tpu.core_type<tc>, window_params = [{transform_indices = @transform_0, window_bounds = array<i64: 2304, 1>}, {transform_indices = @transform_1, window_bounds = array<i64: 2304, 49>}, {transform_indices = @transform_2, window_bounds = array<i64: 2304, 49>}]} {
    %c0 = arith.constant 0 : index
    %c0_0 = arith.constant 0 : index
    %0 = vector.load %arg1[%c0, %c0_0] : memref<2304x1xf32, #tpu.memory_space<vmem>>, vector<2304x1xf32>
    %1 = arith.negf %0 : vector<2304x1xf32>
    %2 = math.exp %1 : vector<2304x1xf32>
    %cst = arith.constant 1.000000e+00 : f32
    %3 = vector.broadcast %cst : f32 to vector<2304x1xf32>
    %4 = arith.addf %3, %2 : vector<2304x1xf32>
    %5 = arith.divf %3, %4 : vector<2304x1xf32>
    %c0_1 = arith.constant 0 : index
    %c0_2 = arith.constant 0 : index
    %6 = vector.load %arg2[%c0_1, %c0_2] : memref<2304x49xf32, #tpu.memory_space<vmem>>, vector<2304x49xf32>
    %7 = vector.broadcast %5 : vector<2304x1xf32> to vector<2304x49xf32>
    %8 = arith.mulf %7, %6 : vector<2304x49xf32>
    %c0_3 = arith.constant 0 : index
    %c0_4 = arith.constant 0 : index
    %9 = vector.load %arg3[%c0_3, %c0_4] : memref<2304x49xf32, #tpu.memory_space<vmem>>, vector<2304x49xf32>
    tpu.vector_store %arg3[%c0_3, %c0_4], %8 {strides = array<i32>} : memref<2304x49xf32, #tpu.memory_space<vmem>>, vector<2304x49xf32>,
    return
  }
  func.func @transform_0(%arg0: i32) -> (i32, i32) {
    %c0_i32 = arith.constant 0 : i32
    %c0_i32_0 = arith.constant 0 : i32
    return %arg0, %c0_i32 : i32, i32
  }
  func.func @transform_1(%arg0: i32) -> (i32, i32) {
    %c0_i32 = arith.constant 0 : i32
    %c0_i32_0 = arith.constant 0 : i32
    return %arg0, %c0_i32 : i32, i32
  }
  func.func @transform_2(%arg0: i32) -> (i32, i32) {
    %c0_i32 = arith.constant 0 : i32
    %c0_i32_0 = arith.constant 0 : i32
    return %arg0, %c0_i32 : i32, i32
  }
}

</mosaic_0001>

<llo_original>
// kernel: tpu_custom_call.1
$region0: #{tpu_custom_call.1}
  #allocation0 [shape = 'u32[]', space=smem, size = 0x4, offset = 0x4, fixed_abs, tag = 'smem constant byte address 0x4 - core index']
  #allocation1 [shape = 'u32[144,128]{1,0:T(1,128)}', space=vmem, size = 0x12000, scoped, tag = 'internal scratch']
  %s0 = inlined_call_operand.vmem [shape: f32[2304,1], index: 0, kind: input, shape index: {}]
  %s1 = inlined_call_operand.vmem [shape: f32[2304,49], index: 1, kind: input, shape index: {}]
  %s2 = inlined_call_operand.vmem [shape: f32[2304,49], index: 2, kind: output, shape index: {}]
  %s3 = sld [smem:[#allocation0]]
  $region18: #{tpu_custom_call.1} parent=0
    _
  %s5 = ssub.s32 1, %s3
  %s6 = scalar_select 0, %s5, %s3
  // Predicated region
  $region2: #{tpu_custom_call.1} parent=0 // pred_check
    _
  $region3: #{tpu_custom_call.1} parent=0 // pred_check_branch
    %8 = sbr.rel (0) target = $region5
  $region4: #{tpu_custom_call.1} parent=0 // pred_region
    _
  $region5: #{tpu_custom_call.1} parent=0 // pred_fallthru
    _
  // Predicated region
  $region6: #{tpu_custom_call.1} parent=0 // pred_check
    _
  $region7: #{tpu_custom_call.1} parent=0 // pred_check_branch
    %10 = sbr.rel (0) target = $region9
  $region8: #{tpu_custom_call.1} parent=0 // pred_region
    _
  $region9: #{tpu_custom_call.1} parent=0 // pred_fallthru
    _
  %v11 = vld [vmem:[%s0] sm:$0xff]
  %v12 = vld [vmem:[%s0 + $0x8] sm:$0xff]
  %v13 = vld [vmem:[%s0 + $0x10] sm:$0xff]
  %v14 = vld [vmem:[%s0 + $0x18] sm:$0xff]
  %v15 = vld [vmem:[%s0 + $0x20] sm:$0xff]
  %v16 = vld [vmem:[%s0 + $0x28] sm:$0xff]
  %v17 = vld [vmem:[%s0 + $0x30] sm:$0xff]
  %v18 = vld [vmem:[%s0 + $0x38] sm:$0xff]
  %v19 = vld [vmem:[%s0 + $0x40] sm:$0xff]
  %v20 = vld [vmem:[%s0 + $0x48] sm:$0xff]
  %v21 = vld [vmem:[%s0 + $0x50] sm:$0xff]
  %v22 = vld [vmem:[%s0 + $0x58] sm:$0xff]
  %v23 = vld [vmem:[%s0 + $0x60] sm:$0xff]
  %v24 = vld [vmem:[%s0 + $0x68] sm:$0xff]
  %v25 = vld [vmem:[%s0 + $0x70] sm:$0xff]
  %v26 = vld [vmem:[%s0 + $0x78] sm:$0xff]
  %v27 = vld [vmem:[%s0 + $0x80] sm:$0xff]
  %v28 = vld [vmem:[%s0 + $0x88] sm:$0xff]
  %v29 = vld [vmem:[%s0 + $0x90] sm:$0xff]
  %v30 = vld [vmem:[%s0 + $0x98] sm:$0xff]
  %v31 = vld [vmem:[%s0 + $0xa0] sm:$0xff]
  %v32 = vld [vmem:[%s0 + $0xa8] sm:$0xff]
  %v33 = vld [vmem:[%s0 + $0xb0] sm:$0xff]
  %v34 = vld [vmem:[%s0 + $0xb8] sm:$0xff]
  %v35 = vld [vmem:[%s0 + $0xc0] sm:$0xff]
  %v36 = vld [vmem:[%s0 + $0xc8] sm:$0xff]
  %v37 = vld [vmem:[%s0 + $0xd0] sm:$0xff]
  %v38 = vld [vmem:[%s0 + $0xd8] sm:$0xff]
  %v39 = vld [vmem:[%s0 + $0xe0] sm:$0xff]
  %v40 = vld [vmem:[%s0 + $0xe8] sm:$0xff]
  %v41 = vld [vmem:[%s0 + $0xf0] sm:$0xff]
  %v42 = vld [vmem:[%s0 + $0xf8] sm:$0xff]
  %v43 = vld [vmem:[%s0 + $0x100] sm:$0xff]
  %v44 = vld [vmem:[%s0 + $0x108] sm:$0xff]
  %v45 = vld [vmem:[%s0 + $0x110] sm:$0xff]
  %v46 = vld [vmem:[%s0 + $0x118] sm:$0xff]
  %v47 = vld [vmem:[%s0 + $0x120] sm:$0xff]
  %v48 = vld [vmem:[%s0 + $0x128] sm:$0xff]
  %v49 = vld [vmem:[%s0 + $0x130] sm:$0xff]
  %v50 = vld [vmem:[%s0 + $0x138] sm:$0xff]
  %v51 = vld [vmem:[%s0 + $0x140] sm:$0xff]
  %v52 = vld [vmem:[%s0 + $0x148] sm:$0xff]
  %v53 = vld [vmem:[%s0 + $0x150] sm:$0xff]
  %v54 = vld [vmem:[%s0 + $0x158] sm:$0xff]
  %v55 = vld [vmem:[%s0 + $0x160] sm:$0xff]
  %v56 = vld [vmem:[%s0 + $0x168] sm:$0xff]
  %v57 = vld [vmem:[%s0 + $0x170] sm:$0xff]
  %v58 = vld [vmem:[%s0 + $0x178] sm:$0xff]
  %v59 = vld [vmem:[%s0 + $0x180] sm:$0xff]
  %v60 = vld [vmem:[%s0 + $0x188] sm:$0xff]
  %v61 = vld [vmem:[%s0 + $0x190] sm:$0xff]
  %v62 = vld [vmem:[%s0 + $0x198] sm:$0xff]
  %v63 = vld [vmem:[%s0 + $0x1a0] sm:$0xff]
  %v64 = vld [vmem:[%s0 + $0x1a8] sm:$0xff]
  %v65 = vld [vmem:[%s0 + $0x1b0] sm:$0xff]
  %v66 = vld [vmem:[%s0 + $0x1b8] sm:$0xff]
  %v67 = vld [vmem:[%s0 + $0x1c0] sm:$0xff]
  %v68 = vld [vmem:[%s0 + $0x1c8] sm:$0xff]
  %v69 = vld [vmem:[%s0 + $0x1d0] sm:$0xff]
  %v70 = vld [vmem:[%s0 + $0x1d8] sm:$0xff]
  %v71 = vld [vmem:[%s0 + $0x1e0] sm:$0xff]
  %v72 = vld [vmem:[%s0 + $0x1e8] sm:$0xff]
  %v73 = vld [vmem:[%s0 + $0x1f0] sm:$0xff]
  %v74 = vld [vmem:[%s0 + $0x1f8] sm:$0xff]
  %v75 = vld [vmem:[%s0 + $0x200] sm:$0xff]
  %v76 = vld [vmem:[%s0 + $0x208] sm:$0xff]
  %v77 = vld [vmem:[%s0 + $0x210] sm:$0xff]
  %v78 = vld [vmem:[%s0 + $0x218] sm:$0xff]
  %v79 = vld [vmem:[%s0 + $0x220] sm:$0xff]
  %v80 = vld [vmem:[%s0 + $0x228] sm:$0xff]
  %v81 = vld [vmem:[%s0 + $0x230] sm:$0xff]
  %v82 = vld [vmem:[%s0 + $0x238] sm:$0xff]
  %v83 = vld [vmem:[%s0 + $0x240] sm:$0xff]
  %v84 = vld [vmem:[%s0 + $0x248] sm:$0xff]
  %v85 = vld [vmem:[%s0 + $0x250] sm:$0xff]
  %v86 = vld [vmem:[%s0 + $0x258] sm:$0xff]
  %v87 = vld [vmem:[%s0 + $0x260] sm:$0xff]
  %v88 = vld [vmem:[%s0 + $0x268] sm:$0xff]
  %v89 = vld [vmem:[%s0 + $0x270] sm:$0xff]
  %v90 = vld [vmem:[%s0 + $0x278] sm:$0xff]
  %v91 = vld [vmem:[%s0 + $0x280] sm:$0xff]
  %v92 = vld [vmem:[%s0 + $0x288] sm:$0xff]
  %v93 = vld [vmem:[%s0 + $0x290] sm:$0xff]
  %v94 = vld [vmem:[%s0 + $0x298] sm:$0xff]
  %v95 = vld [vmem:[%s0 + $0x2a0] sm:$0xff]
  %v96 = vld [vmem:[%s0 + $0x2a8] sm:$0xff]
  %v97 = vld [vmem:[%s0 + $0x2b0] sm:$0xff]
  %v98 = vld [vmem:[%s0 + $0x2b8] sm:$0xff]
  %v99 = vld [vmem:[%s0 + $0x2c0] sm:$0xff]
  %v100 = vld [vmem:[%s0 + $0x2c8] sm:$0xff]
  %v101 = vld [vmem:[%s0 + $0x2d0] sm:$0xff]
  %v102 = vld [vmem:[%s0 + $0x2d8] sm:$0xff]
  %v103 = vld [vmem:[%s0 + $0x2e0] sm:$0xff]
  %v104 = vld [vmem:[%s0 + $0x2e8] sm:$0xff]
  %v105 = vld [vmem:[%s0 + $0x2f0] sm:$0xff]
  %v106 = vld [vmem:[%s0 + $0x2f8] sm:$0xff]
  %v107 = vld [vmem:[%s0 + $0x300] sm:$0xff]
  %v108 = vld [vmem:[%s0 + $0x308] sm:$0xff]
  %v109 = vld [vmem:[%s0 + $0x310] sm:$0xff]
  %v110 = vld [vmem:[%s0 + $0x318] sm:$0xff]
  %v111 = vld [vmem:[%s0 + $0x320] sm:$0xff]
  %v112 = vld [vmem:[%s0 + $0x328] sm:$0xff]
  %v113 = vld [vmem:[%s0 + $0x330] sm:$0xff]
  %v114 = vld [vmem:[%s0 + $0x338] sm:$0xff]
  %v115 = vld [vmem:[%s0 + $0x340] sm:$0xff]
  %v116 = vld [vmem:[%s0 + $0x348] sm:$0xff]
  %v117 = vld [vmem:[%s0 + $0x350] sm:$0xff]
  %v118 = vld [vmem:[%s0 + $0x358] sm:$0xff]
  %v119 = vld [vmem:[%s0 + $0x360] sm:$0xff]
  %v120 = vld [vmem:[%s0 + $0x368] sm:$0xff]
  %v121 = vld [vmem:[%s0 + $0x370] sm:$0xff]
  %v122 = vld [vmem:[%s0 + $0x378] sm:$0xff]
  %v123 = vld [vmem:[%s0 + $0x380] sm:$0xff]
  %v124 = vld [vmem:[%s0 + $0x388] sm:$0xff]
  %v125 = vld [vmem:[%s0 + $0x390] sm:$0xff]
  %v126 = vld [vmem:[%s0 + $0x398] sm:$0xff]
  %v127 = vld [vmem:[%s0 + $0x3a0] sm:$0xff]
  %v128 = vld [vmem:[%s0 + $0x3a8] sm:$0xff]
  %v129 = vld [vmem:[%s0 + $0x3b0] sm:$0xff]
  %v130 = vld [vmem:[%s0 + $0x3b8] sm:$0xff]
  %v131 = vld [vmem:[%s0 + $0x3c0] sm:$0xff]
  %v132 = vld [vmem:[%s0 + $0x3c8] sm:$0xff]
  %v133 = vld [vmem:[%s0 + $0x3d0] sm:$0xff]
  %v134 = vld [vmem:[%s0 + $0x3d8] sm:$0xff]
  %v135 = vld [vmem:[%s0 + $0x3e0] sm:$0xff]
  %v136 = vld [vmem:[%s0 + $0x3e8] sm:$0xff]
  %v137 = vld [vmem:[%s0 + $0x3f0] sm:$0xff]
  %v138 = vld [vmem:[%s0 + $0x3f8] sm:$0xff]
  %v139 = vld [vmem:[%s0 + $0x400] sm:$0xff]
  %v140 = vld [vmem:[%s0 + $0x408] sm:$0xff]
  %v141 = vld [vmem:[%s0 + $0x410] sm:$0xff]
  %v142 = vld [vmem:[%s0 + $0x418] sm:$0xff]
  %v143 = vld [vmem:[%s0 + $0x420] sm:$0xff]
  %v144 = vld [vmem:[%s0 + $0x428] sm:$0xff]
  %v145 = vld [vmem:[%s0 + $0x430] sm:$0xff]
  %v146 = vld [vmem:[%s0 + $0x438] sm:$0xff]
  %v147 = vld [vmem:[%s0 + $0x440] sm:$0xff]
  %v148 = vld [vmem:[%s0 + $0x448] sm:$0xff]
  %v149 = vld [vmem:[%s0 + $0x450] sm:$0xff]
  %v150 = vld [vmem:[%s0 + $0x458] sm:$0xff]
  %v151 = vld [vmem:[%s0 + $0x460] sm:$0xff]
  %v152 = vld [vmem:[%s0 + $0x468] sm:$0xff]
  %v153 = vld [vmem:[%s0 + $0x470] sm:$0xff]
  %v154 = vld [vmem:[%s0 + $0x478] sm:$0xff]
  %v155 = vld [vmem:[%s0 + $0x480] sm:$0xff]
  %v156 = vld [vmem:[%s0 + $0x488] sm:$0xff]
  %v157 = vld [vmem:[%s0 + $0x490] sm:$0xff]
  %v158 = vld [vmem:[%s0 + $0x498] sm:$0xff]
  %v159 = vld [vmem:[%s0 + $0x4a0] sm:$0xff]
  %v160 = vld [vmem:[%s0 + $0x4a8] sm:$0xff]
  %v161 = vld [vmem:[%s0 + $0x4b0] sm:$0xff]
  %v162 = vld [vmem:[%s0 + $0x4b8] sm:$0xff]
  %v163 = vld [vmem:[%s0 + $0x4c0] sm:$0xff]
  %v164 = vld [vmem:[%s0 + $0x4c8] sm:$0xff]
  %v165 = vld [vmem:[%s0 + $0x4d0] sm:$0xff]
  %v166 = vld [vmem:[%s0 + $0x4d8] sm:$0xff]
  %v167 = vld [vmem:[%s0 + $0x4e0] sm:$0xff]
  %v168 = vld [vmem:[%s0 + $0x4e8] sm:$0xff]
  %v169 = vld [vmem:[%s0 + $0x4f0] sm:$0xff]
  %v170 = vld [vmem:[%s0 + $0x4f8] sm:$0xff]
  %v171 = vld [vmem:[%s0 + $0x500] sm:$0xff]
  %v172 = vld [vmem:[%s0 + $0x508] sm:$0xff]
  %v173 = vld [vmem:[%s0 + $0x510] sm:$0xff]
  %v174 = vld [vmem:[%s0 + $0x518] sm:$0xff]
  %v175 = vld [vmem:[%s0 + $0x520] sm:$0xff]
  %v176 = vld [vmem:[%s0 + $0x528] sm:$0xff]
  %v177 = vld [vmem:[%s0 + $0x530] sm:$0xff]
  %v178 = vld [vmem:[%s0 + $0x538] sm:$0xff]
  %v179 = vld [vmem:[%s0 + $0x540] sm:$0xff]
  %v180 = vld [vmem:[%s0 + $0x548] sm:$0xff]
  %v181 = vld [vmem:[%s0 + $0x550] sm:$0xff]
  %v182 = vld [vmem:[%s0 + $0x558] sm:$0xff]
  %v183 = vld [vmem:[%s0 + $0x560] sm:$0xff]
  %v184 = vld [vmem:[%s0 + $0x568] sm:$0xff]
  %v185 = vld [vmem:[%s0 + $0x570] sm:$0xff]
  %v186 = vld [vmem:[%s0 + $0x578] sm:$0xff]
  %v187 = vld [vmem:[%s0 + $0x580] sm:$0xff]
  %v188 = vld [vmem:[%s0 + $0x588] sm:$0xff]
  %v189 = vld [vmem:[%s0 + $0x590] sm:$0xff]
  %v190 = vld [vmem:[%s0 + $0x598] sm:$0xff]
  %v191 = vld [vmem:[%s0 + $0x5a0] sm:$0xff]
  %v192 = vld [vmem:[%s0 + $0x5a8] sm:$0xff]
  %v193 = vld [vmem:[%s0 + $0x5b0] sm:$0xff]
  %v194 = vld [vmem:[%s0 + $0x5b8] sm:$0xff]
  %v195 = vld [vmem:[%s0 + $0x5c0] sm:$0xff]
  %v196 = vld [vmem:[%s0 + $0x5c8] sm:$0xff]
  %v197 = vld [vmem:[%s0 + $0x5d0] sm:$0xff]
  %v198 = vld [vmem:[%s0 + $0x5d8] sm:$0xff]
  %v199 = vld [vmem:[%s0 + $0x5e0] sm:$0xff]
  %v200 = vld [vmem:[%s0 + $0x5e8] sm:$0xff]
  %v201 = vld [vmem:[%s0 + $0x5f0] sm:$0xff]
  %v202 = vld [vmem:[%s0 + $0x5f8] sm:$0xff]
  %v203 = vld [vmem:[%s0 + $0x600] sm:$0xff]
  %v204 = vld [vmem:[%s0 + $0x608] sm:$0xff]
  %v205 = vld [vmem:[%s0 + $0x610] sm:$0xff]
  %v206 = vld [vmem:[%s0 + $0x618] sm:$0xff]
  %v207 = vld [vmem:[%s0 + $0x620] sm:$0xff]
  %v208 = vld [vmem:[%s0 + $0x628] sm:$0xff]
  %v209 = vld [vmem:[%s0 + $0x630] sm:$0xff]
  %v210 = vld [vmem:[%s0 + $0x638] sm:$0xff]
  %v211 = vld [vmem:[%s0 + $0x640] sm:$0xff]
  %v212 = vld [vmem:[%s0 + $0x648] sm:$0xff]
  %v213 = vld [vmem:[%s0 + $0x650] sm:$0xff]
  %v214 = vld [vmem:[%s0 + $0x658] sm:$0xff]
  %v215 = vld [vmem:[%s0 + $0x660] sm:$0xff]
  %v216 = vld [vmem:[%s0 + $0x668] sm:$0xff]
  %v217 = vld [vmem:[%s0 + $0x670] sm:$0xff]
  %v218 = vld [vmem:[%s0 + $0x678] sm:$0xff]
  %v219 = vld [vmem:[%s0 + $0x680] sm:$0xff]
  %v220 = vld [vmem:[%s0 + $0x688] sm:$0xff]
  %v221 = vld [vmem:[%s0 + $0x690] sm:$0xff]
  %v222 = vld [vmem:[%s0 + $0x698] sm:$0xff]
  %v223 = vld [vmem:[%s0 + $0x6a0] sm:$0xff]
  %v224 = vld [vmem:[%s0 + $0x6a8] sm:$0xff]
  %v225 = vld [vmem:[%s0 + $0x6b0] sm:$0xff]
  %v226 = vld [vmem:[%s0 + $0x6b8] sm:$0xff]
  %v227 = vld [vmem:[%s0 + $0x6c0] sm:$0xff]
  %v228 = vld [vmem:[%s0 + $0x6c8] sm:$0xff]
  %v229 = vld [vmem:[%s0 + $0x6d0] sm:$0xff]
  %v230 = vld [vmem:[%s0 + $0x6d8] sm:$0xff]
  %v231 = vld [vmem:[%s0 + $0x6e0] sm:$0xff]
  %v232 = vld [vmem:[%s0 + $0x6e8] sm:$0xff]
  %v233 = vld [vmem:[%s0 + $0x6f0] sm:$0xff]
  %v234 = vld [vmem:[%s0 + $0x6f8] sm:$0xff]
  %v235 = vld [vmem:[%s0 + $0x700] sm:$0xff]
  %v236 = vld [vmem:[%s0 + $0x708] sm:$0xff]
  %v237 = vld [vmem:[%s0 + $0x710] sm:$0xff]
  %v238 = vld [vmem:[%s0 + $0x718] sm:$0xff]
  %v239 = vld [vmem:[%s0 + $0x720] sm:$0xff]
  %v240 = vld [vmem:[%s0 + $0x728] sm:$0xff]
  %v241 = vld [vmem:[%s0 + $0x730] sm:$0xff]
  %v242 = vld [vmem:[%s0 + $0x738] sm:$0xff]
  %v243 = vld [vmem:[%s0 + $0x740] sm:$0xff]
  %v244 = vld [vmem:[%s0 + $0x748] sm:$0xff]
  %v245 = vld [vmem:[%s0 + $0x750] sm:$0xff]
  %v246 = vld [vmem:[%s0 + $0x758] sm:$0xff]
  %v247 = vld [vmem:[%s0 + $0x760] sm:$0xff]
  %v248 = vld [vmem:[%s0 + $0x768] sm:$0xff]
  %v249 = vld [vmem:[%s0 + $0x770] sm:$0xff]
  %v250 = vld [vmem:[%s0 + $0x778] sm:$0xff]
  %v251 = vld [vmem:[%s0 + $0x780] sm:$0xff]
  %v252 = vld [vmem:[%s0 + $0x788] sm:$0xff]
  %v253 = vld [vmem:[%s0 + $0x790] sm:$0xff]
  %v254 = vld [vmem:[%s0 + $0x798] sm:$0xff]
  %v255 = vld [vmem:[%s0 + $0x7a0] sm:$0xff]
  %v256 = vld [vmem:[%s0 + $0x7a8] sm:$0xff]
  %v257 = vld [vmem:[%s0 + $0x7b0] sm:$0xff]
  %v258 = vld [vmem:[%s0 + $0x7b8] sm:$0xff]
  %v259 = vld [vmem:[%s0 + $0x7c0] sm:$0xff]
  %v260 = vld [vmem:[%s0 + $0x7c8] sm:$0xff]
  %v261 = vld [vmem:[%s0 + $0x7d0] sm:$0xff]
  %v262 = vld [vmem:[%s0 + $0x7d8] sm:$0xff]
  %v263 = vld [vmem:[%s0 + $0x7e0] sm:$0xff]
  %v264 = vld [vmem:[%s0 + $0x7e8] sm:$0xff]
  %v265 = vld [vmem:[%s0 + $0x7f0] sm:$0xff]
  %v266 = vld [vmem:[%s0 + $0x7f8] sm:$0xff]
  %v267 = vld [vmem:[%s0 + $0x800] sm:$0xff]
  %v268 = vld [vmem:[%s0 + $0x808] sm:$0xff]
  %v269 = vld [vmem:[%s0 + $0x810] sm:$0xff]
  %v270 = vld [vmem:[%s0 + $0x818] sm:$0xff]
  %v271 = vld [vmem:[%s0 + $0x820] sm:$0xff]
  %v272 = vld [vmem:[%s0 + $0x828] sm:$0xff]
  %v273 = vld [vmem:[%s0 + $0x830] sm:$0xff]
  %v274 = vld [vmem:[%s0 + $0x838] sm:$0xff]
  %v275 = vld [vmem:[%s0 + $0x840] sm:$0xff]
  %v276 = vld [vmem:[%s0 + $0x848] sm:$0xff]
  %v277 = vld [vmem:[%s0 + $0x850] sm:$0xff]
  %v278 = vld [vmem:[%s0 + $0x858] sm:$0xff]
  %v279 = vld [vmem:[%s0 + $0x860] sm:$0xff]
  %v280 = vld [vmem:[%s0 + $0x868] sm:$0xff]
  %v281 = vld [vmem:[%s0 + $0x870] sm:$0xff]
  %v282 = vld [vmem:[%s0 + $0x878] sm:$0xff]
  %v283 = vld [vmem:[%s0 + $0x880] sm:$0xff]
  %v284 = vld [vmem:[%s0 + $0x888] sm:$0xff]
  %v285 = vld [vmem:[%s0 + $0x890] sm:$0xff]
  %v286 = vld [vmem:[%s0 + $0x898] sm:$0xff]
  %v287 = vld [vmem:[%s0 + $0x8a0] sm:$0xff]
  %v288 = vld [vmem:[%s0 + $0x8a8] sm:$0xff]
  %v289 = vld [vmem:[%s0 + $0x8b0] sm:$0xff]
  %v290 = vld [vmem:[%s0 + $0x8b8] sm:$0xff]
  %v291 = vld [vmem:[%s0 + $0x8c0] sm:$0xff]
  %v292 = vld [vmem:[%s0 + $0x8c8] sm:$0xff]
  %v293 = vld [vmem:[%s0 + $0x8d0] sm:$0xff]
  %v294 = vld [vmem:[%s0 + $0x8d8] sm:$0xff]
  %v295 = vld [vmem:[%s0 + $0x8e0] sm:$0xff]
  %v296 = vld [vmem:[%s0 + $0x8e8] sm:$0xff]
  %v297 = vld [vmem:[%s0 + $0x8f0] sm:$0xff]
  %v298 = vld [vmem:[%s0 + $0x8f8] sm:$0xff]
  %v299 = vxor.u32 %v11, 2147483648
  %v300 = vxor.u32 %v12, 2147483648
  %v301 = vxor.u32 %v13, 2147483648
  %v302 = vxor.u32 %v14, 2147483648
  %v303 = vxor.u32 %v15, 2147483648
  %v304 = vxor.u32 %v16, 2147483648
  %v305 = vxor.u32 %v17, 2147483648
  %v306 = vxor.u32 %v18, 2147483648
  %v307 = vxor.u32 %v19, 2147483648
  %v308 = vxor.u32 %v20, 2147483648
  %v309 = vxor.u32 %v21, 2147483648
  %v310 = vxor.u32 %v22, 2147483648
  %v311 = vxor.u32 %v23, 2147483648
  %v312 = vxor.u32 %v24, 2147483648
  %v313 = vxor.u32 %v25, 2147483648
  %v314 = vxor.u32 %v26, 2147483648
  %v315 = vxor.u32 %v27, 2147483648
  %v316 = vxor.u32 %v28, 2147483648
  %v317 = vxor.u32 %v29, 2147483648
  %v318 = vxor.u32 %v30, 2147483648
  %v319 = vxor.u32 %v31, 2147483648
  %v320 = vxor.u32 %v32, 2147483648
  %v321 = vxor.u32 %v33, 2147483648
  %v322 = vxor.u32 %v34, 2147483648
  %v323 = vxor.u32 %v35, 2147483648
  %v324 = vxor.u32 %v36, 2147483648
  %v325 = vxor.u32 %v37, 2147483648
  %v326 = vxor.u32 %v38, 2147483648
  %v327 = vxor.u32 %v39, 2147483648
  %v328 = vxor.u32 %v40, 2147483648
  %v329 = vxor.u32 %v41, 2147483648
  %v330 = vxor.u32 %v42, 2147483648
  %v331 = vxor.u32 %v43, 2147483648
  %v332 = vxor.u32 %v44, 2147483648
  %v333 = vxor.u32 %v45, 2147483648
  %v334 = vxor.u32 %v46, 2147483648
  %v335 = vxor.u32 %v47, 2147483648
  %v336 = vxor.u32 %v48, 2147483648
  %v337 = vxor.u32 %v49, 2147483648
  %v338 = vxor.u32 %v50, 2147483648
  %v339 = vxor.u32 %v51, 2147483648
  %v340 = vxor.u32 %v52, 2147483648
  %v341 = vxor.u32 %v53, 2147483648
  %v342 = vxor.u32 %v54, 2147483648
  %v343 = vxor.u32 %v55, 2147483648
  %v344 = vxor.u32 %v56, 2147483648
  %v345 = vxor.u32 %v57, 2147483648
  %v346 = vxor.u32 %v58, 2147483648
  %v347 = vxor.u32 %v59, 2147483648
  %v348 = vxor.u32 %v60, 2147483648
  %v349 = vxor.u32 %v61, 2147483648
  %v350 = vxor.u32 %v62, 2147483648
  %v351 = vxor.u32 %v63, 2147483648
  %v352 = vxor.u32 %v64, 2147483648
  %v353 = vxor.u32 %v65, 2147483648
  %v354 = vxor.u32 %v66, 2147483648
  %v355 = vxor.u32 %v67, 2147483648
  %v356 = vxor.u32 %v68, 2147483648
  %v357 = vxor.u32 %v69, 2147483648
  %v358 = vxor.u32 %v70, 2147483648
  %v359 = vxor.u32 %v71, 2147483648
  %v360 = vxor.u32 %v72, 2147483648
  %v361 = vxor.u32 %v73, 2147483648
  %v362 = vxor.u32 %v74, 2147483648
  %v363 = vxor.u32 %v75, 2147483648
  %v364 = vxor.u32 %v76, 2147483648
  %v365 = vxor.u32 %v77, 2147483648
  %v366 = vxor.u32 %v78, 2147483648
  %v367 = vxor.u32 %v79, 2147483648
  %v368 = vxor.u32 %v80, 2147483648
  %v369 = vxor.u32 %v81, 2147483648
  %v370 = vxor.u32 %v82, 2147483648
  %v371 = vxor.u32 %v83, 2147483648
  %v372 = vxor.u32 %v84, 2147483648
  %v373 = vxor.u32 %v85, 2147483648
  %v374 = vxor.u32 %v86, 2147483648
  %v375 = vxor.u32 %v87, 2147483648
  %v376 = vxor.u32 %v88, 2147483648
  %v377 = vxor.u32 %v89, 2147483648
  %v378 = vxor.u32 %v90, 2147483648
  %v379 = vxor.u32 %v91, 2147483648
  %v380 = vxor.u32 %v92, 2147483648
  %v381 = vxor.u32 %v93, 2147483648
  %v382 = vxor.u32 %v94, 2147483648
  %v383 = vxor.u32 %v95, 2147483648
  %v384 = vxor.u32 %v96, 2147483648
  %v385 = vxor.u32 %v97, 2147483648
  %v386 = vxor.u32 %v98, 2147483648
  %v387 = vxor.u32 %v99, 2147483648
  %v388 = vxor.u32 %v100, 2147483648
  %v389 = vxor.u32 %v101, 2147483648
  %v390 = vxor.u32 %v102, 2147483648
  %v391 = vxor.u32 %v103, 2147483648
  %v392 = vxor.u32 %v104, 2147483648
  %v393 = vxor.u32 %v105, 2147483648
  %v394 = vxor.u32 %v106, 2147483648
  %v395 = vxor.u32 %v107, 2147483648
  %v396 = vxor.u32 %v108, 2147483648
  %v397 = vxor.u32 %v109, 2147483648
  %v398 = vxor.u32 %v110, 2147483648
  %v399 = vxor.u32 %v111, 2147483648
  %v400 = vxor.u32 %v112, 2147483648
  %v401 = vxor.u32 %v113, 2147483648
  %v402 = vxor.u32 %v114, 2147483648
  %v403 = vxor.u32 %v115, 2147483648
  %v404 = vxor.u32 %v116, 2147483648
  %v405 = vxor.u32 %v117, 2147483648
  %v406 = vxor.u32 %v118, 2147483648
  %v407 = vxor.u32 %v119, 2147483648
  %v408 = vxor.u32 %v120, 2147483648
  %v409 = vxor.u32 %v121, 2147483648
  %v410 = vxor.u32 %v122, 2147483648
  %v411 = vxor.u32 %v123, 2147483648
  %v412 = vxor.u32 %v124, 2147483648
  %v413 = vxor.u32 %v125, 2147483648
  %v414 = vxor.u32 %v126, 2147483648
  %v415 = vxor.u32 %v127, 2147483648
  %v416 = vxor.u32 %v128, 2147483648
  %v417 = vxor.u32 %v129, 2147483648
  %v418 = vxor.u32 %v130, 2147483648
  %v419 = vxor.u32 %v131, 2147483648
  %v420 = vxor.u32 %v132, 2147483648
  %v421 = vxor.u32 %v133, 2147483648
  %v422 = vxor.u32 %v134, 2147483648
  %v423 = vxor.u32 %v135, 2147483648
  %v424 = vxor.u32 %v136, 2147483648
  %v425 = vxor.u32 %v137, 2147483648
  %v426 = vxor.u32 %v138, 2147483648
  %v427 = vxor.u32 %v139, 2147483648
  %v428 = vxor.u32 %v140, 2147483648
  %v429 = vxor.u32 %v141, 2147483648
  %v430 = vxor.u32 %v142, 2147483648
  %v431 = vxor.u32 %v143, 2147483648
  %v432 = vxor.u32 %v144, 2147483648
  %v433 = vxor.u32 %v145, 2147483648
  %v434 = vxor.u32 %v146, 2147483648
  %v435 = vxor.u32 %v147, 2147483648
  %v436 = vxor.u32 %v148, 2147483648
  %v437 = vxor.u32 %v149, 2147483648
  %v438 = vxor.u32 %v150, 2147483648
  %v439 = vxor.u32 %v151, 2147483648
  %v440 = vxor.u32 %v152, 2147483648
  %v441 = vxor.u32 %v153, 2147483648
  %v442 = vxor.u32 %v154, 2147483648
  %v443 = vxor.u32 %v155, 2147483648
  %v444 = vxor.u32 %v156, 2147483648
  %v445 = vxor.u32 %v157, 2147483648
  %v446 = vxor.u32 %v158, 2147483648
  %v447 = vxor.u32 %v159, 2147483648
  %v448 = vxor.u32 %v160, 2147483648
  %v449 = vxor.u32 %v161, 2147483648
  %v450 = vxor.u32 %v162, 2147483648
  %v451 = vxor.u32 %v163, 2147483648
  %v452 = vxor.u32 %v164, 2147483648
  %v453 = vxor.u32 %v165, 2147483648
  %v454 = vxor.u32 %v166, 2147483648
  %v455 = vxor.u32 %v167, 2147483648
  %v456 = vxor.u32 %v168, 2147483648
  %v457 = vxor.u32 %v169, 2147483648
  %v458 = vxor.u32 %v170, 2147483648
  %v459 = vxor.u32 %v171, 2147483648
  %v460 = vxor.u32 %v172, 2147483648
  %v461 = vxor.u32 %v173, 2147483648
  %v462 = vxor.u32 %v174, 2147483648
  %v463 = vxor.u32 %v175, 2147483648
  %v464 = vxor.u32 %v176, 2147483648
  %v465 = vxor.u32 %v177, 2147483648
  %v466 = vxor.u32 %v178, 2147483648
  %v467 = vxor.u32 %v179, 2147483648
  %v468 = vxor.u32 %v180, 2147483648
  %v469 = vxor.u32 %v181, 2147483648
  %v470 = vxor.u32 %v182, 2147483648
  %v471 = vxor.u32 %v183, 2147483648
  %v472 = vxor.u32 %v184, 2147483648
  %v473 = vxor.u32 %v185, 2147483648
  %v474 = vxor.u32 %v186, 2147483648
  %v475 = vxor.u32 %v187, 2147483648
  %v476 = vxor.u32 %v188, 2147483648
  %v477 = vxor.u32 %v189, 2147483648
  %v478 = vxor.u32 %v190, 2147483648
  %v479 = vxor.u32 %v191, 2147483648
  %v480 = vxor.u32 %v192, 2147483648
  %v481 = vxor.u32 %v193, 2147483648
  %v482 = vxor.u32 %v194, 2147483648
  %v483 = vxor.u32 %v195, 2147483648
  %v484 = vxor.u32 %v196, 2147483648
  %v485 = vxor.u32 %v197, 2147483648
  %v486 = vxor.u32 %v198, 2147483648
  %v487 = vxor.u32 %v199, 2147483648
  %v488 = vxor.u32 %v200, 2147483648
  %v489 = vxor.u32 %v201, 2147483648
  %v490 = vxor.u32 %v202, 2147483648
  %v491 = vxor.u32 %v203, 2147483648
  %v492 = vxor.u32 %v204, 2147483648
  %v493 = vxor.u32 %v205, 2147483648
  %v494 = vxor.u32 %v206, 2147483648
  %v495 = vxor.u32 %v207, 2147483648
  %v496 = vxor.u32 %v208, 2147483648
  %v497 = vxor.u32 %v209, 2147483648
  %v498 = vxor.u32 %v210, 2147483648
  %v499 = vxor.u32 %v211, 2147483648
  %v500 = vxor.u32 %v212, 2147483648
  %v501 = vxor.u32 %v213, 2147483648
  %v502 = vxor.u32 %v214, 2147483648
  %v503 = vxor.u32 %v215, 2147483648
  %v504 = vxor.u32 %v216, 2147483648
  %v505 = vxor.u32 %v217, 2147483648
  %v506 = vxor.u32 %v218, 2147483648
  %v507 = vxor.u32 %v219, 2147483648
  %v508 = vxor.u32 %v220, 2147483648
  %v509 = vxor.u32 %v221, 2147483648
  %v510 = vxor.u32 %v222, 2147483648
  %v511 = vxor.u32 %v223, 2147483648
  %v512 = vxor.u32 %v224, 2147483648
  %v513 = vxor.u32 %v225, 2147483648
  %v514 = vxor.u32 %v226, 2147483648
  %v515 = vxor.u32 %v227, 2147483648
  %v516 = vxor.u32 %v228, 2147483648
  %v517 = vxor.u32 %v229, 2147483648
  %v518 = vxor.u32 %v230, 2147483648
  %v519 = vxor.u32 %v231, 2147483648
  %v520 = vxor.u32 %v232, 2147483648
  %v521 = vxor.u32 %v233, 2147483648
  %v522 = vxor.u32 %v234, 2147483648
  %v523 = vxor.u32 %v235, 2147483648
  %v524 = vxor.u32 %v236, 2147483648
  %v525 = vxor.u32 %v237, 2147483648
  %v526 = vxor.u32 %v238, 2147483648
  %v527 = vxor.u32 %v239, 2147483648
  %v528 = vxor.u32 %v240, 2147483648
  %v529 = vxor.u32 %v241, 2147483648
  %v530 = vxor.u32 %v242, 2147483648
  %v531 = vxor.u32 %v243, 2147483648
  %v532 = vxor.u32 %v244, 2147483648
  %v533 = vxor.u32 %v245, 2147483648
  %v534 = vxor.u32 %v246, 2147483648
  %v535 = vxor.u32 %v247, 2147483648
  %v536 = vxor.u32 %v248, 2147483648
  %v537 = vxor.u32 %v249, 2147483648
  %v538 = vxor.u32 %v250, 2147483648
  %v539 = vxor.u32 %v251, 2147483648
  %v540 = vxor.u32 %v252, 2147483648
  %v541 = vxor.u32 %v253, 2147483648
  %v542 = vxor.u32 %v254, 2147483648
  %v543 = vxor.u32 %v255, 2147483648
  %v544 = vxor.u32 %v256, 2147483648
  %v545 = vxor.u32 %v257, 2147483648
  %v546 = vxor.u32 %v258, 2147483648
  %v547 = vxor.u32 %v259, 2147483648
  %v548 = vxor.u32 %v260, 2147483648
  %v549 = vxor.u32 %v261, 2147483648
  %v550 = vxor.u32 %v262, 2147483648
  %v551 = vxor.u32 %v263, 2147483648
  %v552 = vxor.u32 %v264, 2147483648
  %v553 = vxor.u32 %v265, 2147483648
  %v554 = vxor.u32 %v266, 2147483648
  %v555 = vxor.u32 %v267, 2147483648
  %v556 = vxor.u32 %v268, 2147483648
  %v557 = vxor.u32 %v269, 2147483648
  %v558 = vxor.u32 %v270, 2147483648
  %v559 = vxor.u32 %v271, 2147483648
  %v560 = vxor.u32 %v272, 2147483648
  %v561 = vxor.u32 %v273, 2147483648
  %v562 = vxor.u32 %v274, 2147483648
  %v563 = vxor.u32 %v275, 2147483648
  %v564 = vxor.u32 %v276, 2147483648
  %v565 = vxor.u32 %v277, 2147483648
  %v566 = vxor.u32 %v278, 2147483648
  %v567 = vxor.u32 %v279, 2147483648
  %v568 = vxor.u32 %v280, 2147483648
  %v569 = vxor.u32 %v281, 2147483648
  %v570 = vxor.u32 %v282, 2147483648
  %v571 = vxor.u32 %v283, 2147483648
  %v572 = vxor.u32 %v284, 2147483648
  %v573 = vxor.u32 %v285, 2147483648
  %v574 = vxor.u32 %v286, 2147483648
  %v575 = vxor.u32 %v287, 2147483648
  %v576 = vxor.u32 %v288, 2147483648
  %v577 = vxor.u32 %v289, 2147483648
  %v578 = vxor.u32 %v290, 2147483648
  %v579 = vxor.u32 %v291, 2147483648
  %v580 = vxor.u32 %v292, 2147483648
  %v581 = vxor.u32 %v293, 2147483648
  %v582 = vxor.u32 %v294, 2147483648
  %v583 = vxor.u32 %v295, 2147483648
  %v584 = vxor.u32 %v296, 2147483648
  %v585 = vxor.u32 %v297, 2147483648
  %v586 = vxor.u32 %v298, 2147483648
  %v587 = vmul.f32 %v299, 1.442695
  %v588 = vpow.pop %v587
  %v589 = vmul.f32 %v300, 1.442695
  %v590 = vpow.pop %v589
  %v591 = vmul.f32 %v301, 1.442695
  %v592 = vpow.pop %v591
  %v593 = vmul.f32 %v302, 1.442695
  %v594 = vpow.pop %v593
  %v595 = vmul.f32 %v303, 1.442695
  %v596 = vpow.pop %v595
  %v597 = vmul.f32 %v304, 1.442695
  %v598 = vpow.pop %v597
  %v599 = vmul.f32 %v305, 1.442695
  %v600 = vpow.pop %v599
  %v601 = vmul.f32 %v306, 1.442695
  %v602 = vpow.pop %v601
  %v603 = vmul.f32 %v307, 1.442695
  %v604 = vpow.pop %v603
  %v605 = vmul.f32 %v308, 1.442695
  %v606 = vpow.pop %v605
  %v607 = vmul.f32 %v309, 1.442695
  %v608 = vpow.pop %v607
  %v609 = vmul.f32 %v310, 1.442695
  %v610 = vpow.pop %v609
  %v611 = vmul.f32 %v311, 1.442695
  %v612 = vpow.pop %v611
  %v613 = vmul.f32 %v312, 1.442695
  %v614 = vpow.pop %v613
  %v615 = vmul.f32 %v313, 1.442695
  %v616 = vpow.pop %v615
  %v617 = vmul.f32 %v314, 1.442695
  %v618 = vpow.pop %v617
  %v619 = vmul.f32 %v315, 1.442695
  %v620 = vpow.pop %v619
  %v621 = vmul.f32 %v316, 1.442695
  %v622 = vpow.pop %v621
  %v623 = vmul.f32 %v317, 1.442695
  %v624 = vpow.pop %v623
  %v625 = vmul.f32 %v318, 1.442695
  %v626 = vpow.pop %v625
  %v627 = vmul.f32 %v319, 1.442695
  %v628 = vpow.pop %v627
  %v629 = vmul.f32 %v320, 1.442695
  %v630 = vpow.pop %v629
  %v631 = vmul.f32 %v321, 1.442695
  %v632 = vpow.pop %v631
  %v633 = vmul.f32 %v322, 1.442695
  %v634 = vpow.pop %v633
  %v635 = vmul.f32 %v323, 1.442695
  %v636 = vpow.pop %v635
  %v637 = vmul.f32 %v324, 1.442695
  %v638 = vpow.pop %v637
  %v639 = vmul.f32 %v325, 1.442695
  %v640 = vpow.pop %v639
  %v641 = vmul.f32 %v326, 1.442695
  %v642 = vpow.pop %v641
  %v643 = vmul.f32 %v327, 1.442695
  %v644 = vpow.pop %v643
  %v645 = vmul.f32 %v328, 1.442695
  %v646 = vpow.pop %v645
  %v647 = vmul.f32 %v329, 1.442695
  %v648 = vpow.pop %v647
  %v649 = vmul.f32 %v330, 1.442695
  %v650 = vpow.pop %v649
  %v651 = vmul.f32 %v331, 1.442695
  %v652 = vpow.pop %v651
  %v653 = vmul.f32 %v332, 1.442695
  %v654 = vpow.pop %v653
  %v655 = vmul.f32 %v333, 1.442695
  %v656 = vpow.pop %v655
  %v657 = vmul.f32 %v334, 1.442695
  %v658 = vpow.pop %v657
  %v659 = vmul.f32 %v335, 1.442695
  %v660 = vpow.pop %v659
  %v661 = vmul.f32 %v336, 1.442695
  %v662 = vpow.pop %v661
  %v663 = vmul.f32 %v337, 1.442695
  %v664 = vpow.pop %v663
  %v665 = vmul.f32 %v338, 1.442695
  %v666 = vpow.pop %v665
  %v667 = vmul.f32 %v339, 1.442695
  %v668 = vpow.pop %v667
  %v669 = vmul.f32 %v340, 1.442695
  %v670 = vpow.pop %v669
  %v671 = vmul.f32 %v341, 1.442695
  %v672 = vpow.pop %v671
  %v673 = vmul.f32 %v342, 1.442695
  %v674 = vpow.pop %v673
  %v675 = vmul.f32 %v343, 1.442695
  %v676 = vpow.pop %v675
  %v677 = vmul.f32 %v344, 1.442695
  %v678 = vpow.pop %v677
  %v679 = vmul.f32 %v345, 1.442695
  %v680 = vpow.pop %v679
  %v681 = vmul.f32 %v346, 1.442695
  %v682 = vpow.pop %v681
  %v683 = vmul.f32 %v347, 1.442695
  %v684 = vpow.pop %v683
  %v685 = vmul.f32 %v348, 1.442695
  %v686 = vpow.pop %v685
  %v687 = vmul.f32 %v349, 1.442695
  %v688 = vpow.pop %v687
  %v689 = vmul.f32 %v350, 1.442695
  %v690 = vpow.pop %v689
  %v691 = vmul.f32 %v351, 1.442695
  %v692 = vpow.pop %v691
  %v693 = vmul.f32 %v352, 1.442695
  %v694 = vpow.pop %v693
  %v695 = vmul.f32 %v353, 1.442695
  %v696 = vpow.pop %v695
  %v697 = vmul.f32 %v354, 1.442695
  %v698 = vpow.pop %v697
  %v699 = vmul.f32 %v355, 1.442695
  %v700 = vpow.pop %v699
  %v701 = vmul.f32 %v356, 1.442695
  %v702 = vpow.pop %v701
  %v703 = vmul.f32 %v357, 1.442695
  %v704 = vpow.pop %v703
  %v705 = vmul.f32 %v358, 1.442695
  %v706 = vpow.pop %v705
  %v707 = vmul.f32 %v359, 1.442695
  %v708 = vpow.pop %v707
  %v709 = vmul.f32 %v360, 1.442695
  %v710 = vpow.pop %v709
  %v711 = vmul.f32 %v361, 1.442695
  %v712 = vpow.pop %v711
  %v713 = vmul.f32 %v362, 1.442695
  %v714 = vpow.pop %v713
  %v715 = vmul.f32 %v363, 1.442695
  %v716 = vpow.pop %v715
  %v717 = vmul.f32 %v364, 1.442695
  %v718 = vpow.pop %v717
  %v719 = vmul.f32 %v365, 1.442695
  %v720 = vpow.pop %v719
  %v721 = vmul.f32 %v366, 1.442695
  %v722 = vpow.pop %v721
  %v723 = vmul.f32 %v367, 1.442695
  %v724 = vpow.pop %v723
  %v725 = vmul.f32 %v368, 1.442695
  %v726 = vpow.pop %v725
  %v727 = vmul.f32 %v369, 1.442695
  %v728 = vpow.pop %v727
  %v729 = vmul.f32 %v370, 1.442695
  %v730 = vpow.pop %v729
  %v731 = vmul.f32 %v371, 1.442695
  %v732 = vpow.pop %v731
  %v733 = vmul.f32 %v372, 1.442695
  %v734 = vpow.pop %v733
  %v735 = vmul.f32 %v373, 1.442695
  %v736 = vpow.pop %v735
  %v737 = vmul.f32 %v374, 1.442695
  %v738 = vpow.pop %v737
  %v739 = vmul.f32 %v375, 1.442695
  %v740 = vpow.pop %v739
  %v741 = vmul.f32 %v376, 1.442695
  %v742 = vpow.pop %v741
  %v743 = vmul.f32 %v377, 1.442695
  %v744 = vpow.pop %v743
  %v745 = vmul.f32 %v378, 1.442695
  %v746 = vpow.pop %v745
  %v747 = vmul.f32 %v379, 1.442695
  %v748 = vpow.pop %v747
  %v749 = vmul.f32 %v380, 1.442695
  %v750 = vpow.pop %v749
  %v751 = vmul.f32 %v381, 1.442695
  %v752 = vpow.pop %v751
  %v753 = vmul.f32 %v382, 1.442695
  %v754 = vpow.pop %v753
  %v755 = vmul.f32 %v383, 1.442695
  %v756 = vpow.pop %v755
  %v757 = vmul.f32 %v384, 1.442695
  %v758 = vpow.pop %v757
  %v759 = vmul.f32 %v385, 1.442695
  %v760 = vpow.pop %v759
  %v761 = vmul.f32 %v386, 1.442695
  %v762 = vpow.pop %v761
  %v763 = vmul.f32 %v387, 1.442695
  %v764 = vpow.pop %v763
  %v765 = vmul.f32 %v388, 1.442695
  %v766 = vpow.pop %v765
  %v767 = vmul.f32 %v389, 1.442695
  %v768 = vpow.pop %v767
  %v769 = vmul.f32 %v390, 1.442695
  %v770 = vpow.pop %v769
  %v771 = vmul.f32 %v391, 1.442695
  %v772 = vpow.pop %v771
  %v773 = vmul.f32 %v392, 1.442695
  %v774 = vpow.pop %v773
  %v775 = vmul.f32 %v393, 1.442695
  %v776 = vpow.pop %v775
  %v777 = vmul.f32 %v394, 1.442695
  %v778 = vpow.pop %v777
  %v779 = vmul.f32 %v395, 1.442695
  %v780 = vpow.pop %v779
  %v781 = vmul.f32 %v396, 1.442695
  %v782 = vpow.pop %v781
  %v783 = vmul.f32 %v397, 1.442695
  %v784 = vpow.pop %v783
  %v785 = vmul.f32 %v398, 1.442695
  %v786 = vpow.pop %v785
  %v787 = vmul.f32 %v399, 1.442695
  %v788 = vpow.pop %v787
  %v789 = vmul.f32 %v400, 1.442695
  %v790 = vpow.pop %v789
  %v791 = vmul.f32 %v401, 1.442695
  %v792 = vpow.pop %v791
  %v793 = vmul.f32 %v402, 1.442695
  %v794 = vpow.pop %v793
  %v795 = vmul.f32 %v403, 1.442695
  %v796 = vpow.pop %v795
  %v797 = vmul.f32 %v404, 1.442695
  %v798 = vpow.pop %v797
  %v799 = vmul.f32 %v405, 1.442695
  %v800 = vpow.pop %v799
  %v801 = vmul.f32 %v406, 1.442695
  %v802 = vpow.pop %v801
  %v803 = vmul.f32 %v407, 1.442695
  %v804 = vpow.pop %v803
  %v805 = vmul.f32 %v408, 1.442695
  %v806 = vpow.pop %v805
  %v807 = vmul.f32 %v409, 1.442695
  %v808 = vpow.pop %v807
  %v809 = vmul.f32 %v410, 1.442695
  %v810 = vpow.pop %v809
  %v811 = vmul.f32 %v411, 1.442695
  %v812 = vpow.pop %v811
  %v813 = vmul.f32 %v412, 1.442695
  %v814 = vpow.pop %v813
  %v815 = vmul.f32 %v413, 1.442695
  %v816 = vpow.pop %v815
  %v817 = vmul.f32 %v414, 1.442695
  %v818 = vpow.pop %v817
  %v819 = vmul.f32 %v415, 1.442695
  %v820 = vpow.pop %v819
  %v821 = vmul.f32 %v416, 1.442695
  %v822 = vpow.pop %v821
  %v823 = vmul.f32 %v417, 1.442695
  %v824 = vpow.pop %v823
  %v825 = vmul.f32 %v418, 1.442695
  %v826 = vpow.pop %v825
  %v827 = vmul.f32 %v419, 1.442695
  %v828 = vpow.pop %v827
  %v829 = vmul.f32 %v420, 1.442695
  %v830 = vpow.pop %v829
  %v831 = vmul.f32 %v421, 1.442695
  %v832 = vpow.pop %v831
  %v833 = vmul.f32 %v422, 1.442695
  %v834 = vpow.pop %v833
  %v835 = vmul.f32 %v423, 1.442695
  %v836 = vpow.pop %v835
  %v837 = vmul.f32 %v424, 1.442695
  %v838 = vpow.pop %v837
  %v839 = vmul.f32 %v425, 1.442695
  %v840 = vpow.pop %v839
  %v841 = vmul.f32 %v426, 1.442695
  %v842 = vpow.pop %v841
  %v843 = vmul.f32 %v427, 1.442695
  %v844 = vpow.pop %v843
  %v845 = vmul.f32 %v428, 1.442695
  %v846 = vpow.pop %v845
  %v847 = vmul.f32 %v429, 1.442695
  %v848 = vpow.pop %v847
  %v849 = vmul.f32 %v430, 1.442695
  %v850 = vpow.pop %v849
  %v851 = vmul.f32 %v431, 1.442695
  %v852 = vpow.pop %v851
  %v853 = vmul.f32 %v432, 1.442695
  %v854 = vpow.pop %v853
  %v855 = vmul.f32 %v433, 1.442695
  %v856 = vpow.pop %v855
  %v857 = vmul.f32 %v434, 1.442695
  %v858 = vpow.pop %v857
  %v859 = vmul.f32 %v435, 1.442695
  %v860 = vpow.pop %v859
  %v861 = vmul.f32 %v436, 1.442695
  %v862 = vpow.pop %v861
  %v863 = vmul.f32 %v437, 1.442695
  %v864 = vpow.pop %v863
  %v865 = vmul.f32 %v438, 1.442695
  %v866 = vpow.pop %v865
  %v867 = vmul.f32 %v439, 1.442695
  %v868 = vpow.pop %v867
  %v869 = vmul.f32 %v440, 1.442695
  %v870 = vpow.pop %v869
  %v871 = vmul.f32 %v441, 1.442695
  %v872 = vpow.pop %v871
  %v873 = vmul.f32 %v442, 1.442695
  %v874 = vpow.pop %v873
  %v875 = vmul.f32 %v443, 1.442695
  %v876 = vpow.pop %v875
  %v877 = vmul.f32 %v444, 1.442695
  %v878 = vpow.pop %v877
  %v879 = vmul.f32 %v445, 1.442695
  %v880 = vpow.pop %v879
  %v881 = vmul.f32 %v446, 1.442695
  %v882 = vpow.pop %v881
  %v883 = vmul.f32 %v447, 1.442695
  %v884 = vpow.pop %v883
  %v885 = vmul.f32 %v448, 1.442695
  %v886 = vpow.pop %v885
  %v887 = vmul.f32 %v449, 1.442695
  %v888 = vpow.pop %v887
  %v889 = vmul.f32 %v450, 1.442695
  %v890 = vpow.pop %v889
  %v891 = vmul.f32 %v451, 1.442695
  %v892 = vpow.pop %v891
  %v893 = vmul.f32 %v452, 1.442695
  %v894 = vpow.pop %v893
  %v895 = vmul.f32 %v453, 1.442695
  %v896 = vpow.pop %v895
  %v897 = vmul.f32 %v454, 1.442695
  %v898 = vpow.pop %v897
  %v899 = vmul.f32 %v455, 1.442695
  %v900 = vpow.pop %v899
  %v901 = vmul.f32 %v456, 1.442695
  %v902 = vpow.pop %v901
  %v903 = vmul.f32 %v457, 1.442695
  %v904 = vpow.pop %v903
  %v905 = vmul.f32 %v458, 1.442695
  %v906 = vpow.pop %v905
  %v907 = vmul.f32 %v459, 1.442695
  %v908 = vpow.pop %v907
  %v909 = vmul.f32 %v460, 1.442695
  %v910 = vpow.pop %v909
  %v911 = vmul.f32 %v461, 1.442695
  %v912 = vpow.pop %v911
  %v913 = vmul.f32 %v462, 1.442695
  %v914 = vpow.pop %v913
  %v915 = vmul.f32 %v463, 1.442695
  %v916 = vpow.pop %v915
  %v917 = vmul.f32 %v464, 1.442695
  %v918 = vpow.pop %v917
  %v919 = vmul.f32 %v465, 1.442695
  %v920 = vpow.pop %v919
  %v921 = vmul.f32 %v466, 1.442695
  %v922 = vpow.pop %v921
  %v923 = vmul.f32 %v467, 1.442695
  %v924 = vpow.pop %v923
  %v925 = vmul.f32 %v468, 1.442695
  %v926 = vpow.pop %v925
  %v927 = vmul.f32 %v469, 1.442695
  %v928 = vpow.pop %v927
  %v929 = vmul.f32 %v470, 1.442695
  %v930 = vpow.pop %v929
  %v931 = vmul.f32 %v471, 1.442695
  %v932 = vpow.pop %v931
  %v933 = vmul.f32 %v472, 1.442695
  %v934 = vpow.pop %v933
  %v935 = vmul.f32 %v473, 1.442695
  %v936 = vpow.pop %v935
  %v937 = vmul.f32 %v474, 1.442695
  %v938 = vpow.pop %v937
  %v939 = vmul.f32 %v475, 1.442695
  %v940 = vpow.pop %v939
  %v941 = vmul.f32 %v476, 1.442695
  %v942 = vpow.pop %v941
  %v943 = vmul.f32 %v477, 1.442695
  %v944 = vpow.pop %v943
  %v945 = vmul.f32 %v478, 1.442695
  %v946 = vpow.pop %v945
  %v947 = vmul.f32 %v479, 1.442695
  %v948 = vpow.pop %v947
  %v949 = vmul.f32 %v480, 1.442695
  %v950 = vpow.pop %v949
  %v951 = vmul.f32 %v481, 1.442695
  %v952 = vpow.pop %v951
  %v953 = vmul.f32 %v482, 1.442695
  %v954 = vpow.pop %v953
  %v955 = vmul.f32 %v483, 1.442695
  %v956 = vpow.pop %v955
  %v957 = vmul.f32 %v484, 1.442695
  %v958 = vpow.pop %v957
  %v959 = vmul.f32 %v485, 1.442695
  %v960 = vpow.pop %v959
  %v961 = vmul.f32 %v486, 1.442695
  %v962 = vpow.pop %v961
  %v963 = vmul.f32 %v487, 1.442695
  %v964 = vpow.pop %v963
  %v965 = vmul.f32 %v488, 1.442695
  %v966 = vpow.pop %v965
  %v967 = vmul.f32 %v489, 1.442695
  %v968 = vpow.pop %v967
  %v969 = vmul.f32 %v490, 1.442695
  %v970 = vpow.pop %v969
  %v971 = vmul.f32 %v491, 1.442695
  %v972 = vpow.pop %v971
  %v973 = vmul.f32 %v492, 1.442695
  %v974 = vpow.pop %v973
  %v975 = vmul.f32 %v493, 1.442695
  %v976 = vpow.pop %v975
  %v977 = vmul.f32 %v494, 1.442695
  %v978 = vpow.pop %v977
  %v979 = vmul.f32 %v495, 1.442695
  %v980 = vpow.pop %v979
  %v981 = vmul.f32 %v496, 1.442695
  %v982 = vpow.pop %v981
  %v983 = vmul.f32 %v497, 1.442695
  %v984 = vpow.pop %v983
  %v985 = vmul.f32 %v498, 1.442695
  %v986 = vpow.pop %v985
  %v987 = vmul.f32 %v499, 1.442695
  %v988 = vpow.pop %v987
  %v989 = vmul.f32 %v500, 1.442695
  %v990 = vpow.pop %v989
  %v991 = vmul.f32 %v501, 1.442695
  %v992 = vpow.pop %v991
  %v993 = vmul.f32 %v502, 1.442695
  %v994 = vpow.pop %v993
  %v995 = vmul.f32 %v503, 1.442695
  %v996 = vpow.pop %v995
  %v997 = vmul.f32 %v504, 1.442695
  %v998 = vpow.pop %v997
  %v999 = vmul.f32 %v505, 1.442695
  %v1000 = vpow.pop %v999
  %v1001 = vmul.f32 %v506, 1.442695
  %v1002 = vpow.pop %v1001
  %v1003 = vmul.f32 %v507, 1.442695
  %v1004 = vpow.pop %v1003
  %v1005 = vmul.f32 %v508, 1.442695
  %v1006 = vpow.pop %v1005
  %v1007 = vmul.f32 %v509, 1.442695
  %v1008 = vpow.pop %v1007
  %v1009 = vmul.f32 %v510, 1.442695
  %v1010 = vpow.pop %v1009
  %v1011 = vmul.f32 %v511, 1.442695
  %v1012 = vpow.pop %v1011
  %v1013 = vmul.f32 %v512, 1.442695
  %v1014 = vpow.pop %v1013
  %v1015 = vmul.f32 %v513, 1.442695
  %v1016 = vpow.pop %v1015
  %v1017 = vmul.f32 %v514, 1.442695
  %v1018 = vpow.pop %v1017
  %v1019 = vmul.f32 %v515, 1.442695
  %v1020 = vpow.pop %v1019
  %v1021 = vmul.f32 %v516, 1.442695
  %v1022 = vpow.pop %v1021
  %v1023 = vmul.f32 %v517, 1.442695
  %v1024 = vpow.pop %v1023
  %v1025 = vmul.f32 %v518, 1.442695
  %v1026 = vpow.pop %v1025
  %v1027 = vmul.f32 %v519, 1.442695
  %v1028 = vpow.pop %v1027
  %v1029 = vmul.f32 %v520, 1.442695
  %v1030 = vpow.pop %v1029
  %v1031 = vmul.f32 %v521, 1.442695
  %v1032 = vpow.pop %v1031
  %v1033 = vmul.f32 %v522, 1.442695
  %v1034 = vpow.pop %v1033
  %v1035 = vmul.f32 %v523, 1.442695
  %v1036 = vpow.pop %v1035
  %v1037 = vmul.f32 %v524, 1.442695
  %v1038 = vpow.pop %v1037
  %v1039 = vmul.f32 %v525, 1.442695
  %v1040 = vpow.pop %v1039
  %v1041 = vmul.f32 %v526, 1.442695
  %v1042 = vpow.pop %v1041
  %v1043 = vmul.f32 %v527, 1.442695
  %v1044 = vpow.pop %v1043
  %v1045 = vmul.f32 %v528, 1.442695
  %v1046 = vpow.pop %v1045
  %v1047 = vmul.f32 %v529, 1.442695
  %v1048 = vpow.pop %v1047
  %v1049 = vmul.f32 %v530, 1.442695
  %v1050 = vpow.pop %v1049
  %v1051 = vmul.f32 %v531, 1.442695
  %v1052 = vpow.pop %v1051
  %v1053 = vmul.f32 %v532, 1.442695
  %v1054 = vpow.pop %v1053
  %v1055 = vmul.f32 %v533, 1.442695
  %v1056 = vpow.pop %v1055
  %v1057 = vmul.f32 %v534, 1.442695
  %v1058 = vpow.pop %v1057
  %v1059 = vmul.f32 %v535, 1.442695
  %v1060 = vpow.pop %v1059
  %v1061 = vmul.f32 %v536, 1.442695
  %v1062 = vpow.pop %v1061
  %v1063 = vmul.f32 %v537, 1.442695
  %v1064 = vpow.pop %v1063
  %v1065 = vmul.f32 %v538, 1.442695
  %v1066 = vpow.pop %v1065
  %v1067 = vmul.f32 %v539, 1.442695
  %v1068 = vpow.pop %v1067
  %v1069 = vmul.f32 %v540, 1.442695
  %v1070 = vpow.pop %v1069
  %v1071 = vmul.f32 %v541, 1.442695
  %v1072 = vpow.pop %v1071
  %v1073 = vmul.f32 %v542, 1.442695
  %v1074 = vpow.pop %v1073
  %v1075 = vmul.f32 %v543, 1.442695
  %v1076 = vpow.pop %v1075
  %v1077 = vmul.f32 %v544, 1.442695
  %v1078 = vpow.pop %v1077
  %v1079 = vmul.f32 %v545, 1.442695
  %v1080 = vpow.pop %v1079
  %v1081 = vmul.f32 %v546, 1.442695
  %v1082 = vpow.pop %v1081
  %v1083 = vmul.f32 %v547, 1.442695
  %v1084 = vpow.pop %v1083
  %v1085 = vmul.f32 %v548, 1.442695
  %v1086 = vpow.pop %v1085
  %v1087 = vmul.f32 %v549, 1.442695
  %v1088 = vpow.pop %v1087
  %v1089 = vmul.f32 %v550, 1.442695
  %v1090 = vpow.pop %v1089
  %v1091 = vmul.f32 %v551, 1.442695
  %v1092 = vpow.pop %v1091
  %v1093 = vmul.f32 %v552, 1.442695
  %v1094 = vpow.pop %v1093
  %v1095 = vmul.f32 %v553, 1.442695
  %v1096 = vpow.pop %v1095
  %v1097 = vmul.f32 %v554, 1.442695
  %v1098 = vpow.pop %v1097
  %v1099 = vmul.f32 %v555, 1.442695
  %v1100 = vpow.pop %v1099
  %v1101 = vmul.f32 %v556, 1.442695
  %v1102 = vpow.pop %v1101
  %v1103 = vmul.f32 %v557, 1.442695
  %v1104 = vpow.pop %v1103
  %v1105 = vmul.f32 %v558, 1.442695
  %v1106 = vpow.pop %v1105
  %v1107 = vmul.f32 %v559, 1.442695
  %v1108 = vpow.pop %v1107
  %v1109 = vmul.f32 %v560, 1.442695
  %v1110 = vpow.pop %v1109
  %v1111 = vmul.f32 %v561, 1.442695
  %v1112 = vpow.pop %v1111
  %v1113 = vmul.f32 %v562, 1.442695
  %v1114 = vpow.pop %v1113
  %v1115 = vmul.f32 %v563, 1.442695
  %v1116 = vpow.pop %v1115
  %v1117 = vmul.f32 %v564, 1.442695
  %v1118 = vpow.pop %v1117
  %v1119 = vmul.f32 %v565, 1.442695
  %v1120 = vpow.pop %v1119
  %v1121 = vmul.f32 %v566, 1.442695
  %v1122 = vpow.pop %v1121
  %v1123 = vmul.f32 %v567, 1.442695
  %v1124 = vpow.pop %v1123
  %v1125 = vmul.f32 %v568, 1.442695
  %v1126 = vpow.pop %v1125
  %v1127 = vmul.f32 %v569, 1.442695
  %v1128 = vpow.pop %v1127
  %v1129 = vmul.f32 %v570, 1.442695
  %v1130 = vpow.pop %v1129
  %v1131 = vmul.f32 %v571, 1.442695
  %v1132 = vpow.pop %v1131
  %v1133 = vmul.f32 %v572, 1.442695
  %v1134 = vpow.pop %v1133
  %v1135 = vmul.f32 %v573, 1.442695
  %v1136 = vpow.pop %v1135
  %v1137 = vmul.f32 %v574, 1.442695
  %v1138 = vpow.pop %v1137
  %v1139 = vmul.f32 %v575, 1.442695
  %v1140 = vpow.pop %v1139
  %v1141 = vmul.f32 %v576, 1.442695
  %v1142 = vpow.pop %v1141
  %v1143 = vmul.f32 %v577, 1.442695
  %v1144 = vpow.pop %v1143
  %v1145 = vmul.f32 %v578, 1.442695
  %v1146 = vpow.pop %v1145
  %v1147 = vmul.f32 %v579, 1.442695
  %v1148 = vpow.pop %v1147
  %v1149 = vmul.f32 %v580, 1.442695
  %v1150 = vpow.pop %v1149
  %v1151 = vmul.f32 %v581, 1.442695
  %v1152 = vpow.pop %v1151
  %v1153 = vmul.f32 %v582, 1.442695
  %v1154 = vpow.pop %v1153
  %v1155 = vmul.f32 %v583, 1.442695
  %v1156 = vpow.pop %v1155
  %v1157 = vmul.f32 %v584, 1.442695
  %v1158 = vpow.pop %v1157
  %v1159 = vmul.f32 %v585, 1.442695
  %v1160 = vpow.pop %v1159
  %v1161 = vmul.f32 %v586, 1.442695
  %v1162 = vpow.pop %v1161
  %v1163 = vadd.f32 %v588, 1.0
  %v1164 = vadd.f32 %v590, 1.0
  %v1165 = vadd.f32 %v592, 1.0
  %v1166 = vadd.f32 %v594, 1.0
  %v1167 = vadd.f32 %v596, 1.0
  %v1168 = vadd.f32 %v598, 1.0
  %v1169 = vadd.f32 %v600, 1.0
  %v1170 = vadd.f32 %v602, 1.0
  %v1171 = vadd.f32 %v604, 1.0
  %v1172 = vadd.f32 %v606, 1.0
  %v1173 = vadd.f32 %v608, 1.0
  %v1174 = vadd.f32 %v610, 1.0
  %v1175 = vadd.f32 %v612, 1.0
  %v1176 = vadd.f32 %v614, 1.0
  %v1177 = vadd.f32 %v616, 1.0
  %v1178 = vadd.f32 %v618, 1.0
  %v1179 = vadd.f32 %v620, 1.0
  %v1180 = vadd.f32 %v622, 1.0
  %v1181 = vadd.f32 %v624, 1.0
  %v1182 = vadd.f32 %v626, 1.0
  %v1183 = vadd.f32 %v628, 1.0
  %v1184 = vadd.f32 %v630, 1.0
  %v1185 = vadd.f32 %v632, 1.0
  %v1186 = vadd.f32 %v634, 1.0
  %v1187 = vadd.f32 %v636, 1.0
  %v1188 = vadd.f32 %v638, 1.0
  %v1189 = vadd.f32 %v640, 1.0
  %v1190 = vadd.f32 %v642, 1.0
  %v1191 = vadd.f32 %v644, 1.0
  %v1192 = vadd.f32 %v646, 1.0
  %v1193 = vadd.f32 %v648, 1.0
  %v1194 = vadd.f32 %v650, 1.0
  %v1195 = vadd.f32 %v652, 1.0
  %v1196 = vadd.f32 %v654, 1.0
  %v1197 = vadd.f32 %v656, 1.0
  %v1198 = vadd.f32 %v658, 1.0
  %v1199 = vadd.f32 %v660, 1.0
  %v1200 = vadd.f32 %v662, 1.0
  %v1201 = vadd.f32 %v664, 1.0
  %v1202 = vadd.f32 %v666, 1.0
  %v1203 = vadd.f32 %v668, 1.0
  %v1204 = vadd.f32 %v670, 1.0
  %v1205 = vadd.f32 %v672, 1.0
  %v1206 = vadd.f32 %v674, 1.0
  %v1207 = vadd.f32 %v676, 1.0
  %v1208 = vadd.f32 %v678, 1.0
  %v1209 = vadd.f32 %v680, 1.0
  %v1210 = vadd.f32 %v682, 1.0
  %v1211 = vadd.f32 %v684, 1.0
  %v1212 = vadd.f32 %v686, 1.0
  %v1213 = vadd.f32 %v688, 1.0
  %v1214 = vadd.f32 %v690, 1.0
  %v1215 = vadd.f32 %v692, 1.0
  %v1216 = vadd.f32 %v694, 1.0
  %v1217 = vadd.f32 %v696, 1.0
  %v1218 = vadd.f32 %v698, 1.0
  %v1219 = vadd.f32 %v700, 1.0
  %v1220 = vadd.f32 %v702, 1.0
  %v1221 = vadd.f32 %v704, 1.0
  %v1222 = vadd.f32 %v706, 1.0
  %v1223 = vadd.f32 %v708, 1.0
  %v1224 = vadd.f32 %v710, 1.0
  %v1225 = vadd.f32 %v712, 1.0
  %v1226 = vadd.f32 %v714, 1.0
  %v1227 = vadd.f32 %v716, 1.0
  %v1228 = vadd.f32 %v718, 1.0
  %v1229 = vadd.f32 %v720, 1.0
  %v1230 = vadd.f32 %v722, 1.0
  %v1231 = vadd.f32 %v724, 1.0
  %v1232 = vadd.f32 %v726, 1.0
  %v1233 = vadd.f32 %v728, 1.0
  %v1234 = vadd.f32 %v730, 1.0
  %v1235 = vadd.f32 %v732, 1.0
  %v1236 = vadd.f32 %v734, 1.0
  %v1237 = vadd.f32 %v736, 1.0
  %v1238 = vadd.f32 %v738, 1.0
  %v1239 = vadd.f32 %v740, 1.0
  %v1240 = vadd.f32 %v742, 1.0
  %v1241 = vadd.f32 %v744, 1.0
  %v1242 = vadd.f32 %v746, 1.0
  %v1243 = vadd.f32 %v748, 1.0
  %v1244 = vadd.f32 %v750, 1.0
  %v1245 = vadd.f32 %v752, 1.0
  %v1246 = vadd.f32 %v754, 1.0
  %v1247 = vadd.f32 %v756, 1.0
  %v1248 = vadd.f32 %v758, 1.0
  %v1249 = vadd.f32 %v760, 1.0
  %v1250 = vadd.f32 %v762, 1.0
  %v1251 = vadd.f32 %v764, 1.0
  %v1252 = vadd.f32 %v766, 1.0
  %v1253 = vadd.f32 %v768, 1.0
  %v1254 = vadd.f32 %v770, 1.0
  %v1255 = vadd.f32 %v772, 1.0
  %v1256 = vadd.f32 %v774, 1.0
  %v1257 = vadd.f32 %v776, 1.0
  %v1258 = vadd.f32 %v778, 1.0
  %v1259 = vadd.f32 %v780, 1.0
  %v1260 = vadd.f32 %v782, 1.0
  %v1261 = vadd.f32 %v784, 1.0
  %v1262 = vadd.f32 %v786, 1.0
  %v1263 = vadd.f32 %v788, 1.0
  %v1264 = vadd.f32 %v790, 1.0
  %v1265 = vadd.f32 %v792, 1.0
  %v1266 = vadd.f32 %v794, 1.0
  %v1267 = vadd.f32 %v796, 1.0
  %v1268 = vadd.f32 %v798, 1.0
  %v1269 = vadd.f32 %v800, 1.0
  %v1270 = vadd.f32 %v802, 1.0
  %v1271 = vadd.f32 %v804, 1.0
  %v1272 = vadd.f32 %v806, 1.0
  %v1273 = vadd.f32 %v808, 1.0
  %v1274 = vadd.f32 %v810, 1.0
  %v1275 = vadd.f32 %v812, 1.0
  %v1276 = vadd.f32 %v814, 1.0
  %v1277 = vadd.f32 %v816, 1.0
  %v1278 = vadd.f32 %v818, 1.0
  %v1279 = vadd.f32 %v820, 1.0
  %v1280 = vadd.f32 %v822, 1.0
  %v1281 = vadd.f32 %v824, 1.0
  %v1282 = vadd.f32 %v826, 1.0
  %v1283 = vadd.f32 %v828, 1.0
  %v1284 = vadd.f32 %v830, 1.0
  %v1285 = vadd.f32 %v832, 1.0
  %v1286 = vadd.f32 %v834, 1.0
  %v1287 = vadd.f32 %v836, 1.0
  %v1288 = vadd.f32 %v838, 1.0
  %v1289 = vadd.f32 %v840, 1.0
  %v1290 = vadd.f32 %v842, 1.0
  %v1291 = vadd.f32 %v844, 1.0
  %v1292 = vadd.f32 %v846, 1.0
  %v1293 = vadd.f32 %v848, 1.0
  %v1294 = vadd.f32 %v850, 1.0
  %v1295 = vadd.f32 %v852, 1.0
  %v1296 = vadd.f32 %v854, 1.0
  %v1297 = vadd.f32 %v856, 1.0
  %v1298 = vadd.f32 %v858, 1.0
  %v1299 = vadd.f32 %v860, 1.0
  %v1300 = vadd.f32 %v862, 1.0
  %v1301 = vadd.f32 %v864, 1.0
  %v1302 = vadd.f32 %v866, 1.0
  %v1303 = vadd.f32 %v868, 1.0
  %v1304 = vadd.f32 %v870, 1.0
  %v1305 = vadd.f32 %v872, 1.0
  %v1306 = vadd.f32 %v874, 1.0
  %v1307 = vadd.f32 %v876, 1.0
  %v1308 = vadd.f32 %v878, 1.0
  %v1309 = vadd.f32 %v880, 1.0
  %v1310 = vadd.f32 %v882, 1.0
  %v1311 = vadd.f32 %v884, 1.0
  %v1312 = vadd.f32 %v886, 1.0
  %v1313 = vadd.f32 %v888, 1.0
  %v1314 = vadd.f32 %v890, 1.0
  %v1315 = vadd.f32 %v892, 1.0
  %v1316 = vadd.f32 %v894, 1.0
  %v1317 = vadd.f32 %v896, 1.0
  %v1318 = vadd.f32 %v898, 1.0
  %v1319 = vadd.f32 %v900, 1.0
  %v1320 = vadd.f32 %v902, 1.0
  %v1321 = vadd.f32 %v904, 1.0
  %v1322 = vadd.f32 %v906, 1.0
  %v1323 = vadd.f32 %v908, 1.0
  %v1324 = vadd.f32 %v910, 1.0
  %v1325 = vadd.f32 %v912, 1.0
  %v1326 = vadd.f32 %v914, 1.0
  %v1327 = vadd.f32 %v916, 1.0
  %v1328 = vadd.f32 %v918, 1.0
  %v1329 = vadd.f32 %v920, 1.0
  %v1330 = vadd.f32 %v922, 1.0
  %v1331 = vadd.f32 %v924, 1.0
  %v1332 = vadd.f32 %v926, 1.0
  %v1333 = vadd.f32 %v928, 1.0
  %v1334 = vadd.f32 %v930, 1.0
  %v1335 = vadd.f32 %v932, 1.0
  %v1336 = vadd.f32 %v934, 1.0
  %v1337 = vadd.f32 %v936, 1.0
  %v1338 = vadd.f32 %v938, 1.0
  %v1339 = vadd.f32 %v940, 1.0
  %v1340 = vadd.f32 %v942, 1.0
  %v1341 = vadd.f32 %v944, 1.0
  %v1342 = vadd.f32 %v946, 1.0
  %v1343 = vadd.f32 %v948, 1.0
  %v1344 = vadd.f32 %v950, 1.0
  %v1345 = vadd.f32 %v952, 1.0
  %v1346 = vadd.f32 %v954, 1.0
  %v1347 = vadd.f32 %v956, 1.0
  %v1348 = vadd.f32 %v958, 1.0
  %v1349 = vadd.f32 %v960, 1.0
  %v1350 = vadd.f32 %v962, 1.0
  %v1351 = vadd.f32 %v964, 1.0
  %v1352 = vadd.f32 %v966, 1.0
  %v1353 = vadd.f32 %v968, 1.0
  %v1354 = vadd.f32 %v970, 1.0
  %v1355 = vadd.f32 %v972, 1.0
  %v1356 = vadd.f32 %v974, 1.0
  %v1357 = vadd.f32 %v976, 1.0
  %v1358 = vadd.f32 %v978, 1.0
  %v1359 = vadd.f32 %v980, 1.0
  %v1360 = vadd.f32 %v982, 1.0
  %v1361 = vadd.f32 %v984, 1.0
  %v1362 = vadd.f32 %v986, 1.0
  %v1363 = vadd.f32 %v988, 1.0
  %v1364 = vadd.f32 %v990, 1.0
  %v1365 = vadd.f32 %v992, 1.0
  %v1366 = vadd.f32 %v994, 1.0
  %v1367 = vadd.f32 %v996, 1.0
  %v1368 = vadd.f32 %v998, 1.0
  %v1369 = vadd.f32 %v1000, 1.0
  %v1370 = vadd.f32 %v1002, 1.0
  %v1371 = vadd.f32 %v1004, 1.0
  %v1372 = vadd.f32 %v1006, 1.0
  %v1373 = vadd.f32 %v1008, 1.0
  %v1374 = vadd.f32 %v1010, 1.0
  %v1375 = vadd.f32 %v1012, 1.0
  %v1376 = vadd.f32 %v1014, 1.0
  %v1377 = vadd.f32 %v1016, 1.0
  %v1378 = vadd.f32 %v1018, 1.0
  %v1379 = vadd.f32 %v1020, 1.0
  %v1380 = vadd.f32 %v1022, 1.0
  %v1381 = vadd.f32 %v1024, 1.0
  %v1382 = vadd.f32 %v1026, 1.0
  %v1383 = vadd.f32 %v1028, 1.0
  %v1384 = vadd.f32 %v1030, 1.0
  %v1385 = vadd.f32 %v1032, 1.0
  %v1386 = vadd.f32 %v1034, 1.0
  %v1387 = vadd.f32 %v1036, 1.0
  %v1388 = vadd.f32 %v1038, 1.0
  %v1389 = vadd.f32 %v1040, 1.0
  %v1390 = vadd.f32 %v1042, 1.0
  %v1391 = vadd.f32 %v1044, 1.0
  %v1392 = vadd.f32 %v1046, 1.0
  %v1393 = vadd.f32 %v1048, 1.0
  %v1394 = vadd.f32 %v1050, 1.0
  %v1395 = vadd.f32 %v1052, 1.0
  %v1396 = vadd.f32 %v1054, 1.0
  %v1397 = vadd.f32 %v1056, 1.0
  %v1398 = vadd.f32 %v1058, 1.0
  %v1399 = vadd.f32 %v1060, 1.0
  %v1400 = vadd.f32 %v1062, 1.0
  %v1401 = vadd.f32 %v1064, 1.0
  %v1402 = vadd.f32 %v1066, 1.0
  %v1403 = vadd.f32 %v1068, 1.0
  %v1404 = vadd.f32 %v1070, 1.0
  %v1405 = vadd.f32 %v1072, 1.0
  %v1406 = vadd.f32 %v1074, 1.0
  %v1407 = vadd.f32 %v1076, 1.0
  %v1408 = vadd.f32 %v1078, 1.0
  %v1409 = vadd.f32 %v1080, 1.0
  %v1410 = vadd.f32 %v1082, 1.0
  %v1411 = vadd.f32 %v1084, 1.0
  %v1412 = vadd.f32 %v1086, 1.0
  %v1413 = vadd.f32 %v1088, 1.0
  %v1414 = vadd.f32 %v1090, 1.0
  %v1415 = vadd.f32 %v1092, 1.0
  %v1416 = vadd.f32 %v1094, 1.0
  %v1417 = vadd.f32 %v1096, 1.0
  %v1418 = vadd.f32 %v1098, 1.0
  %v1419 = vadd.f32 %v1100, 1.0
  %v1420 = vadd.f32 %v1102, 1.0
  %v1421 = vadd.f32 %v1104, 1.0
  %v1422 = vadd.f32 %v1106, 1.0
  %v1423 = vadd.f32 %v1108, 1.0
  %v1424 = vadd.f32 %v1110, 1.0
  %v1425 = vadd.f32 %v1112, 1.0
  %v1426 = vadd.f32 %v1114, 1.0
  %v1427 = vadd.f32 %v1116, 1.0
  %v1428 = vadd.f32 %v1118, 1.0
  %v1429 = vadd.f32 %v1120, 1.0
  %v1430 = vadd.f32 %v1122, 1.0
  %v1431 = vadd.f32 %v1124, 1.0
  %v1432 = vadd.f32 %v1126, 1.0
  %v1433 = vadd.f32 %v1128, 1.0
  %v1434 = vadd.f32 %v1130, 1.0
  %v1435 = vadd.f32 %v1132, 1.0
  %v1436 = vadd.f32 %v1134, 1.0
  %v1437 = vadd.f32 %v1136, 1.0
  %v1438 = vadd.f32 %v1138, 1.0
  %v1439 = vadd.f32 %v1140, 1.0
  %v1440 = vadd.f32 %v1142, 1.0
  %v1441 = vadd.f32 %v1144, 1.0
  %v1442 = vadd.f32 %v1146, 1.0
  %v1443 = vadd.f32 %v1148, 1.0
  %v1444 = vadd.f32 %v1150, 1.0
  %v1445 = vadd.f32 %v1152, 1.0
  %v1446 = vadd.f32 %v1154, 1.0
  %v1447 = vadd.f32 %v1156, 1.0
  %v1448 = vadd.f32 %v1158, 1.0
  %v1449 = vadd.f32 %v1160, 1.0
  %v1450 = vadd.f32 %v1162, 1.0
  %v1451 = vrcp.pop %v1163
  %v1452 = vmul.f32 1.0, %v1451
  %v1453 = vrcp.pop %v1164
  %v1454 = vmul.f32 1.0, %v1453
  %v1455 = vrcp.pop %v1165
  %v1456 = vmul.f32 1.0, %v1455
  %v1457 = vrcp.pop %v1166
  %v1458 = vmul.f32 1.0, %v1457
  %v1459 = vrcp.pop %v1167
  %v1460 = vmul.f32 1.0, %v1459
  %v1461 = vrcp.pop %v1168
  %v1462 = vmul.f32 1.0, %v1461
  %v1463 = vrcp.pop %v1169
  %v1464 = vmul.f32 1.0, %v1463
  %v1465 = vrcp.pop %v1170
  %v1466 = vmul.f32 1.0, %v1465
  %v1467 = vrcp.pop %v1171
  %v1468 = vmul.f32 1.0, %v1467
  %v1469 = vrcp.pop %v1172
  %v1470 = vmul.f32 1.0, %v1469
  %v1471 = vrcp.pop %v1173
  %v1472 = vmul.f32 1.0, %v1471
  %v1473 = vrcp.pop %v1174
  %v1474 = vmul.f32 1.0, %v1473
  %v1475 = vrcp.pop %v1175
  %v1476 = vmul.f32 1.0, %v1475
  %v1477 = vrcp.pop %v1176
  %v1478 = vmul.f32 1.0, %v1477
  %v1479 = vrcp.pop %v1177
  %v1480 = vmul.f32 1.0, %v1479
  %v1481 = vrcp.pop %v1178
  %v1482 = vmul.f32 1.0, %v1481
  %v1483 = vrcp.pop %v1179
  %v1484 = vmul.f32 1.0, %v1483
  %v1485 = vrcp.pop %v1180
  %v1486 = vmul.f32 1.0, %v1485
  %v1487 = vrcp.pop %v1181
  %v1488 = vmul.f32 1.0, %v1487
  %v1489 = vrcp.pop %v1182
  %v1490 = vmul.f32 1.0, %v1489
  %v1491 = vrcp.pop %v1183
  %v1492 = vmul.f32 1.0, %v1491
  %v1493 = vrcp.pop %v1184
  %v1494 = vmul.f32 1.0, %v1493
  %v1495 = vrcp.pop %v1185
  %v1496 = vmul.f32 1.0, %v1495
  %v1497 = vrcp.pop %v1186
  %v1498 = vmul.f32 1.0, %v1497
  %v1499 = vrcp.pop %v1187
  %v1500 = vmul.f32 1.0, %v1499
  %v1501 = vrcp.pop %v1188
  %v1502 = vmul.f32 1.0, %v1501
  %v1503 = vrcp.pop %v1189
  %v1504 = vmul.f32 1.0, %v1503
  %v1505 = vrcp.pop %v1190
  %v1506 = vmul.f32 1.0, %v1505
  %v1507 = vrcp.pop %v1191
  %v1508 = vmul.f32 1.0, %v1507
  %v1509 = vrcp.pop %v1192
  %v1510 = vmul.f32 1.0, %v1509
  %v1511 = vrcp.pop %v1193
  %v1512 = vmul.f32 1.0, %v1511
  %v1513 = vrcp.pop %v1194
  %v1514 = vmul.f32 1.0, %v1513
  %v1515 = vrcp.pop %v1195
  %v1516 = vmul.f32 1.0, %v1515
  %v1517 = vrcp.pop %v1196
  %v1518 = vmul.f32 1.0, %v1517
  %v1519 = vrcp.pop %v1197
  %v1520 = vmul.f32 1.0, %v1519
  %v1521 = vrcp.pop %v1198
  %v1522 = vmul.f32 1.0, %v1521
  %v1523 = vrcp.pop %v1199
  %v1524 = vmul.f32 1.0, %v1523
  %v1525 = vrcp.pop %v1200
  %v1526 = vmul.f32 1.0, %v1525
  %v1527 = vrcp.pop %v1201
  %v1528 = vmul.f32 1.0, %v1527
  %v1529 = vrcp.pop %v1202
  %v1530 = vmul.f32 1.0, %v1529
  %v1531 = vrcp.pop %v1203
  %v1532 = vmul.f32 1.0, %v1531
  %v1533 = vrcp.pop %v1204
  %v1534 = vmul.f32 1.0, %v1533
  %v1535 = vrcp.pop %v1205
  %v1536 = vmul.f32 1.0, %v1535
  %v1537 = vrcp.pop %v1206
  %v1538 = vmul.f32 1.0, %v1537
  %v1539 = vrcp.pop %v1207
  %v1540 = vmul.f32 1.0, %v1539
  %v1541 = vrcp.pop %v1208
  %v1542 = vmul.f32 1.0, %v1541
  %v1543 = vrcp.pop %v1209
  %v1544 = vmul.f32 1.0, %v1543
  %v1545 = vrcp.pop %v1210
  %v1546 = vmul.f32 1.0, %v1545
  %v1547 = vrcp.pop %v1211
  %v1548 = vmul.f32 1.0, %v1547
  %v1549 = vrcp.pop %v1212
  %v1550 = vmul.f32 1.0, %v1549
  %v1551 = vrcp.pop %v1213
  %v1552 = vmul.f32 1.0, %v1551
  %v1553 = vrcp.pop %v1214
  %v1554 = vmul.f32 1.0, %v1553
  %v1555 = vrcp.pop %v1215
  %v1556 = vmul.f32 1.0, %v1555
  %v1557 = vrcp.pop %v1216
  %v1558 = vmul.f32 1.0, %v1557
  %v1559 = vrcp.pop %v1217
  %v1560 = vmul.f32 1.0, %v1559
  %v1561 = vrcp.pop %v1218
  %v1562 = vmul.f32 1.0, %v1561
  %v1563 = vrcp.pop %v1219
  %v1564 = vmul.f32 1.0, %v1563
  %v1565 = vrcp.pop %v1220
  %v1566 = vmul.f32 1.0, %v1565
  %v1567 = vrcp.pop %v1221
  %v1568 = vmul.f32 1.0, %v1567
  %v1569 = vrcp.pop %v1222
  %v1570 = vmul.f32 1.0, %v1569
  %v1571 = vrcp.pop %v1223
  %v1572 = vmul.f32 1.0, %v1571
  %v1573 = vrcp.pop %v1224
  %v1574 = vmul.f32 1.0, %v1573
  %v1575 = vrcp.pop %v1225
  %v1576 = vmul.f32 1.0, %v1575
  %v1577 = vrcp.pop %v1226
  %v1578 = vmul.f32 1.0, %v1577
  %v1579 = vrcp.pop %v1227
  %v1580 = vmul.f32 1.0, %v1579
  %v1581 = vrcp.pop %v1228
  %v1582 = vmul.f32 1.0, %v1581
  %v1583 = vrcp.pop %v1229
  %v1584 = vmul.f32 1.0, %v1583
  %v1585 = vrcp.pop %v1230
  %v1586 = vmul.f32 1.0, %v1585
  %v1587 = vrcp.pop %v1231
  %v1588 = vmul.f32 1.0, %v1587
  %v1589 = vrcp.pop %v1232
  %v1590 = vmul.f32 1.0, %v1589
  %v1591 = vrcp.pop %v1233
  %v1592 = vmul.f32 1.0, %v1591
  %v1593 = vrcp.pop %v1234
  %v1594 = vmul.f32 1.0, %v1593
  %v1595 = vrcp.pop %v1235
  %v1596 = vmul.f32 1.0, %v1595
  %v1597 = vrcp.pop %v1236
  %v1598 = vmul.f32 1.0, %v1597
  %v1599 = vrcp.pop %v1237
  %v1600 = vmul.f32 1.0, %v1599
  %v1601 = vrcp.pop %v1238
  %v1602 = vmul.f32 1.0, %v1601
  %v1603 = vrcp.pop %v1239
  %v1604 = vmul.f32 1.0, %v1603
  %v1605 = vrcp.pop %v1240
  %v1606 = vmul.f32 1.0, %v1605
  %v1607 = vrcp.pop %v1241
  %v1608 = vmul.f32 1.0, %v1607
  %v1609 = vrcp.pop %v1242
  %v1610 = vmul.f32 1.0, %v1609
  %v1611 = vrcp.pop %v1243
  %v1612 = vmul.f32 1.0, %v1611
  %v1613 = vrcp.pop %v1244
  %v1614 = vmul.f32 1.0, %v1613
  %v1615 = vrcp.pop %v1245
  %v1616 = vmul.f32 1.0, %v1615
  %v1617 = vrcp.pop %v1246
  %v1618 = vmul.f32 1.0, %v1617
  %v1619 = vrcp.pop %v1247
  %v1620 = vmul.f32 1.0, %v1619
  %v1621 = vrcp.pop %v1248
  %v1622 = vmul.f32 1.0, %v1621
  %v1623 = vrcp.pop %v1249
  %v1624 = vmul.f32 1.0, %v1623
  %v1625 = vrcp.pop %v1250
  %v1626 = vmul.f32 1.0, %v1625
  %v1627 = vrcp.pop %v1251
  %v1628 = vmul.f32 1.0, %v1627
  %v1629 = vrcp.pop %v1252
  %v1630 = vmul.f32 1.0, %v1629
  %v1631 = vrcp.pop %v1253
  %v1632 = vmul.f32 1.0, %v1631
  %v1633 = vrcp.pop %v1254
  %v1634 = vmul.f32 1.0, %v1633
  %v1635 = vrcp.pop %v1255
  %v1636 = vmul.f32 1.0, %v1635
  %v1637 = vrcp.pop %v1256
  %v1638 = vmul.f32 1.0, %v1637
  %v1639 = vrcp.pop %v1257
  %v1640 = vmul.f32 1.0, %v1639
  %v1641 = vrcp.pop %v1258
  %v1642 = vmul.f32 1.0, %v1641
  %v1643 = vrcp.pop %v1259
  %v1644 = vmul.f32 1.0, %v1643
  %v1645 = vrcp.pop %v1260
  %v1646 = vmul.f32 1.0, %v1645
  %v1647 = vrcp.pop %v1261
  %v1648 = vmul.f32 1.0, %v1647
  %v1649 = vrcp.pop %v1262
  %v1650 = vmul.f32 1.0, %v1649
  %v1651 = vrcp.pop %v1263
  %v1652 = vmul.f32 1.0, %v1651
  %v1653 = vrcp.pop %v1264
  %v1654 = vmul.f32 1.0, %v1653
  %v1655 = vrcp.pop %v1265
  %v1656 = vmul.f32 1.0, %v1655
  %v1657 = vrcp.pop %v1266
  %v1658 = vmul.f32 1.0, %v1657
  %v1659 = vrcp.pop %v1267
  %v1660 = vmul.f32 1.0, %v1659
  %v1661 = vrcp.pop %v1268
  %v1662 = vmul.f32 1.0, %v1661
  %v1663 = vrcp.pop %v1269
  %v1664 = vmul.f32 1.0, %v1663
  %v1665 = vrcp.pop %v1270
  %v1666 = vmul.f32 1.0, %v1665
  %v1667 = vrcp.pop %v1271
  %v1668 = vmul.f32 1.0, %v1667
  %v1669 = vrcp.pop %v1272
  %v1670 = vmul.f32 1.0, %v1669
  %v1671 = vrcp.pop %v1273
  %v1672 = vmul.f32 1.0, %v1671
  %v1673 = vrcp.pop %v1274
  %v1674 = vmul.f32 1.0, %v1673
  %v1675 = vrcp.pop %v1275
  %v1676 = vmul.f32 1.0, %v1675
  %v1677 = vrcp.pop %v1276
  %v1678 = vmul.f32 1.0, %v1677
  %v1679 = vrcp.pop %v1277
  %v1680 = vmul.f32 1.0, %v1679
  %v1681 = vrcp.pop %v1278
  %v1682 = vmul.f32 1.0, %v1681
  %v1683 = vrcp.pop %v1279
  %v1684 = vmul.f32 1.0, %v1683
  %v1685 = vrcp.pop %v1280
  %v1686 = vmul.f32 1.0, %v1685
  %v1687 = vrcp.pop %v1281
  %v1688 = vmul.f32 1.0, %v1687
  %v1689 = vrcp.pop %v1282
  %v1690 = vmul.f32 1.0, %v1689
  %v1691 = vrcp.pop %v1283
  %v1692 = vmul.f32 1.0, %v1691
  %v1693 = vrcp.pop %v1284
  %v1694 = vmul.f32 1.0, %v1693
  %v1695 = vrcp.pop %v1285
  %v1696 = vmul.f32 1.0, %v1695
  %v1697 = vrcp.pop %v1286
  %v1698 = vmul.f32 1.0, %v1697
  %v1699 = vrcp.pop %v1287
  %v1700 = vmul.f32 1.0, %v1699
  %v1701 = vrcp.pop %v1288
  %v1702 = vmul.f32 1.0, %v1701
  %v1703 = vrcp.pop %v1289
  %v1704 = vmul.f32 1.0, %v1703
  %v1705 = vrcp.pop %v1290
  %v1706 = vmul.f32 1.0, %v1705
  %v1707 = vrcp.pop %v1291
  %v1708 = vmul.f32 1.0, %v1707
  %v1709 = vrcp.pop %v1292
  %v1710 = vmul.f32 1.0, %v1709
  %v1711 = vrcp.pop %v1293
  %v1712 = vmul.f32 1.0, %v1711
  %v1713 = vrcp.pop %v1294
  %v1714 = vmul.f32 1.0, %v1713
  %v1715 = vrcp.pop %v1295
  %v1716 = vmul.f32 1.0, %v1715
  %v1717 = vrcp.pop %v1296
  %v1718 = vmul.f32 1.0, %v1717
  %v1719 = vrcp.pop %v1297
  %v1720 = vmul.f32 1.0, %v1719
  %v1721 = vrcp.pop %v1298
  %v1722 = vmul.f32 1.0, %v1721
  %v1723 = vrcp.pop %v1299
  %v1724 = vmul.f32 1.0, %v1723
  %v1725 = vrcp.pop %v1300
  %v1726 = vmul.f32 1.0, %v1725
  %v1727 = vrcp.pop %v1301
  %v1728 = vmul.f32 1.0, %v1727
  %v1729 = vrcp.pop %v1302
  %v1730 = vmul.f32 1.0, %v1729
  %v1731 = vrcp.pop %v1303
  %v1732 = vmul.f32 1.0, %v1731
  %v1733 = vrcp.pop %v1304
  %v1734 = vmul.f32 1.0, %v1733
  %v1735 = vrcp.pop %v1305
  %v1736 = vmul.f32 1.0, %v1735
  %v1737 = vrcp.pop %v1306
  %v1738 = vmul.f32 1.0, %v1737
  %v1739 = vrcp.pop %v1307
  %v1740 = vmul.f32 1.0, %v1739
  %v1741 = vrcp.pop %v1308
  %v1742 = vmul.f32 1.0, %v1741
  %v1743 = vrcp.pop %v1309
  %v1744 = vmul.f32 1.0, %v1743
  %v1745 = vrcp.pop %v1310
  %v1746 = vmul.f32 1.0, %v1745
  %v1747 = vrcp.pop %v1311
  %v1748 = vmul.f32 1.0, %v1747
  %v1749 = vrcp.pop %v1312
  %v1750 = vmul.f32 1.0, %v1749
  %v1751 = vrcp.pop %v1313
  %v1752 = vmul.f32 1.0, %v1751
  %v1753 = vrcp.pop %v1314
  %v1754 = vmul.f32 1.0, %v1753
  %v1755 = vrcp.pop %v1315
  %v1756 = vmul.f32 1.0, %v1755
  %v1757 = vrcp.pop %v1316
  %v1758 = vmul.f32 1.0, %v1757
  %v1759 = vrcp.pop %v1317
  %v1760 = vmul.f32 1.0, %v1759
  %v1761 = vrcp.pop %v1318
  %v1762 = vmul.f32 1.0, %v1761
  %v1763 = vrcp.pop %v1319
  %v1764 = vmul.f32 1.0, %v1763
  %v1765 = vrcp.pop %v1320
  %v1766 = vmul.f32 1.0, %v1765
  %v1767 = vrcp.pop %v1321
  %v1768 = vmul.f32 1.0, %v1767
  %v1769 = vrcp.pop %v1322
  %v1770 = vmul.f32 1.0, %v1769
  %v1771 = vrcp.pop %v1323
  %v1772 = vmul.f32 1.0, %v1771
  %v1773 = vrcp.pop %v1324
  %v1774 = vmul.f32 1.0, %v1773
  %v1775 = vrcp.pop %v1325
  %v1776 = vmul.f32 1.0, %v1775
  %v1777 = vrcp.pop %v1326
  %v1778 = vmul.f32 1.0, %v1777
  %v1779 = vrcp.pop %v1327
  %v1780 = vmul.f32 1.0, %v1779
  %v1781 = vrcp.pop %v1328
  %v1782 = vmul.f32 1.0, %v1781
  %v1783 = vrcp.pop %v1329
  %v1784 = vmul.f32 1.0, %v1783
  %v1785 = vrcp.pop %v1330
  %v1786 = vmul.f32 1.0, %v1785
  %v1787 = vrcp.pop %v1331
  %v1788 = vmul.f32 1.0, %v1787
  %v1789 = vrcp.pop %v1332
  %v1790 = vmul.f32 1.0, %v1789
  %v1791 = vrcp.pop %v1333
  %v1792 = vmul.f32 1.0, %v1791
  %v1793 = vrcp.pop %v1334
  %v1794 = vmul.f32 1.0, %v1793
  %v1795 = vrcp.pop %v1335
  %v1796 = vmul.f32 1.0, %v1795
  %v1797 = vrcp.pop %v1336
  %v1798 = vmul.f32 1.0, %v1797
  %v1799 = vrcp.pop %v1337
  %v1800 = vmul.f32 1.0, %v1799
  %v1801 = vrcp.pop %v1338
  %v1802 = vmul.f32 1.0, %v1801
  %v1803 = vrcp.pop %v1339
  %v1804 = vmul.f32 1.0, %v1803
  %v1805 = vrcp.pop %v1340
  %v1806 = vmul.f32 1.0, %v1805
  %v1807 = vrcp.pop %v1341
  %v1808 = vmul.f32 1.0, %v1807
  %v1809 = vrcp.pop %v1342
  %v1810 = vmul.f32 1.0, %v1809
  %v1811 = vrcp.pop %v1343
  %v1812 = vmul.f32 1.0, %v1811
  %v1813 = vrcp.pop %v1344
  %v1814 = vmul.f32 1.0, %v1813
  %v1815 = vrcp.pop %v1345
  %v1816 = vmul.f32 1.0, %v1815
  %v1817 = vrcp.pop %v1346
  %v1818 = vmul.f32 1.0, %v1817
  %v1819 = vrcp.pop %v1347
  %v1820 = vmul.f32 1.0, %v1819
  %v1821 = vrcp.pop %v1348
  %v1822 = vmul.f32 1.0, %v1821
  %v1823 = vrcp.pop %v1349
  %v1824 = vmul.f32 1.0, %v1823
  %v1825 = vrcp.pop %v1350
  %v1826 = vmul.f32 1.0, %v1825
  %v1827 = vrcp.pop %v1351
  %v1828 = vmul.f32 1.0, %v1827
  %v1829 = vrcp.pop %v1352
  %v1830 = vmul.f32 1.0, %v1829
  %v1831 = vrcp.pop %v1353
  %v1832 = vmul.f32 1.0, %v1831
  %v1833 = vrcp.pop %v1354
  %v1834 = vmul.f32 1.0, %v1833
  %v1835 = vrcp.pop %v1355
  %v1836 = vmul.f32 1.0, %v1835
  %v1837 = vrcp.pop %v1356
  %v1838 = vmul.f32 1.0, %v1837
  %v1839 = vrcp.pop %v1357
  %v1840 = vmul.f32 1.0, %v1839
  %v1841 = vrcp.pop %v1358
  %v1842 = vmul.f32 1.0, %v1841
  %v1843 = vrcp.pop %v1359
  %v1844 = vmul.f32 1.0, %v1843
  %v1845 = vrcp.pop %v1360
  %v1846 = vmul.f32 1.0, %v1845
  %v1847 = vrcp.pop %v1361
  %v1848 = vmul.f32 1.0, %v1847
  %v1849 = vrcp.pop %v1362
  %v1850 = vmul.f32 1.0, %v1849
  %v1851 = vrcp.pop %v1363
  %v1852 = vmul.f32 1.0, %v1851
  %v1853 = vrcp.pop %v1364
  %v1854 = vmul.f32 1.0, %v1853
  %v1855 = vrcp.pop %v1365
  %v1856 = vmul.f32 1.0, %v1855
  %v1857 = vrcp.pop %v1366
  %v1858 = vmul.f32 1.0, %v1857
  %v1859 = vrcp.pop %v1367
  %v1860 = vmul.f32 1.0, %v1859
  %v1861 = vrcp.pop %v1368
  %v1862 = vmul.f32 1.0, %v1861
  %v1863 = vrcp.pop %v1369
  %v1864 = vmul.f32 1.0, %v1863
  %v1865 = vrcp.pop %v1370
  %v1866 = vmul.f32 1.0, %v1865
  %v1867 = vrcp.pop %v1371
  %v1868 = vmul.f32 1.0, %v1867
  %v1869 = vrcp.pop %v1372
  %v1870 = vmul.f32 1.0, %v1869
  %v1871 = vrcp.pop %v1373
  %v1872 = vmul.f32 1.0, %v1871
  %v1873 = vrcp.pop %v1374
  %v1874 = vmul.f32 1.0, %v1873
  %v1875 = vrcp.pop %v1375
  %v1876 = vmul.f32 1.0, %v1875
  %v1877 = vrcp.pop %v1376
  %v1878 = vmul.f32 1.0, %v1877
  %v1879 = vrcp.pop %v1377
  %v1880 = vmul.f32 1.0, %v1879
  %v1881 = vrcp.pop %v1378
  %v1882 = vmul.f32 1.0, %v1881
  %v1883 = vrcp.pop %v1379
  %v1884 = vmul.f32 1.0, %v1883
  %v1885 = vrcp.pop %v1380
  %v1886 = vmul.f32 1.0, %v1885
  %v1887 = vrcp.pop %v1381
  %v1888 = vmul.f32 1.0, %v1887
  %v1889 = vrcp.pop %v1382
  %v1890 = vmul.f32 1.0, %v1889
  %v1891 = vrcp.pop %v1383
  %v1892 = vmul.f32 1.0, %v1891
  %v1893 = vrcp.pop %v1384
  %v1894 = vmul.f32 1.0, %v1893
  %v1895 = vrcp.pop %v1385
  %v1896 = vmul.f32 1.0, %v1895
  %v1897 = vrcp.pop %v1386
  %v1898 = vmul.f32 1.0, %v1897
  %v1899 = vrcp.pop %v1387
  %v1900 = vmul.f32 1.0, %v1899
  %v1901 = vrcp.pop %v1388
  %v1902 = vmul.f32 1.0, %v1901
  %v1903 = vrcp.pop %v1389
  %v1904 = vmul.f32 1.0, %v1903
  %v1905 = vrcp.pop %v1390
  %v1906 = vmul.f32 1.0, %v1905
  %v1907 = vrcp.pop %v1391
  %v1908 = vmul.f32 1.0, %v1907
  %v1909 = vrcp.pop %v1392
  %v1910 = vmul.f32 1.0, %v1909
  %v1911 = vrcp.pop %v1393
  %v1912 = vmul.f32 1.0, %v1911
  %v1913 = vrcp.pop %v1394
  %v1914 = vmul.f32 1.0, %v1913
  %v1915 = vrcp.pop %v1395
  %v1916 = vmul.f32 1.0, %v1915
  %v1917 = vrcp.pop %v1396
  %v1918 = vmul.f32 1.0, %v1917
  %v1919 = vrcp.pop %v1397
  %v1920 = vmul.f32 1.0, %v1919
  %v1921 = vrcp.pop %v1398
  %v1922 = vmul.f32 1.0, %v1921
  %v1923 = vrcp.pop %v1399
  %v1924 = vmul.f32 1.0, %v1923
  %v1925 = vrcp.pop %v1400
  %v1926 = vmul.f32 1.0, %v1925
  %v1927 = vrcp.pop %v1401
  %v1928 = vmul.f32 1.0, %v1927
  %v1929 = vrcp.pop %v1402
  %v1930 = vmul.f32 1.0, %v1929
  %v1931 = vrcp.pop %v1403
  %v1932 = vmul.f32 1.0, %v1931
  %v1933 = vrcp.pop %v1404
  %v1934 = vmul.f32 1.0, %v1933
  %v1935 = vrcp.pop %v1405
  %v1936 = vmul.f32 1.0, %v1935
  %v1937 = vrcp.pop %v1406
  %v1938 = vmul.f32 1.0, %v1937
  %v1939 = vrcp.pop %v1407
  %v1940 = vmul.f32 1.0, %v1939
  %v1941 = vrcp.pop %v1408
  %v1942 = vmul.f32 1.0, %v1941
  %v1943 = vrcp.pop %v1409
  %v1944 = vmul.f32 1.0, %v1943
  %v1945 = vrcp.pop %v1410
  %v1946 = vmul.f32 1.0, %v1945
  %v1947 = vrcp.pop %v1411
  %v1948 = vmul.f32 1.0, %v1947
  %v1949 = vrcp.pop %v1412
  %v1950 = vmul.f32 1.0, %v1949
  %v1951 = vrcp.pop %v1413
  %v1952 = vmul.f32 1.0, %v1951
  %v1953 = vrcp.pop %v1414
  %v1954 = vmul.f32 1.0, %v1953
  %v1955 = vrcp.pop %v1415
  %v1956 = vmul.f32 1.0, %v1955
  %v1957 = vrcp.pop %v1416
  %v1958 = vmul.f32 1.0, %v1957
  %v1959 = vrcp.pop %v1417
  %v1960 = vmul.f32 1.0, %v1959
  %v1961 = vrcp.pop %v1418
  %v1962 = vmul.f32 1.0, %v1961
  %v1963 = vrcp.pop %v1419
  %v1964 = vmul.f32 1.0, %v1963
  %v1965 = vrcp.pop %v1420
  %v1966 = vmul.f32 1.0, %v1965
  %v1967 = vrcp.pop %v1421
  %v1968 = vmul.f32 1.0, %v1967
  %v1969 = vrcp.pop %v1422
  %v1970 = vmul.f32 1.0, %v1969
  %v1971 = vrcp.pop %v1423
  %v1972 = vmul.f32 1.0, %v1971
  %v1973 = vrcp.pop %v1424
  %v1974 = vmul.f32 1.0, %v1973
  %v1975 = vrcp.pop %v1425
  %v1976 = vmul.f32 1.0, %v1975
  %v1977 = vrcp.pop %v1426
  %v1978 = vmul.f32 1.0, %v1977
  %v1979 = vrcp.pop %v1427
  %v1980 = vmul.f32 1.0, %v1979
  %v1981 = vrcp.pop %v1428
  %v1982 = vmul.f32 1.0, %v1981
  %v1983 = vrcp.pop %v1429
  %v1984 = vmul.f32 1.0, %v1983
  %v1985 = vrcp.pop %v1430
  %v1986 = vmul.f32 1.0, %v1985
  %v1987 = vrcp.pop %v1431
  %v1988 = vmul.f32 1.0, %v1987
  %v1989 = vrcp.pop %v1432
  %v1990 = vmul.f32 1.0, %v1989
  %v1991 = vrcp.pop %v1433
  %v1992 = vmul.f32 1.0, %v1991
  %v1993 = vrcp.pop %v1434
  %v1994 = vmul.f32 1.0, %v1993
  %v1995 = vrcp.pop %v1435
  %v1996 = vmul.f32 1.0, %v1995
  %v1997 = vrcp.pop %v1436
  %v1998 = vmul.f32 1.0, %v1997
  %v1999 = vrcp.pop %v1437
  %v2000 = vmul.f32 1.0, %v1999
  %v2001 = vrcp.pop %v1438
  %v2002 = vmul.f32 1.0, %v2001
  %v2003 = vrcp.pop %v1439
  %v2004 = vmul.f32 1.0, %v2003
  %v2005 = vrcp.pop %v1440
  %v2006 = vmul.f32 1.0, %v2005
  %v2007 = vrcp.pop %v1441
  %v2008 = vmul.f32 1.0, %v2007
  %v2009 = vrcp.pop %v1442
  %v2010 = vmul.f32 1.0, %v2009
  %v2011 = vrcp.pop %v1443
  %v2012 = vmul.f32 1.0, %v2011
  %v2013 = vrcp.pop %v1444
  %v2014 = vmul.f32 1.0, %v2013
  %v2015 = vrcp.pop %v1445
  %v2016 = vmul.f32 1.0, %v2015
  %v2017 = vrcp.pop %v1446
  %v2018 = vmul.f32 1.0, %v2017
  %v2019 = vrcp.pop %v1447
  %v2020 = vmul.f32 1.0, %v2019
  %v2021 = vrcp.pop %v1448
  %v2022 = vmul.f32 1.0, %v2021
  %v2023 = vrcp.pop %v1449
  %v2024 = vmul.f32 1.0, %v2023
  %v2025 = vrcp.pop %v1450
  %v2026 = vmul.f32 1.0, %v2025
  %v2027 = vld [vmem:[%s1] sm:$0xff]
  %v2028 = vld [vmem:[%s1 + $0x8] sm:$0xff]
  %v2029 = vld [vmem:[%s1 + $0x10] sm:$0xff]
  %v2030 = vld [vmem:[%s1 + $0x18] sm:$0xff]
  %v2031 = vld [vmem:[%s1 + $0x20] sm:$0xff]
  %v2032 = vld [vmem:[%s1 + $0x28] sm:$0xff]
  %v2033 = vld [vmem:[%s1 + $0x30] sm:$0xff]
  %v2034 = vld [vmem:[%s1 + $0x38] sm:$0xff]
  %v2035 = vld [vmem:[%s1 + $0x40] sm:$0xff]
  %v2036 = vld [vmem:[%s1 + $0x48] sm:$0xff]
  %v2037 = vld [vmem:[%s1 + $0x50] sm:$0xff]
  %v2038 = vld [vmem:[%s1 + $0x58] sm:$0xff]
  %v2039 = vld [vmem:[%s1 + $0x60] sm:$0xff]
  %v2040 = vld [vmem:[%s1 + $0x68] sm:$0xff]
  %v2041 = vld [vmem:[%s1 + $0x70] sm:$0xff]
  %v2042 = vld [vmem:[%s1 + $0x78] sm:$0xff]
  %v2043 = vld [vmem:[%s1 + $0x80] sm:$0xff]
  %v2044 = vld [vmem:[%s1 + $0x88] sm:$0xff]
  %v2045 = vld [vmem:[%s1 + $0x90] sm:$0xff]
  %v2046 = vld [vmem:[%s1 + $0x98] sm:$0xff]
  %v2047 = vld [vmem:[%s1 + $0xa0] sm:$0xff]
  %v2048 = vld [vmem:[%s1 + $0xa8] sm:$0xff]
  %v2049 = vld [vmem:[%s1 + $0xb0] sm:$0xff]
  %v2050 = vld [vmem:[%s1 + $0xb8] sm:$0xff]
  %v2051 = vld [vmem:[%s1 + $0xc0] sm:$0xff]
  %v2052 = vld [vmem:[%s1 + $0xc8] sm:$0xff]
  %v2053 = vld [vmem:[%s1 + $0xd0] sm:$0xff]
  %v2054 = vld [vmem:[%s1 + $0xd8] sm:$0xff]
  %v2055 = vld [vmem:[%s1 + $0xe0] sm:$0xff]
  %v2056 = vld [vmem:[%s1 + $0xe8] sm:$0xff]
  %v2057 = vld [vmem:[%s1 + $0xf0] sm:$0xff]
  %v2058 = vld [vmem:[%s1 + $0xf8] sm:$0xff]
  %v2059 = vld [vmem:[%s1 + $0x100] sm:$0xff]
  %v2060 = vld [vmem:[%s1 + $0x108] sm:$0xff]
  %v2061 = vld [vmem:[%s1 + $0x110] sm:$0xff]
  %v2062 = vld [vmem:[%s1 + $0x118] sm:$0xff]
  %v2063 = vld [vmem:[%s1 + $0x120] sm:$0xff]
  %v2064 = vld [vmem:[%s1 + $0x128] sm:$0xff]
  %v2065 = vld [vmem:[%s1 + $0x130] sm:$0xff]
  %v2066 = vld [vmem:[%s1 + $0x138] sm:$0xff]
  %v2067 = vld [vmem:[%s1 + $0x140] sm:$0xff]
  %v2068 = vld [vmem:[%s1 + $0x148] sm:$0xff]
  %v2069 = vld [vmem:[%s1 + $0x150] sm:$0xff]
  %v2070 = vld [vmem:[%s1 + $0x158] sm:$0xff]
  %v2071 = vld [vmem:[%s1 + $0x160] sm:$0xff]
  %v2072 = vld [vmem:[%s1 + $0x168] sm:$0xff]
  %v2073 = vld [vmem:[%s1 + $0x170] sm:$0xff]
  %v2074 = vld [vmem:[%s1 + $0x178] sm:$0xff]
  %v2075 = vld [vmem:[%s1 + $0x180] sm:$0xff]
  %v2076 = vld [vmem:[%s1 + $0x188] sm:$0xff]
  %v2077 = vld [vmem:[%s1 + $0x190] sm:$0xff]
  %v2078 = vld [vmem:[%s1 + $0x198] sm:$0xff]
  %v2079 = vld [vmem:[%s1 + $0x1a0] sm:$0xff]
  %v2080 = vld [vmem:[%s1 + $0x1a8] sm:$0xff]
  %v2081 = vld [vmem:[%s1 + $0x1b0] sm:$0xff]
  %v2082 = vld [vmem:[%s1 + $0x1b8] sm:$0xff]
  %v2083 = vld [vmem:[%s1 + $0x1c0] sm:$0xff]
  %v2084 = vld [vmem:[%s1 + $0x1c8] sm:$0xff]
  %v2085 = vld [vmem:[%s1 + $0x1d0] sm:$0xff]
  %v2086 = vld [vmem:[%s1 + $0x1d8] sm:$0xff]
  %v2087 = vld [vmem:[%s1 + $0x1e0] sm:$0xff]
  %v2088 = vld [vmem:[%s1 + $0x1e8] sm:$0xff]
  %v2089 = vld [vmem:[%s1 + $0x1f0] sm:$0xff]
  %v2090 = vld [vmem:[%s1 + $0x1f8] sm:$0xff]
  %v2091 = vld [vmem:[%s1 + $0x200] sm:$0xff]
  %v2092 = vld [vmem:[%s1 + $0x208] sm:$0xff]
  %v2093 = vld [vmem:[%s1 + $0x210] sm:$0xff]
  %v2094 = vld [vmem:[%s1 + $0x218] sm:$0xff]
  %v2095 = vld [vmem:[%s1 + $0x220] sm:$0xff]
  %v2096 = vld [vmem:[%s1 + $0x228] sm:$0xff]
  %v2097 = vld [vmem:[%s1 + $0x230] sm:$0xff]
  %v2098 = vld [vmem:[%s1 + $0x238] sm:$0xff]
  %v2099 = vld [vmem:[%s1 + $0x240] sm:$0xff]
  %v2100 = vld [vmem:[%s1 + $0x248] sm:$0xff]
  %v2101 = vld [vmem:[%s1 + $0x250] sm:$0xff]
  %v2102 = vld [vmem:[%s1 + $0x258] sm:$0xff]
  %v2103 = vld [vmem:[%s1 + $0x260] sm:$0xff]
  %v2104 = vld [vmem:[%s1 + $0x268] sm:$0xff]
  %v2105 = vld [vmem:[%s1 + $0x270] sm:$0xff]
  %v2106 = vld [vmem:[%s1 + $0x278] sm:$0xff]
  %v2107 = vld [vmem:[%s1 + $0x280] sm:$0xff]
  %v2108 = vld [vmem:[%s1 + $0x288] sm:$0xff]
  %v2109 = vld [vmem:[%s1 + $0x290] sm:$0xff]
  %v2110 = vld [vmem:[%s1 + $0x298] sm:$0xff]
  %v2111 = vld [vmem:[%s1 + $0x2a0] sm:$0xff]
  %v2112 = vld [vmem:[%s1 + $0x2a8] sm:$0xff]
  %v2113 = vld [vmem:[%s1 + $0x2b0] sm:$0xff]
  %v2114 = vld [vmem:[%s1 + $0x2b8] sm:$0xff]
  %v2115 = vld [vmem:[%s1 + $0x2c0] sm:$0xff]
  %v2116 = vld [vmem:[%s1 + $0x2c8] sm:$0xff]
  %v2117 = vld [vmem:[%s1 + $0x2d0] sm:$0xff]
  %v2118 = vld [vmem:[%s1 + $0x2d8] sm:$0xff]
  %v2119 = vld [vmem:[%s1 + $0x2e0] sm:$0xff]
  %v2120 = vld [vmem:[%s1 + $0x2e8] sm:$0xff]
  %v2121 = vld [vmem:[%s1 + $0x2f0] sm:$0xff]
  %v2122 = vld [vmem:[%s1 + $0x2f8] sm:$0xff]
  %v2123 = vld [vmem:[%s1 + $0x300] sm:$0xff]
  %v2124 = vld [vmem:[%s1 + $0x308] sm:$0xff]
  %v2125 = vld [vmem:[%s1 + $0x310] sm:$0xff]
  %v2126 = vld [vmem:[%s1 + $0x318] sm:$0xff]
  %v2127 = vld [vmem:[%s1 + $0x320] sm:$0xff]
  %v2128 = vld [vmem:[%s1 + $0x328] sm:$0xff]
  %v2129 = vld [vmem:[%s1 + $0x330] sm:$0xff]
  %v2130 = vld [vmem:[%s1 + $0x338] sm:$0xff]
  %v2131 = vld [vmem:[%s1 + $0x340] sm:$0xff]
  %v2132 = vld [vmem:[%s1 + $0x348] sm:$0xff]
  %v2133 = vld [vmem:[%s1 + $0x350] sm:$0xff]
  %v2134 = vld [vmem:[%s1 + $0x358] sm:$0xff]
  %v2135 = vld [vmem:[%s1 + $0x360] sm:$0xff]
  %v2136 = vld [vmem:[%s1 + $0x368] sm:$0xff]
  %v2137 = vld [vmem:[%s1 + $0x370] sm:$0xff]
  %v2138 = vld [vmem:[%s1 + $0x378] sm:$0xff]
  %v2139 = vld [vmem:[%s1 + $0x380] sm:$0xff]
  %v2140 = vld [vmem:[%s1 + $0x388] sm:$0xff]
  %v2141 = vld [vmem:[%s1 + $0x390] sm:$0xff]
  %v2142 = vld [vmem:[%s1 + $0x398] sm:$0xff]
  %v2143 = vld [vmem:[%s1 + $0x3a0] sm:$0xff]
  %v2144 = vld [vmem:[%s1 + $0x3a8] sm:$0xff]
  %v2145 = vld [vmem:[%s1 + $0x3b0] sm:$0xff]
  %v2146 = vld [vmem:[%s1 + $0x3b8] sm:$0xff]
  %v2147 = vld [vmem:[%s1 + $0x3c0] sm:$0xff]
  %v2148 = vld [vmem:[%s1 + $0x3c8] sm:$0xff]
  %v2149 = vld [vmem:[%s1 + $0x3d0] sm:$0xff]
  %v2150 = vld [vmem:[%s1 + $0x3d8] sm:$0xff]
  %v2151 = vld [vmem:[%s1 + $0x3e0] sm:$0xff]
  %v2152 = vld [vmem:[%s1 + $0x3e8] sm:$0xff]
  %v2153 = vld [vmem:[%s1 + $0x3f0] sm:$0xff]
  %v2154 = vld [vmem:[%s1 + $0x3f8] sm:$0xff]
  %v2155 = vld [vmem:[%s1 + $0x400] sm:$0xff]
  %v2156 = vld [vmem:[%s1 + $0x408] sm:$0xff]
  %v2157 = vld [vmem:[%s1 + $0x410] sm:$0xff]
  %v2158 = vld [vmem:[%s1 + $0x418] sm:$0xff]
  %v2159 = vld [vmem:[%s1 + $0x420] sm:$0xff]
  %v2160 = vld [vmem:[%s1 + $0x428] sm:$0xff]
  %v2161 = vld [vmem:[%s1 + $0x430] sm:$0xff]
  %v2162 = vld [vmem:[%s1 + $0x438] sm:$0xff]
  %v2163 = vld [vmem:[%s1 + $0x440] sm:$0xff]
  %v2164 = vld [vmem:[%s1 + $0x448] sm:$0xff]
  %v2165 = vld [vmem:[%s1 + $0x450] sm:$0xff]
  %v2166 = vld [vmem:[%s1 + $0x458] sm:$0xff]
  %v2167 = vld [vmem:[%s1 + $0x460] sm:$0xff]
  %v2168 = vld [vmem:[%s1 + $0x468] sm:$0xff]
  %v2169 = vld [vmem:[%s1 + $0x470] sm:$0xff]
  %v2170 = vld [vmem:[%s1 + $0x478] sm:$0xff]
  %v2171 = vld [vmem:[%s1 + $0x480] sm:$0xff]
  %v2172 = vld [vmem:[%s1 + $0x488] sm:$0xff]
  %v2173 = vld [vmem:[%s1 + $0x490] sm:$0xff]
  %v2174 = vld [vmem:[%s1 + $0x498] sm:$0xff]
  %v2175 = vld [vmem:[%s1 + $0x4a0] sm:$0xff]
  %v2176 = vld [vmem:[%s1 + $0x4a8] sm:$0xff]
  %v2177 = vld [vmem:[%s1 + $0x4b0] sm:$0xff]
  %v2178 = vld [vmem:[%s1 + $0x4b8] sm:$0xff]
  %v2179 = vld [vmem:[%s1 + $0x4c0] sm:$0xff]
  %v2180 = vld [vmem:[%s1 + $0x4c8] sm:$0xff]
  %v2181 = vld [vmem:[%s1 + $0x4d0] sm:$0xff]
  %v2182 = vld [vmem:[%s1 + $0x4d8] sm:$0xff]
  %v2183 = vld [vmem:[%s1 + $0x4e0] sm:$0xff]
  %v2184 = vld [vmem:[%s1 + $0x4e8] sm:$0xff]
  %v2185 = vld [vmem:[%s1 + $0x4f0] sm:$0xff]
  %v2186 = vld [vmem:[%s1 + $0x4f8] sm:$0xff]
  %v2187 = vld [vmem:[%s1 + $0x500] sm:$0xff]
  %v2188 = vld [vmem:[%s1 + $0x508] sm:$0xff]
  %v2189 = vld [vmem:[%s1 + $0x510] sm:$0xff]
  %v2190 = vld [vmem:[%s1 + $0x518] sm:$0xff]
  %v2191 = vld [vmem:[%s1 + $0x520] sm:$0xff]
  %v2192 = vld [vmem:[%s1 + $0x528] sm:$0xff]
  %v2193 = vld [vmem:[%s1 + $0x530] sm:$0xff]
  %v2194 = vld [vmem:[%s1 + $0x538] sm:$0xff]
  %v2195 = vld [vmem:[%s1 + $0x540] sm:$0xff]
  %v2196 = vld [vmem:[%s1 + $0x548] sm:$0xff]
  %v2197 = vld [vmem:[%s1 + $0x550] sm:$0xff]
  %v2198 = vld [vmem:[%s1 + $0x558] sm:$0xff]
  %v2199 = vld [vmem:[%s1 + $0x560] sm:$0xff]
  %v2200 = vld [vmem:[%s1 + $0x568] sm:$0xff]
  %v2201 = vld [vmem:[%s1 + $0x570] sm:$0xff]
  %v2202 = vld [vmem:[%s1 + $0x578] sm:$0xff]
  %v2203 = vld [vmem:[%s1 + $0x580] sm:$0xff]
  %v2204 = vld [vmem:[%s1 + $0x588] sm:$0xff]
  %v2205 = vld [vmem:[%s1 + $0x590] sm:$0xff]
  %v2206 = vld [vmem:[%s1 + $0x598] sm:$0xff]
  %v2207 = vld [vmem:[%s1 + $0x5a0] sm:$0xff]
  %v2208 = vld [vmem:[%s1 + $0x5a8] sm:$0xff]
  %v2209 = vld [vmem:[%s1 + $0x5b0] sm:$0xff]
  %v2210 = vld [vmem:[%s1 + $0x5b8] sm:$0xff]
  %v2211 = vld [vmem:[%s1 + $0x5c0] sm:$0xff]
  %v2212 = vld [vmem:[%s1 + $0x5c8] sm:$0xff]
  %v2213 = vld [vmem:[%s1 + $0x5d0] sm:$0xff]
  %v2214 = vld [vmem:[%s1 + $0x5d8] sm:$0xff]
  %v2215 = vld [vmem:[%s1 + $0x5e0] sm:$0xff]
  %v2216 = vld [vmem:[%s1 + $0x5e8] sm:$0xff]
  %v2217 = vld [vmem:[%s1 + $0x5f0] sm:$0xff]
  %v2218 = vld [vmem:[%s1 + $0x5f8] sm:$0xff]
  %v2219 = vld [vmem:[%s1 + $0x600] sm:$0xff]
  %v2220 = vld [vmem:[%s1 + $0x608] sm:$0xff]
  %v2221 = vld [vmem:[%s1 + $0x610] sm:$0xff]
  %v2222 = vld [vmem:[%s1 + $0x618] sm:$0xff]
  %v2223 = vld [vmem:[%s1 + $0x620] sm:$0xff]
  %v2224 = vld [vmem:[%s1 + $0x628] sm:$0xff]
  %v2225 = vld [vmem:[%s1 + $0x630] sm:$0xff]
  %v2226 = vld [vmem:[%s1 + $0x638] sm:$0xff]
  %v2227 = vld [vmem:[%s1 + $0x640] sm:$0xff]
  %v2228 = vld [vmem:[%s1 + $0x648] sm:$0xff]
  %v2229 = vld [vmem:[%s1 + $0x650] sm:$0xff]
  %v2230 = vld [vmem:[%s1 + $0x658] sm:$0xff]
  %v2231 = vld [vmem:[%s1 + $0x660] sm:$0xff]
  %v2232 = vld [vmem:[%s1 + $0x668] sm:$0xff]
  %v2233 = vld [vmem:[%s1 + $0x670] sm:$0xff]
  %v2234 = vld [vmem:[%s1 + $0x678] sm:$0xff]
  %v2235 = vld [vmem:[%s1 + $0x680] sm:$0xff]
  %v2236 = vld [vmem:[%s1 + $0x688] sm:$0xff]
  %v2237 = vld [vmem:[%s1 + $0x690] sm:$0xff]
  %v2238 = vld [vmem:[%s1 + $0x698] sm:$0xff]
  %v2239 = vld [vmem:[%s1 + $0x6a0] sm:$0xff]
  %v2240 = vld [vmem:[%s1 + $0x6a8] sm:$0xff]
  %v2241 = vld [vmem:[%s1 + $0x6b0] sm:$0xff]
  %v2242 = vld [vmem:[%s1 + $0x6b8] sm:$0xff]
  %v2243 = vld [vmem:[%s1 + $0x6c0] sm:$0xff]
  %v2244 = vld [vmem:[%s1 + $0x6c8] sm:$0xff]
  %v2245 = vld [vmem:[%s1 + $0x6d0] sm:$0xff]
  %v2246 = vld [vmem:[%s1 + $0x6d8] sm:$0xff]
  %v2247 = vld [vmem:[%s1 + $0x6e0] sm:$0xff]
  %v2248 = vld [vmem:[%s1 + $0x6e8] sm:$0xff]
  %v2249 = vld [vmem:[%s1 + $0x6f0] sm:$0xff]
  %v2250 = vld [vmem:[%s1 + $0x6f8] sm:$0xff]
  %v2251 = vld [vmem:[%s1 + $0x700] sm:$0xff]
  %v2252 = vld [vmem:[%s1 + $0x708] sm:$0xff]
  %v2253 = vld [vmem:[%s1 + $0x710] sm:$0xff]
  %v2254 = vld [vmem:[%s1 + $0x718] sm:$0xff]
  %v2255 = vld [vmem:[%s1 + $0x720] sm:$0xff]
  %v2256 = vld [vmem:[%s1 + $0x728] sm:$0xff]
  %v2257 = vld [vmem:[%s1 + $0x730] sm:$0xff]
  %v2258 = vld [vmem:[%s1 + $0x738] sm:$0xff]
  %v2259 = vld [vmem:[%s1 + $0x740] sm:$0xff]
  %v2260 = vld [vmem:[%s1 + $0x748] sm:$0xff]
  %v2261 = vld [vmem:[%s1 + $0x750] sm:$0xff]
  %v2262 = vld [vmem:[%s1 + $0x758] sm:$0xff]
  %v2263 = vld [vmem:[%s1 + $0x760] sm:$0xff]
  %v2264 = vld [vmem:[%s1 + $0x768] sm:$0xff]
  %v2265 = vld [vmem:[%s1 + $0x770] sm:$0xff]
  %v2266 = vld [vmem:[%s1 + $0x778] sm:$0xff]
  %v2267 = vld [vmem:[%s1 + $0x780] sm:$0xff]
  %v2268 = vld [vmem:[%s1 + $0x788] sm:$0xff]
  %v2269 = vld [vmem:[%s1 + $0x790] sm:$0xff]
  %v2270 = vld [vmem:[%s1 + $0x798] sm:$0xff]
  %v2271 = vld [vmem:[%s1 + $0x7a0] sm:$0xff]
  %v2272 = vld [vmem:[%s1 + $0x7a8] sm:$0xff]
  %v2273 = vld [vmem:[%s1 + $0x7b0] sm:$0xff]
  %v2274 = vld [vmem:[%s1 + $0x7b8] sm:$0xff]
  %v2275 = vld [vmem:[%s1 + $0x7c0] sm:$0xff]
  %v2276 = vld [vmem:[%s1 + $0x7c8] sm:$0xff]
  %v2277 = vld [vmem:[%s1 + $0x7d0] sm:$0xff]
  %v2278 = vld [vmem:[%s1 + $0x7d8] sm:$0xff]
  %v2279 = vld [vmem:[%s1 + $0x7e0] sm:$0xff]
  %v2280 = vld [vmem:[%s1 + $0x7e8] sm:$0xff]
  %v2281 = vld [vmem:[%s1 + $0x7f0] sm:$0xff]
  %v2282 = vld [vmem:[%s1 + $0x7f8] sm:$0xff]
  %v2283 = vld [vmem:[%s1 + $0x800] sm:$0xff]
  %v2284 = vld [vmem:[%s1 + $0x808] sm:$0xff]
  %v2285 = vld [vmem:[%s1 + $0x810] sm:$0xff]
  %v2286 = vld [vmem:[%s1 + $0x818] sm:$0xff]
  %v2287 = vld [vmem:[%s1 + $0x820] sm:$0xff]
  %v2288 = vld [vmem:[%s1 + $0x828] sm:$0xff]
  %v2289 = vld [vmem:[%s1 + $0x830] sm:$0xff]
  %v2290 = vld [vmem:[%s1 + $0x838] sm:$0xff]
  %v2291 = vld [vmem:[%s1 + $0x840] sm:$0xff]
  %v2292 = vld [vmem:[%s1 + $0x848] sm:$0xff]
  %v2293 = vld [vmem:[%s1 + $0x850] sm:$0xff]
  %v2294 = vld [vmem:[%s1 + $0x858] sm:$0xff]
  %v2295 = vld [vmem:[%s1 + $0x860] sm:$0xff]
  %v2296 = vld [vmem:[%s1 + $0x868] sm:$0xff]
  %v2297 = vld [vmem:[%s1 + $0x870] sm:$0xff]
  %v2298 = vld [vmem:[%s1 + $0x878] sm:$0xff]
  %v2299 = vld [vmem:[%s1 + $0x880] sm:$0xff]
  %v2300 = vld [vmem:[%s1 + $0x888] sm:$0xff]
  %v2301 = vld [vmem:[%s1 + $0x890] sm:$0xff]
  %v2302 = vld [vmem:[%s1 + $0x898] sm:$0xff]
  %v2303 = vld [vmem:[%s1 + $0x8a0] sm:$0xff]
  %v2304 = vld [vmem:[%s1 + $0x8a8] sm:$0xff]
  %v2305 = vld [vmem:[%s1 + $0x8b0] sm:$0xff]
  %v2306 = vld [vmem:[%s1 + $0x8b8] sm:$0xff]
  %v2307 = vld [vmem:[%s1 + $0x8c0] sm:$0xff]
  %v2308 = vld [vmem:[%s1 + $0x8c8] sm:$0xff]
  %v2309 = vld [vmem:[%s1 + $0x8d0] sm:$0xff]
  %v2310 = vld [vmem:[%s1 + $0x8d8] sm:$0xff]
  %v2311 = vld [vmem:[%s1 + $0x8e0] sm:$0xff]
  %v2312 = vld [vmem:[%s1 + $0x8e8] sm:$0xff]
  %v2313 = vld [vmem:[%s1 + $0x8f0] sm:$0xff]
  %v2314 = vld [vmem:[%s1 + $0x8f8] sm:$0xff]
  %2316 = vset.pattern.permute.xlu0 0
  %2317 = vperm.xlu0 %2316, %v1452
  %v2318 = vpop.permute.xlu0 %2317
  %2321 = vset.pattern.permute.xlu0 0
  %2322 = vperm.xlu0 %2321, %v1454
  %v2323 = vpop.permute.xlu0 %2322
  %2326 = vset.pattern.permute.xlu0 0
  %2327 = vperm.xlu0 %2326, %v1456
  %v2328 = vpop.permute.xlu0 %2327
  %2331 = vset.pattern.permute.xlu0 0
  %2332 = vperm.xlu0 %2331, %v1458
  %v2333 = vpop.permute.xlu0 %2332
  %2336 = vset.pattern.permute.xlu0 0
  %2337 = vperm.xlu0 %2336, %v1460
  %v2338 = vpop.permute.xlu0 %2337
  %2341 = vset.pattern.permute.xlu0 0
  %2342 = vperm.xlu0 %2341, %v1462
  %v2343 = vpop.permute.xlu0 %2342
  %2346 = vset.pattern.permute.xlu0 0
  %2347 = vperm.xlu0 %2346, %v1464
  %v2348 = vpop.permute.xlu0 %2347
  %2351 = vset.pattern.permute.xlu0 0
  %2352 = vperm.xlu0 %2351, %v1466
  %v2353 = vpop.permute.xlu0 %2352
  %2356 = vset.pattern.permute.xlu0 0
  %2357 = vperm.xlu0 %2356, %v1468
  %v2358 = vpop.permute.xlu0 %2357
  %2361 = vset.pattern.permute.xlu0 0
  %2362 = vperm.xlu0 %2361, %v1470
  %v2363 = vpop.permute.xlu0 %2362
  %2366 = vset.pattern.permute.xlu0 0
  %2367 = vperm.xlu0 %2366, %v1472
  %v2368 = vpop.permute.xlu0 %2367
  %2371 = vset.pattern.permute.xlu0 0
  %2372 = vperm.xlu0 %2371, %v1474
  %v2373 = vpop.permute.xlu0 %2372
  %2376 = vset.pattern.permute.xlu0 0
  %2377 = vperm.xlu0 %2376, %v1476
  %v2378 = vpop.permute.xlu0 %2377
  %2381 = vset.pattern.permute.xlu0 0
  %2382 = vperm.xlu0 %2381, %v1478
  %v2383 = vpop.permute.xlu0 %2382
  %2386 = vset.pattern.permute.xlu0 0
  %2387 = vperm.xlu0 %2386, %v1480
  %v2388 = vpop.permute.xlu0 %2387
  %2391 = vset.pattern.permute.xlu0 0
  %2392 = vperm.xlu0 %2391, %v1482
  %v2393 = vpop.permute.xlu0 %2392
  %2396 = vset.pattern.permute.xlu0 0
  %2397 = vperm.xlu0 %2396, %v1484
  %v2398 = vpop.permute.xlu0 %2397
  %2401 = vset.pattern.permute.xlu0 0
  %2402 = vperm.xlu0 %2401, %v1486
  %v2403 = vpop.permute.xlu0 %2402
  %2406 = vset.pattern.permute.xlu0 0
  %2407 = vperm.xlu0 %2406, %v1488
  %v2408 = vpop.permute.xlu0 %2407
  %2411 = vset.pattern.permute.xlu0 0
  %2412 = vperm.xlu0 %2411, %v1490
  %v2413 = vpop.permute.xlu0 %2412
  %2416 = vset.pattern.permute.xlu0 0
  %2417 = vperm.xlu0 %2416, %v1492
  %v2418 = vpop.permute.xlu0 %2417
  %2421 = vset.pattern.permute.xlu0 0
  %2422 = vperm.xlu0 %2421, %v1494
  %v2423 = vpop.permute.xlu0 %2422
  %2426 = vset.pattern.permute.xlu0 0
  %2427 = vperm.xlu0 %2426, %v1496
  %v2428 = vpop.permute.xlu0 %2427
  %2431 = vset.pattern.permute.xlu0 0
  %2432 = vperm.xlu0 %2431, %v1498
  %v2433 = vpop.permute.xlu0 %2432
  %2436 = vset.pattern.permute.xlu0 0
  %2437 = vperm.xlu0 %2436, %v1500
  %v2438 = vpop.permute.xlu0 %2437
  %2441 = vset.pattern.permute.xlu0 0
  %2442 = vperm.xlu0 %2441, %v1502
  %v2443 = vpop.permute.xlu0 %2442
  %2446 = vset.pattern.permute.xlu0 0
  %2447 = vperm.xlu0 %2446, %v1504
  %v2448 = vpop.permute.xlu0 %2447
  %2451 = vset.pattern.permute.xlu0 0
  %2452 = vperm.xlu0 %2451, %v1506
  %v2453 = vpop.permute.xlu0 %2452
  %2456 = vset.pattern.permute.xlu0 0
  %2457 = vperm.xlu0 %2456, %v1508
  %v2458 = vpop.permute.xlu0 %2457
  %2461 = vset.pattern.permute.xlu0 0
  %2462 = vperm.xlu0 %2461, %v1510
  %v2463 = vpop.permute.xlu0 %2462
  %2466 = vset.pattern.permute.xlu0 0
  %2467 = vperm.xlu0 %2466, %v1512
  %v2468 = vpop.permute.xlu0 %2467
  %2471 = vset.pattern.permute.xlu0 0
  %2472 = vperm.xlu0 %2471, %v1514
  %v2473 = vpop.permute.xlu0 %2472
  %2476 = vset.pattern.permute.xlu0 0
  %2477 = vperm.xlu0 %2476, %v1516
  %v2478 = vpop.permute.xlu0 %2477
  %2481 = vset.pattern.permute.xlu0 0
  %2482 = vperm.xlu0 %2481, %v1518
  %v2483 = vpop.permute.xlu0 %2482
  %2486 = vset.pattern.permute.xlu0 0
  %2487 = vperm.xlu0 %2486, %v1520
  %v2488 = vpop.permute.xlu0 %2487
  %2491 = vset.pattern.permute.xlu0 0
  %2492 = vperm.xlu0 %2491, %v1522
  %v2493 = vpop.permute.xlu0 %2492
  %2496 = vset.pattern.permute.xlu0 0
  %2497 = vperm.xlu0 %2496, %v1524
  %v2498 = vpop.permute.xlu0 %2497
  %2501 = vset.pattern.permute.xlu0 0
  %2502 = vperm.xlu0 %2501, %v1526
  %v2503 = vpop.permute.xlu0 %2502
  %2506 = vset.pattern.permute.xlu0 0
  %2507 = vperm.xlu0 %2506, %v1528
  %v2508 = vpop.permute.xlu0 %2507
  %2511 = vset.pattern.permute.xlu0 0
  %2512 = vperm.xlu0 %2511, %v1530
  %v2513 = vpop.permute.xlu0 %2512
  %2516 = vset.pattern.permute.xlu0 0
  %2517 = vperm.xlu0 %2516, %v1532
  %v2518 = vpop.permute.xlu0 %2517
  %2521 = vset.pattern.permute.xlu0 0
  %2522 = vperm.xlu0 %2521, %v1534
  %v2523 = vpop.permute.xlu0 %2522
  %2526 = vset.pattern.permute.xlu0 0
  %2527 = vperm.xlu0 %2526, %v1536
  %v2528 = vpop.permute.xlu0 %2527
  %2531 = vset.pattern.permute.xlu0 0
  %2532 = vperm.xlu0 %2531, %v1538
  %v2533 = vpop.permute.xlu0 %2532
  %2536 = vset.pattern.permute.xlu0 0
  %2537 = vperm.xlu0 %2536, %v1540
  %v2538 = vpop.permute.xlu0 %2537
  %2541 = vset.pattern.permute.xlu0 0
  %2542 = vperm.xlu0 %2541, %v1542
  %v2543 = vpop.permute.xlu0 %2542
  %2546 = vset.pattern.permute.xlu0 0
  %2547 = vperm.xlu0 %2546, %v1544
  %v2548 = vpop.permute.xlu0 %2547
  %2551 = vset.pattern.permute.xlu0 0
  %2552 = vperm.xlu0 %2551, %v1546
  %v2553 = vpop.permute.xlu0 %2552
  %2556 = vset.pattern.permute.xlu0 0
  %2557 = vperm.xlu0 %2556, %v1548
  %v2558 = vpop.permute.xlu0 %2557
  %2561 = vset.pattern.permute.xlu0 0
  %2562 = vperm.xlu0 %2561, %v1550
  %v2563 = vpop.permute.xlu0 %2562
  %2566 = vset.pattern.permute.xlu0 0
  %2567 = vperm.xlu0 %2566, %v1552
  %v2568 = vpop.permute.xlu0 %2567
  %2571 = vset.pattern.permute.xlu0 0
  %2572 = vperm.xlu0 %2571, %v1554
  %v2573 = vpop.permute.xlu0 %2572
  %2576 = vset.pattern.permute.xlu0 0
  %2577 = vperm.xlu0 %2576, %v1556
  %v2578 = vpop.permute.xlu0 %2577
  %2581 = vset.pattern.permute.xlu0 0
  %2582 = vperm.xlu0 %2581, %v1558
  %v2583 = vpop.permute.xlu0 %2582
  %2586 = vset.pattern.permute.xlu0 0
  %2587 = vperm.xlu0 %2586, %v1560
  %v2588 = vpop.permute.xlu0 %2587
  %2591 = vset.pattern.permute.xlu0 0
  %2592 = vperm.xlu0 %2591, %v1562
  %v2593 = vpop.permute.xlu0 %2592
  %2596 = vset.pattern.permute.xlu0 0
  %2597 = vperm.xlu0 %2596, %v1564
  %v2598 = vpop.permute.xlu0 %2597
  %2601 = vset.pattern.permute.xlu0 0
  %2602 = vperm.xlu0 %2601, %v1566
  %v2603 = vpop.permute.xlu0 %2602
  %2606 = vset.pattern.permute.xlu0 0
  %2607 = vperm.xlu0 %2606, %v1568
  %v2608 = vpop.permute.xlu0 %2607
  %2611 = vset.pattern.permute.xlu0 0
  %2612 = vperm.xlu0 %2611, %v1570
  %v2613 = vpop.permute.xlu0 %2612
  %2616 = vset.pattern.permute.xlu0 0
  %2617 = vperm.xlu0 %2616, %v1572
  %v2618 = vpop.permute.xlu0 %2617
  %2621 = vset.pattern.permute.xlu0 0
  %2622 = vperm.xlu0 %2621, %v1574
  %v2623 = vpop.permute.xlu0 %2622
  %2626 = vset.pattern.permute.xlu0 0
  %2627 = vperm.xlu0 %2626, %v1576
  %v2628 = vpop.permute.xlu0 %2627
  %2631 = vset.pattern.permute.xlu0 0
  %2632 = vperm.xlu0 %2631, %v1578
  %v2633 = vpop.permute.xlu0 %2632
  %2636 = vset.pattern.permute.xlu0 0
  %2637 = vperm.xlu0 %2636, %v1580
  %v2638 = vpop.permute.xlu0 %2637
  %2641 = vset.pattern.permute.xlu0 0
  %2642 = vperm.xlu0 %2641, %v1582
  %v2643 = vpop.permute.xlu0 %2642
  %2646 = vset.pattern.permute.xlu0 0
  %2647 = vperm.xlu0 %2646, %v1584
  %v2648 = vpop.permute.xlu0 %2647
  %2651 = vset.pattern.permute.xlu0 0
  %2652 = vperm.xlu0 %2651, %v1586
  %v2653 = vpop.permute.xlu0 %2652
  %2656 = vset.pattern.permute.xlu0 0
  %2657 = vperm.xlu0 %2656, %v1588
  %v2658 = vpop.permute.xlu0 %2657
  %2661 = vset.pattern.permute.xlu0 0
  %2662 = vperm.xlu0 %2661, %v1590
  %v2663 = vpop.permute.xlu0 %2662
  %2666 = vset.pattern.permute.xlu0 0
  %2667 = vperm.xlu0 %2666, %v1592
  %v2668 = vpop.permute.xlu0 %2667
  %2671 = vset.pattern.permute.xlu0 0
  %2672 = vperm.xlu0 %2671, %v1594
  %v2673 = vpop.permute.xlu0 %2672
  %2676 = vset.pattern.permute.xlu0 0
  %2677 = vperm.xlu0 %2676, %v1596
  %v2678 = vpop.permute.xlu0 %2677
  %2681 = vset.pattern.permute.xlu0 0
  %2682 = vperm.xlu0 %2681, %v1598
  %v2683 = vpop.permute.xlu0 %2682
  %2686 = vset.pattern.permute.xlu0 0
  %2687 = vperm.xlu0 %2686, %v1600
  %v2688 = vpop.permute.xlu0 %2687
  %2691 = vset.pattern.permute.xlu0 0
  %2692 = vperm.xlu0 %2691, %v1602
  %v2693 = vpop.permute.xlu0 %2692
  %2696 = vset.pattern.permute.xlu0 0
  %2697 = vperm.xlu0 %2696, %v1604
  %v2698 = vpop.permute.xlu0 %2697
  %2701 = vset.pattern.permute.xlu0 0
  %2702 = vperm.xlu0 %2701, %v1606
  %v2703 = vpop.permute.xlu0 %2702
  %2706 = vset.pattern.permute.xlu0 0
  %2707 = vperm.xlu0 %2706, %v1608
  %v2708 = vpop.permute.xlu0 %2707
  %2711 = vset.pattern.permute.xlu0 0
  %2712 = vperm.xlu0 %2711, %v1610
  %v2713 = vpop.permute.xlu0 %2712
  %2716 = vset.pattern.permute.xlu0 0
  %2717 = vperm.xlu0 %2716, %v1612
  %v2718 = vpop.permute.xlu0 %2717
  %2721 = vset.pattern.permute.xlu0 0
  %2722 = vperm.xlu0 %2721, %v1614
  %v2723 = vpop.permute.xlu0 %2722
  %2726 = vset.pattern.permute.xlu0 0
  %2727 = vperm.xlu0 %2726, %v1616
  %v2728 = vpop.permute.xlu0 %2727
  %2731 = vset.pattern.permute.xlu0 0
  %2732 = vperm.xlu0 %2731, %v1618
  %v2733 = vpop.permute.xlu0 %2732
  %2736 = vset.pattern.permute.xlu0 0
  %2737 = vperm.xlu0 %2736, %v1620
  %v2738 = vpop.permute.xlu0 %2737
  %2741 = vset.pattern.permute.xlu0 0
  %2742 = vperm.xlu0 %2741, %v1622
  %v2743 = vpop.permute.xlu0 %2742
  %2746 = vset.pattern.permute.xlu0 0
  %2747 = vperm.xlu0 %2746, %v1624
  %v2748 = vpop.permute.xlu0 %2747
  %2751 = vset.pattern.permute.xlu0 0
  %2752 = vperm.xlu0 %2751, %v1626
  %v2753 = vpop.permute.xlu0 %2752
  %2756 = vset.pattern.permute.xlu0 0
  %2757 = vperm.xlu0 %2756, %v1628
  %v2758 = vpop.permute.xlu0 %2757
  %2761 = vset.pattern.permute.xlu0 0
  %2762 = vperm.xlu0 %2761, %v1630
  %v2763 = vpop.permute.xlu0 %2762
  %2766 = vset.pattern.permute.xlu0 0
  %2767 = vperm.xlu0 %2766, %v1632
  %v2768 = vpop.permute.xlu0 %2767
  %2771 = vset.pattern.permute.xlu0 0
  %2772 = vperm.xlu0 %2771, %v1634
  %v2773 = vpop.permute.xlu0 %2772
  %2776 = vset.pattern.permute.xlu0 0
  %2777 = vperm.xlu0 %2776, %v1636
  %v2778 = vpop.permute.xlu0 %2777
  %2781 = vset.pattern.permute.xlu0 0
  %2782 = vperm.xlu0 %2781, %v1638
  %v2783 = vpop.permute.xlu0 %2782
  %2786 = vset.pattern.permute.xlu0 0
  %2787 = vperm.xlu0 %2786, %v1640
  %v2788 = vpop.permute.xlu0 %2787
  %2791 = vset.pattern.permute.xlu0 0
  %2792 = vperm.xlu0 %2791, %v1642
  %v2793 = vpop.permute.xlu0 %2792
  %2796 = vset.pattern.permute.xlu0 0
  %2797 = vperm.xlu0 %2796, %v1644
  %v2798 = vpop.permute.xlu0 %2797
  %2801 = vset.pattern.permute.xlu0 0
  %2802 = vperm.xlu0 %2801, %v1646
  %v2803 = vpop.permute.xlu0 %2802
  %2806 = vset.pattern.permute.xlu0 0
  %2807 = vperm.xlu0 %2806, %v1648
  %v2808 = vpop.permute.xlu0 %2807
  %2811 = vset.pattern.permute.xlu0 0
  %2812 = vperm.xlu0 %2811, %v1650
  %v2813 = vpop.permute.xlu0 %2812
  %2816 = vset.pattern.permute.xlu0 0
  %2817 = vperm.xlu0 %2816, %v1652
  %v2818 = vpop.permute.xlu0 %2817
  %2821 = vset.pattern.permute.xlu0 0
  %2822 = vperm.xlu0 %2821, %v1654
  %v2823 = vpop.permute.xlu0 %2822
  %2826 = vset.pattern.permute.xlu0 0
  %2827 = vperm.xlu0 %2826, %v1656
  %v2828 = vpop.permute.xlu0 %2827
  %2831 = vset.pattern.permute.xlu0 0
  %2832 = vperm.xlu0 %2831, %v1658
  %v2833 = vpop.permute.xlu0 %2832
  %2836 = vset.pattern.permute.xlu0 0
  %2837 = vperm.xlu0 %2836, %v1660
  %v2838 = vpop.permute.xlu0 %2837
  %2841 = vset.pattern.permute.xlu0 0
  %2842 = vperm.xlu0 %2841, %v1662
  %v2843 = vpop.permute.xlu0 %2842
  %2846 = vset.pattern.permute.xlu0 0
  %2847 = vperm.xlu0 %2846, %v1664
  %v2848 = vpop.permute.xlu0 %2847
  %2851 = vset.pattern.permute.xlu0 0
  %2852 = vperm.xlu0 %2851, %v1666
  %v2853 = vpop.permute.xlu0 %2852
  %2856 = vset.pattern.permute.xlu0 0
  %2857 = vperm.xlu0 %2856, %v1668
  %v2858 = vpop.permute.xlu0 %2857
  %2861 = vset.pattern.permute.xlu0 0
  %2862 = vperm.xlu0 %2861, %v1670
  %v2863 = vpop.permute.xlu0 %2862
  %2866 = vset.pattern.permute.xlu0 0
  %2867 = vperm.xlu0 %2866, %v1672
  %v2868 = vpop.permute.xlu0 %2867
  %2871 = vset.pattern.permute.xlu0 0
  %2872 = vperm.xlu0 %2871, %v1674
  %v2873 = vpop.permute.xlu0 %2872
  %2876 = vset.pattern.permute.xlu0 0
  %2877 = vperm.xlu0 %2876, %v1676
  %v2878 = vpop.permute.xlu0 %2877
  %2881 = vset.pattern.permute.xlu0 0
  %2882 = vperm.xlu0 %2881, %v1678
  %v2883 = vpop.permute.xlu0 %2882
  %2886 = vset.pattern.permute.xlu0 0
  %2887 = vperm.xlu0 %2886, %v1680
  %v2888 = vpop.permute.xlu0 %2887
  %2891 = vset.pattern.permute.xlu0 0
  %2892 = vperm.xlu0 %2891, %v1682
  %v2893 = vpop.permute.xlu0 %2892
  %2896 = vset.pattern.permute.xlu0 0
  %2897 = vperm.xlu0 %2896, %v1684
  %v2898 = vpop.permute.xlu0 %2897
  %2901 = vset.pattern.permute.xlu0 0
  %2902 = vperm.xlu0 %2901, %v1686
  %v2903 = vpop.permute.xlu0 %2902
  %2906 = vset.pattern.permute.xlu0 0
  %2907 = vperm.xlu0 %2906, %v1688
  %v2908 = vpop.permute.xlu0 %2907
  %2911 = vset.pattern.permute.xlu0 0
  %2912 = vperm.xlu0 %2911, %v1690
  %v2913 = vpop.permute.xlu0 %2912
  %2916 = vset.pattern.permute.xlu0 0
  %2917 = vperm.xlu0 %2916, %v1692
  %v2918 = vpop.permute.xlu0 %2917
  %2921 = vset.pattern.permute.xlu0 0
  %2922 = vperm.xlu0 %2921, %v1694
  %v2923 = vpop.permute.xlu0 %2922
  %2926 = vset.pattern.permute.xlu0 0
  %2927 = vperm.xlu0 %2926, %v1696
  %v2928 = vpop.permute.xlu0 %2927
  %2931 = vset.pattern.permute.xlu0 0
  %2932 = vperm.xlu0 %2931, %v1698
  %v2933 = vpop.permute.xlu0 %2932
  %2936 = vset.pattern.permute.xlu0 0
  %2937 = vperm.xlu0 %2936, %v1700
  %v2938 = vpop.permute.xlu0 %2937
  %2941 = vset.pattern.permute.xlu0 0
  %2942 = vperm.xlu0 %2941, %v1702
  %v2943 = vpop.permute.xlu0 %2942
  %2946 = vset.pattern.permute.xlu0 0
  %2947 = vperm.xlu0 %2946, %v1704
  %v2948 = vpop.permute.xlu0 %2947
  %2951 = vset.pattern.permute.xlu0 0
  %2952 = vperm.xlu0 %2951, %v1706
  %v2953 = vpop.permute.xlu0 %2952
  %2956 = vset.pattern.permute.xlu0 0
  %2957 = vperm.xlu0 %2956, %v1708
  %v2958 = vpop.permute.xlu0 %2957
  %2961 = vset.pattern.permute.xlu0 0
  %2962 = vperm.xlu0 %2961, %v1710
  %v2963 = vpop.permute.xlu0 %2962
  %2966 = vset.pattern.permute.xlu0 0
  %2967 = vperm.xlu0 %2966, %v1712
  %v2968 = vpop.permute.xlu0 %2967
  %2971 = vset.pattern.permute.xlu0 0
  %2972 = vperm.xlu0 %2971, %v1714
  %v2973 = vpop.permute.xlu0 %2972
  %2976 = vset.pattern.permute.xlu0 0
  %2977 = vperm.xlu0 %2976, %v1716
  %v2978 = vpop.permute.xlu0 %2977
  %2981 = vset.pattern.permute.xlu0 0
  %2982 = vperm.xlu0 %2981, %v1718
  %v2983 = vpop.permute.xlu0 %2982
  %2986 = vset.pattern.permute.xlu0 0
  %2987 = vperm.xlu0 %2986, %v1720
  %v2988 = vpop.permute.xlu0 %2987
  %2991 = vset.pattern.permute.xlu0 0
  %2992 = vperm.xlu0 %2991, %v1722
  %v2993 = vpop.permute.xlu0 %2992
  %2996 = vset.pattern.permute.xlu0 0
  %2997 = vperm.xlu0 %2996, %v1724
  %v2998 = vpop.permute.xlu0 %2997
  %3001 = vset.pattern.permute.xlu0 0
  %3002 = vperm.xlu0 %3001, %v1726
  %v3003 = vpop.permute.xlu0 %3002
  %3006 = vset.pattern.permute.xlu0 0
  %3007 = vperm.xlu0 %3006, %v1728
  %v3008 = vpop.permute.xlu0 %3007
  %3011 = vset.pattern.permute.xlu0 0
  %3012 = vperm.xlu0 %3011, %v1730
  %v3013 = vpop.permute.xlu0 %3012
  %3016 = vset.pattern.permute.xlu0 0
  %3017 = vperm.xlu0 %3016, %v1732
  %v3018 = vpop.permute.xlu0 %3017
  %3021 = vset.pattern.permute.xlu0 0
  %3022 = vperm.xlu0 %3021, %v1734
  %v3023 = vpop.permute.xlu0 %3022
  %3026 = vset.pattern.permute.xlu0 0
  %3027 = vperm.xlu0 %3026, %v1736
  %v3028 = vpop.permute.xlu0 %3027
  %3031 = vset.pattern.permute.xlu0 0
  %3032 = vperm.xlu0 %3031, %v1738
  %v3033 = vpop.permute.xlu0 %3032
  %3036 = vset.pattern.permute.xlu0 0
  %3037 = vperm.xlu0 %3036, %v1740
  %v3038 = vpop.permute.xlu0 %3037
  %3041 = vset.pattern.permute.xlu0 0
  %3042 = vperm.xlu0 %3041, %v1742
  %v3043 = vpop.permute.xlu0 %3042
  %3046 = vset.pattern.permute.xlu0 0
  %3047 = vperm.xlu0 %3046, %v1744
  %v3048 = vpop.permute.xlu0 %3047
  %3051 = vset.pattern.permute.xlu0 0
  %3052 = vperm.xlu0 %3051, %v1746
  %v3053 = vpop.permute.xlu0 %3052
  %3056 = vset.pattern.permute.xlu0 0
  %3057 = vperm.xlu0 %3056, %v1748
  %v3058 = vpop.permute.xlu0 %3057
  %3061 = vset.pattern.permute.xlu0 0
  %3062 = vperm.xlu0 %3061, %v1750
  %v3063 = vpop.permute.xlu0 %3062
  %3066 = vset.pattern.permute.xlu0 0
  %3067 = vperm.xlu0 %3066, %v1752
  %v3068 = vpop.permute.xlu0 %3067
  %3071 = vset.pattern.permute.xlu0 0
  %3072 = vperm.xlu0 %3071, %v1754
  %v3073 = vpop.permute.xlu0 %3072
  %3076 = vset.pattern.permute.xlu0 0
  %3077 = vperm.xlu0 %3076, %v1756
  %v3078 = vpop.permute.xlu0 %3077
  %3081 = vset.pattern.permute.xlu0 0
  %3082 = vperm.xlu0 %3081, %v1758
  %v3083 = vpop.permute.xlu0 %3082
  %3086 = vset.pattern.permute.xlu0 0
  %3087 = vperm.xlu0 %3086, %v1760
  %v3088 = vpop.permute.xlu0 %3087
  %3091 = vset.pattern.permute.xlu0 0
  %3092 = vperm.xlu0 %3091, %v1762
  %v3093 = vpop.permute.xlu0 %3092
  %3096 = vset.pattern.permute.xlu0 0
  %3097 = vperm.xlu0 %3096, %v1764
  %v3098 = vpop.permute.xlu0 %3097
  %3101 = vset.pattern.permute.xlu0 0
  %3102 = vperm.xlu0 %3101, %v1766
  %v3103 = vpop.permute.xlu0 %3102
  %3106 = vset.pattern.permute.xlu0 0
  %3107 = vperm.xlu0 %3106, %v1768
  %v3108 = vpop.permute.xlu0 %3107
  %3111 = vset.pattern.permute.xlu0 0
  %3112 = vperm.xlu0 %3111, %v1770
  %v3113 = vpop.permute.xlu0 %3112
  %3116 = vset.pattern.permute.xlu0 0
  %3117 = vperm.xlu0 %3116, %v1772
  %v3118 = vpop.permute.xlu0 %3117
  %3121 = vset.pattern.permute.xlu0 0
  %3122 = vperm.xlu0 %3121, %v1774
  %v3123 = vpop.permute.xlu0 %3122
  %3126 = vset.pattern.permute.xlu0 0
  %3127 = vperm.xlu0 %3126, %v1776
  %v3128 = vpop.permute.xlu0 %3127
  %3131 = vset.pattern.permute.xlu0 0
  %3132 = vperm.xlu0 %3131, %v1778
  %v3133 = vpop.permute.xlu0 %3132
  %3136 = vset.pattern.permute.xlu0 0
  %3137 = vperm.xlu0 %3136, %v1780
  %v3138 = vpop.permute.xlu0 %3137
  %3141 = vset.pattern.permute.xlu0 0
  %3142 = vperm.xlu0 %3141, %v1782
  %v3143 = vpop.permute.xlu0 %3142
  %3146 = vset.pattern.permute.xlu0 0
  %3147 = vperm.xlu0 %3146, %v1784
  %v3148 = vpop.permute.xlu0 %3147
  %3151 = vset.pattern.permute.xlu0 0
  %3152 = vperm.xlu0 %3151, %v1786
  %v3153 = vpop.permute.xlu0 %3152
  %3156 = vset.pattern.permute.xlu0 0
  %3157 = vperm.xlu0 %3156, %v1788
  %v3158 = vpop.permute.xlu0 %3157
  %3161 = vset.pattern.permute.xlu0 0
  %3162 = vperm.xlu0 %3161, %v1790
  %v3163 = vpop.permute.xlu0 %3162
  %3166 = vset.pattern.permute.xlu0 0
  %3167 = vperm.xlu0 %3166, %v1792
  %v3168 = vpop.permute.xlu0 %3167
  %3171 = vset.pattern.permute.xlu0 0
  %3172 = vperm.xlu0 %3171, %v1794
  %v3173 = vpop.permute.xlu0 %3172
  %3176 = vset.pattern.permute.xlu0 0
  %3177 = vperm.xlu0 %3176, %v1796
  %v3178 = vpop.permute.xlu0 %3177
  %3181 = vset.pattern.permute.xlu0 0
  %3182 = vperm.xlu0 %3181, %v1798
  %v3183 = vpop.permute.xlu0 %3182
  %3186 = vset.pattern.permute.xlu0 0
  %3187 = vperm.xlu0 %3186, %v1800
  %v3188 = vpop.permute.xlu0 %3187
  %3191 = vset.pattern.permute.xlu0 0
  %3192 = vperm.xlu0 %3191, %v1802
  %v3193 = vpop.permute.xlu0 %3192
  %3196 = vset.pattern.permute.xlu0 0
  %3197 = vperm.xlu0 %3196, %v1804
  %v3198 = vpop.permute.xlu0 %3197
  %3201 = vset.pattern.permute.xlu0 0
  %3202 = vperm.xlu0 %3201, %v1806
  %v3203 = vpop.permute.xlu0 %3202
  %3206 = vset.pattern.permute.xlu0 0
  %3207 = vperm.xlu0 %3206, %v1808
  %v3208 = vpop.permute.xlu0 %3207
  %3211 = vset.pattern.permute.xlu0 0
  %3212 = vperm.xlu0 %3211, %v1810
  %v3213 = vpop.permute.xlu0 %3212
  %3216 = vset.pattern.permute.xlu0 0
  %3217 = vperm.xlu0 %3216, %v1812
  %v3218 = vpop.permute.xlu0 %3217
  %3221 = vset.pattern.permute.xlu0 0
  %3222 = vperm.xlu0 %3221, %v1814
  %v3223 = vpop.permute.xlu0 %3222
  %3226 = vset.pattern.permute.xlu0 0
  %3227 = vperm.xlu0 %3226, %v1816
  %v3228 = vpop.permute.xlu0 %3227
  %3231 = vset.pattern.permute.xlu0 0
  %3232 = vperm.xlu0 %3231, %v1818
  %v3233 = vpop.permute.xlu0 %3232
  %3236 = vset.pattern.permute.xlu0 0
  %3237 = vperm.xlu0 %3236, %v1820
  %v3238 = vpop.permute.xlu0 %3237
  %3241 = vset.pattern.permute.xlu0 0
  %3242 = vperm.xlu0 %3241, %v1822
  %v3243 = vpop.permute.xlu0 %3242
  %3246 = vset.pattern.permute.xlu0 0
  %3247 = vperm.xlu0 %3246, %v1824
  %v3248 = vpop.permute.xlu0 %3247
  %3251 = vset.pattern.permute.xlu0 0
  %3252 = vperm.xlu0 %3251, %v1826
  %v3253 = vpop.permute.xlu0 %3252
  %3256 = vset.pattern.permute.xlu0 0
  %3257 = vperm.xlu0 %3256, %v1828
  %v3258 = vpop.permute.xlu0 %3257
  %3261 = vset.pattern.permute.xlu0 0
  %3262 = vperm.xlu0 %3261, %v1830
  %v3263 = vpop.permute.xlu0 %3262
  %3266 = vset.pattern.permute.xlu0 0
  %3267 = vperm.xlu0 %3266, %v1832
  %v3268 = vpop.permute.xlu0 %3267
  %3271 = vset.pattern.permute.xlu0 0
  %3272 = vperm.xlu0 %3271, %v1834
  %v3273 = vpop.permute.xlu0 %3272
  %3276 = vset.pattern.permute.xlu0 0
  %3277 = vperm.xlu0 %3276, %v1836
  %v3278 = vpop.permute.xlu0 %3277
  %3281 = vset.pattern.permute.xlu0 0
  %3282 = vperm.xlu0 %3281, %v1838
  %v3283 = vpop.permute.xlu0 %3282
  %3286 = vset.pattern.permute.xlu0 0
  %3287 = vperm.xlu0 %3286, %v1840
  %v3288 = vpop.permute.xlu0 %3287
  %3291 = vset.pattern.permute.xlu0 0
  %3292 = vperm.xlu0 %3291, %v1842
  %v3293 = vpop.permute.xlu0 %3292
  %3296 = vset.pattern.permute.xlu0 0
  %3297 = vperm.xlu0 %3296, %v1844
  %v3298 = vpop.permute.xlu0 %3297
  %3301 = vset.pattern.permute.xlu0 0
  %3302 = vperm.xlu0 %3301, %v1846
  %v3303 = vpop.permute.xlu0 %3302
  %3306 = vset.pattern.permute.xlu0 0
  %3307 = vperm.xlu0 %3306, %v1848
  %v3308 = vpop.permute.xlu0 %3307
  %3311 = vset.pattern.permute.xlu0 0
  %3312 = vperm.xlu0 %3311, %v1850
  %v3313 = vpop.permute.xlu0 %3312
  %3316 = vset.pattern.permute.xlu0 0
  %3317 = vperm.xlu0 %3316, %v1852
  %v3318 = vpop.permute.xlu0 %3317
  %3321 = vset.pattern.permute.xlu0 0
  %3322 = vperm.xlu0 %3321, %v1854
  %v3323 = vpop.permute.xlu0 %3322
  %3326 = vset.pattern.permute.xlu0 0
  %3327 = vperm.xlu0 %3326, %v1856
  %v3328 = vpop.permute.xlu0 %3327
  %3331 = vset.pattern.permute.xlu0 0
  %3332 = vperm.xlu0 %3331, %v1858
  %v3333 = vpop.permute.xlu0 %3332
  %3336 = vset.pattern.permute.xlu0 0
  %3337 = vperm.xlu0 %3336, %v1860
  %v3338 = vpop.permute.xlu0 %3337
  %3341 = vset.pattern.permute.xlu0 0
  %3342 = vperm.xlu0 %3341, %v1862
  %v3343 = vpop.permute.xlu0 %3342
  %3346 = vset.pattern.permute.xlu0 0
  %3347 = vperm.xlu0 %3346, %v1864
  %v3348 = vpop.permute.xlu0 %3347
  %3351 = vset.pattern.permute.xlu0 0
  %3352 = vperm.xlu0 %3351, %v1866
  %v3353 = vpop.permute.xlu0 %3352
  %3356 = vset.pattern.permute.xlu0 0
  %3357 = vperm.xlu0 %3356, %v1868
  %v3358 = vpop.permute.xlu0 %3357
  %3361 = vset.pattern.permute.xlu0 0
  %3362 = vperm.xlu0 %3361, %v1870
  %v3363 = vpop.permute.xlu0 %3362
  %3366 = vset.pattern.permute.xlu0 0
  %3367 = vperm.xlu0 %3366, %v1872
  %v3368 = vpop.permute.xlu0 %3367
  %3371 = vset.pattern.permute.xlu0 0
  %3372 = vperm.xlu0 %3371, %v1874
  %v3373 = vpop.permute.xlu0 %3372
  %3376 = vset.pattern.permute.xlu0 0
  %3377 = vperm.xlu0 %3376, %v1876
  %v3378 = vpop.permute.xlu0 %3377
  %3381 = vset.pattern.permute.xlu0 0
  %3382 = vperm.xlu0 %3381, %v1878
  %v3383 = vpop.permute.xlu0 %3382
  %3386 = vset.pattern.permute.xlu0 0
  %3387 = vperm.xlu0 %3386, %v1880
  %v3388 = vpop.permute.xlu0 %3387
  %3391 = vset.pattern.permute.xlu0 0
  %3392 = vperm.xlu0 %3391, %v1882
  %v3393 = vpop.permute.xlu0 %3392
  %3396 = vset.pattern.permute.xlu0 0
  %3397 = vperm.xlu0 %3396, %v1884
  %v3398 = vpop.permute.xlu0 %3397
  %3401 = vset.pattern.permute.xlu0 0
  %3402 = vperm.xlu0 %3401, %v1886
  %v3403 = vpop.permute.xlu0 %3402
  %3406 = vset.pattern.permute.xlu0 0
  %3407 = vperm.xlu0 %3406, %v1888
  %v3408 = vpop.permute.xlu0 %3407
  %3411 = vset.pattern.permute.xlu0 0
  %3412 = vperm.xlu0 %3411, %v1890
  %v3413 = vpop.permute.xlu0 %3412
  %3416 = vset.pattern.permute.xlu0 0
  %3417 = vperm.xlu0 %3416, %v1892
  %v3418 = vpop.permute.xlu0 %3417
  %3421 = vset.pattern.permute.xlu0 0
  %3422 = vperm.xlu0 %3421, %v1894
  %v3423 = vpop.permute.xlu0 %3422
  %3426 = vset.pattern.permute.xlu0 0
  %3427 = vperm.xlu0 %3426, %v1896
  %v3428 = vpop.permute.xlu0 %3427
  %3431 = vset.pattern.permute.xlu0 0
  %3432 = vperm.xlu0 %3431, %v1898
  %v3433 = vpop.permute.xlu0 %3432
  %3436 = vset.pattern.permute.xlu0 0
  %3437 = vperm.xlu0 %3436, %v1900
  %v3438 = vpop.permute.xlu0 %3437
  %3441 = vset.pattern.permute.xlu0 0
  %3442 = vperm.xlu0 %3441, %v1902
  %v3443 = vpop.permute.xlu0 %3442
  %3446 = vset.pattern.permute.xlu0 0
  %3447 = vperm.xlu0 %3446, %v1904
  %v3448 = vpop.permute.xlu0 %3447
  %3451 = vset.pattern.permute.xlu0 0
  %3452 = vperm.xlu0 %3451, %v1906
  %v3453 = vpop.permute.xlu0 %3452
  %3456 = vset.pattern.permute.xlu0 0
  %3457 = vperm.xlu0 %3456, %v1908
  %v3458 = vpop.permute.xlu0 %3457
  %3461 = vset.pattern.permute.xlu0 0
  %3462 = vperm.xlu0 %3461, %v1910
  %v3463 = vpop.permute.xlu0 %3462
  %3466 = vset.pattern.permute.xlu0 0
  %3467 = vperm.xlu0 %3466, %v1912
  %v3468 = vpop.permute.xlu0 %3467
  %3471 = vset.pattern.permute.xlu0 0
  %3472 = vperm.xlu0 %3471, %v1914
  %v3473 = vpop.permute.xlu0 %3472
  %3476 = vset.pattern.permute.xlu0 0
  %3477 = vperm.xlu0 %3476, %v1916
  %v3478 = vpop.permute.xlu0 %3477
  %3481 = vset.pattern.permute.xlu0 0
  %3482 = vperm.xlu0 %3481, %v1918
  %v3483 = vpop.permute.xlu0 %3482
  %3486 = vset.pattern.permute.xlu0 0
  %3487 = vperm.xlu0 %3486, %v1920
  %v3488 = vpop.permute.xlu0 %3487
  %3491 = vset.pattern.permute.xlu0 0
  %3492 = vperm.xlu0 %3491, %v1922
  %v3493 = vpop.permute.xlu0 %3492
  %3496 = vset.pattern.permute.xlu0 0
  %3497 = vperm.xlu0 %3496, %v1924
  %v3498 = vpop.permute.xlu0 %3497
  %3501 = vset.pattern.permute.xlu0 0
  %3502 = vperm.xlu0 %3501, %v1926
  %v3503 = vpop.permute.xlu0 %3502
  %3506 = vset.pattern.permute.xlu0 0
  %3507 = vperm.xlu0 %3506, %v1928
  %v3508 = vpop.permute.xlu0 %3507
  %3511 = vset.pattern.permute.xlu0 0
  %3512 = vperm.xlu0 %3511, %v1930
  %v3513 = vpop.permute.xlu0 %3512
  %3516 = vset.pattern.permute.xlu0 0
  %3517 = vperm.xlu0 %3516, %v1932
  %v3518 = vpop.permute.xlu0 %3517
  %3521 = vset.pattern.permute.xlu0 0
  %3522 = vperm.xlu0 %3521, %v1934
  %v3523 = vpop.permute.xlu0 %3522
  %3526 = vset.pattern.permute.xlu0 0
  %3527 = vperm.xlu0 %3526, %v1936
  %v3528 = vpop.permute.xlu0 %3527
  %3531 = vset.pattern.permute.xlu0 0
  %3532 = vperm.xlu0 %3531, %v1938
  %v3533 = vpop.permute.xlu0 %3532
  %3536 = vset.pattern.permute.xlu0 0
  %3537 = vperm.xlu0 %3536, %v1940
  %v3538 = vpop.permute.xlu0 %3537
  %3541 = vset.pattern.permute.xlu0 0
  %3542 = vperm.xlu0 %3541, %v1942
  %v3543 = vpop.permute.xlu0 %3542
  %3546 = vset.pattern.permute.xlu0 0
  %3547 = vperm.xlu0 %3546, %v1944
  %v3548 = vpop.permute.xlu0 %3547
  %3551 = vset.pattern.permute.xlu0 0
  %3552 = vperm.xlu0 %3551, %v1946
  %v3553 = vpop.permute.xlu0 %3552
  %3556 = vset.pattern.permute.xlu0 0
  %3557 = vperm.xlu0 %3556, %v1948
  %v3558 = vpop.permute.xlu0 %3557
  %3561 = vset.pattern.permute.xlu0 0
  %3562 = vperm.xlu0 %3561, %v1950
  %v3563 = vpop.permute.xlu0 %3562
  %3566 = vset.pattern.permute.xlu0 0
  %3567 = vperm.xlu0 %3566, %v1952
  %v3568 = vpop.permute.xlu0 %3567
  %3571 = vset.pattern.permute.xlu0 0
  %3572 = vperm.xlu0 %3571, %v1954
  %v3573 = vpop.permute.xlu0 %3572
  %3576 = vset.pattern.permute.xlu0 0
  %3577 = vperm.xlu0 %3576, %v1956
  %v3578 = vpop.permute.xlu0 %3577
  %3581 = vset.pattern.permute.xlu0 0
  %3582 = vperm.xlu0 %3581, %v1958
  %v3583 = vpop.permute.xlu0 %3582
  %3586 = vset.pattern.permute.xlu0 0
  %3587 = vperm.xlu0 %3586, %v1960
  %v3588 = vpop.permute.xlu0 %3587
  %3591 = vset.pattern.permute.xlu0 0
  %3592 = vperm.xlu0 %3591, %v1962
  %v3593 = vpop.permute.xlu0 %3592
  %3596 = vset.pattern.permute.xlu0 0
  %3597 = vperm.xlu0 %3596, %v1964
  %v3598 = vpop.permute.xlu0 %3597
  %3601 = vset.pattern.permute.xlu0 0
  %3602 = vperm.xlu0 %3601, %v1966
  %v3603 = vpop.permute.xlu0 %3602
  %3606 = vset.pattern.permute.xlu0 0
  %3607 = vperm.xlu0 %3606, %v1968
  %v3608 = vpop.permute.xlu0 %3607
  %3611 = vset.pattern.permute.xlu0 0
  %3612 = vperm.xlu0 %3611, %v1970
  %v3613 = vpop.permute.xlu0 %3612
  %3616 = vset.pattern.permute.xlu0 0
  %3617 = vperm.xlu0 %3616, %v1972
  %v3618 = vpop.permute.xlu0 %3617
  %3621 = vset.pattern.permute.xlu0 0
  %3622 = vperm.xlu0 %3621, %v1974
  %v3623 = vpop.permute.xlu0 %3622
  %3626 = vset.pattern.permute.xlu0 0
  %3627 = vperm.xlu0 %3626, %v1976
  %v3628 = vpop.permute.xlu0 %3627
  %3631 = vset.pattern.permute.xlu0 0
  %3632 = vperm.xlu0 %3631, %v1978
  %v3633 = vpop.permute.xlu0 %3632
  %3636 = vset.pattern.permute.xlu0 0
  %3637 = vperm.xlu0 %3636, %v1980
  %v3638 = vpop.permute.xlu0 %3637
  %3641 = vset.pattern.permute.xlu0 0
  %3642 = vperm.xlu0 %3641, %v1982
  %v3643 = vpop.permute.xlu0 %3642
  %3646 = vset.pattern.permute.xlu0 0
  %3647 = vperm.xlu0 %3646, %v1984
  %v3648 = vpop.permute.xlu0 %3647
  %3651 = vset.pattern.permute.xlu0 0
  %3652 = vperm.xlu0 %3651, %v1986
  %v3653 = vpop.permute.xlu0 %3652
  %3656 = vset.pattern.permute.xlu0 0
  %3657 = vperm.xlu0 %3656, %v1988
  %v3658 = vpop.permute.xlu0 %3657
  %3661 = vset.pattern.permute.xlu0 0
  %3662 = vperm.xlu0 %3661, %v1990
  %v3663 = vpop.permute.xlu0 %3662
  %3666 = vset.pattern.permute.xlu0 0
  %3667 = vperm.xlu0 %3666, %v1992
  %v3668 = vpop.permute.xlu0 %3667
  %3671 = vset.pattern.permute.xlu0 0
  %3672 = vperm.xlu0 %3671, %v1994
  %v3673 = vpop.permute.xlu0 %3672
  %3676 = vset.pattern.permute.xlu0 0
  %3677 = vperm.xlu0 %3676, %v1996
  %v3678 = vpop.permute.xlu0 %3677
  %3681 = vset.pattern.permute.xlu0 0
  %3682 = vperm.xlu0 %3681, %v1998
  %v3683 = vpop.permute.xlu0 %3682
  %3686 = vset.pattern.permute.xlu0 0
  %3687 = vperm.xlu0 %3686, %v2000
  %v3688 = vpop.permute.xlu0 %3687
  %3691 = vset.pattern.permute.xlu0 0
  %3692 = vperm.xlu0 %3691, %v2002
  %v3693 = vpop.permute.xlu0 %3692
  %3696 = vset.pattern.permute.xlu0 0
  %3697 = vperm.xlu0 %3696, %v2004
  %v3698 = vpop.permute.xlu0 %3697
  %3701 = vset.pattern.permute.xlu0 0
  %3702 = vperm.xlu0 %3701, %v2006
  %v3703 = vpop.permute.xlu0 %3702
  %3706 = vset.pattern.permute.xlu0 0
  %3707 = vperm.xlu0 %3706, %v2008
  %v3708 = vpop.permute.xlu0 %3707
  %3711 = vset.pattern.permute.xlu0 0
  %3712 = vperm.xlu0 %3711, %v2010
  %v3713 = vpop.permute.xlu0 %3712
  %3716 = vset.pattern.permute.xlu0 0
  %3717 = vperm.xlu0 %3716, %v2012
  %v3718 = vpop.permute.xlu0 %3717
  %3721 = vset.pattern.permute.xlu0 0
  %3722 = vperm.xlu0 %3721, %v2014
  %v3723 = vpop.permute.xlu0 %3722
  %3726 = vset.pattern.permute.xlu0 0
  %3727 = vperm.xlu0 %3726, %v2016
  %v3728 = vpop.permute.xlu0 %3727
  %3731 = vset.pattern.permute.xlu0 0
  %3732 = vperm.xlu0 %3731, %v2018
  %v3733 = vpop.permute.xlu0 %3732
  %3736 = vset.pattern.permute.xlu0 0
  %3737 = vperm.xlu0 %3736, %v2020
  %v3738 = vpop.permute.xlu0 %3737
  %3741 = vset.pattern.permute.xlu0 0
  %3742 = vperm.xlu0 %3741, %v2022
  %v3743 = vpop.permute.xlu0 %3742
  %3746 = vset.pattern.permute.xlu0 0
  %3747 = vperm.xlu0 %3746, %v2024
  %v3748 = vpop.permute.xlu0 %3747
  %3751 = vset.pattern.permute.xlu0 0
  %3752 = vperm.xlu0 %3751, %v2026
  %v3753 = vpop.permute.xlu0 %3752
  %v3755 = vmul.f32 %v2318, %v2027
  %v3756 = vmul.f32 %v2323, %v2028
  %v3757 = vmul.f32 %v2328, %v2029
  %v3758 = vmul.f32 %v2333, %v2030
  %v3759 = vmul.f32 %v2338, %v2031
  %v3760 = vmul.f32 %v2343, %v2032
  %v3761 = vmul.f32 %v2348, %v2033
  %v3762 = vmul.f32 %v2353, %v2034
  %v3763 = vmul.f32 %v2358, %v2035
  %v3764 = vmul.f32 %v2363, %v2036
  %v3765 = vmul.f32 %v2368, %v2037
  %v3766 = vmul.f32 %v2373, %v2038
  %v3767 = vmul.f32 %v2378, %v2039
  %v3768 = vmul.f32 %v2383, %v2040
  %v3769 = vmul.f32 %v2388, %v2041
  %v3770 = vmul.f32 %v2393, %v2042
  %v3771 = vmul.f32 %v2398, %v2043
  %v3772 = vmul.f32 %v2403, %v2044
  %v3773 = vmul.f32 %v2408, %v2045
  %v3774 = vmul.f32 %v2413, %v2046
  %v3775 = vmul.f32 %v2418, %v2047
  %v3776 = vmul.f32 %v2423, %v2048
  %v3777 = vmul.f32 %v2428, %v2049
  %v3778 = vmul.f32 %v2433, %v2050
  %v3779 = vmul.f32 %v2438, %v2051
  %v3780 = vmul.f32 %v2443, %v2052
  %v3781 = vmul.f32 %v2448, %v2053
  %v3782 = vmul.f32 %v2453, %v2054
  %v3783 = vmul.f32 %v2458, %v2055
  %v3784 = vmul.f32 %v2463, %v2056
  %v3785 = vmul.f32 %v2468, %v2057
  %v3786 = vmul.f32 %v2473, %v2058
  %v3787 = vmul.f32 %v2478, %v2059
  %v3788 = vmul.f32 %v2483, %v2060
  %v3789 = vmul.f32 %v2488, %v2061
  %v3790 = vmul.f32 %v2493, %v2062
  %v3791 = vmul.f32 %v2498, %v2063
  %v3792 = vmul.f32 %v2503, %v2064
  %v3793 = vmul.f32 %v2508, %v2065
  %v3794 = vmul.f32 %v2513, %v2066
  %v3795 = vmul.f32 %v2518, %v2067
  %v3796 = vmul.f32 %v2523, %v2068
  %v3797 = vmul.f32 %v2528, %v2069
  %v3798 = vmul.f32 %v2533, %v2070
  %v3799 = vmul.f32 %v2538, %v2071
  %v3800 = vmul.f32 %v2543, %v2072
  %v3801 = vmul.f32 %v2548, %v2073
  %v3802 = vmul.f32 %v2553, %v2074
  %v3803 = vmul.f32 %v2558, %v2075
  %v3804 = vmul.f32 %v2563, %v2076
  %v3805 = vmul.f32 %v2568, %v2077
  %v3806 = vmul.f32 %v2573, %v2078
  %v3807 = vmul.f32 %v2578, %v2079
  %v3808 = vmul.f32 %v2583, %v2080
  %v3809 = vmul.f32 %v2588, %v2081
  %v3810 = vmul.f32 %v2593, %v2082
  %v3811 = vmul.f32 %v2598, %v2083
  %v3812 = vmul.f32 %v2603, %v2084
  %v3813 = vmul.f32 %v2608, %v2085
  %v3814 = vmul.f32 %v2613, %v2086
  %v3815 = vmul.f32 %v2618, %v2087
  %v3816 = vmul.f32 %v2623, %v2088
  %v3817 = vmul.f32 %v2628, %v2089
  %v3818 = vmul.f32 %v2633, %v2090
  %v3819 = vmul.f32 %v2638, %v2091
  %v3820 = vmul.f32 %v2643, %v2092
  %v3821 = vmul.f32 %v2648, %v2093
  %v3822 = vmul.f32 %v2653, %v2094
  %v3823 = vmul.f32 %v2658, %v2095
  %v3824 = vmul.f32 %v2663, %v2096
  %v3825 = vmul.f32 %v2668, %v2097
  %v3826 = vmul.f32 %v2673, %v2098
  %v3827 = vmul.f32 %v2678, %v2099
  %v3828 = vmul.f32 %v2683, %v2100
  %v3829 = vmul.f32 %v2688, %v2101
  %v3830 = vmul.f32 %v2693, %v2102
  %v3831 = vmul.f32 %v2698, %v2103
  %v3832 = vmul.f32 %v2703, %v2104
  %v3833 = vmul.f32 %v2708, %v2105
  %v3834 = vmul.f32 %v2713, %v2106
  %v3835 = vmul.f32 %v2718, %v2107
  %v3836 = vmul.f32 %v2723, %v2108
  %v3837 = vmul.f32 %v2728, %v2109
  %v3838 = vmul.f32 %v2733, %v2110
  %v3839 = vmul.f32 %v2738, %v2111
  %v3840 = vmul.f32 %v2743, %v2112
  %v3841 = vmul.f32 %v2748, %v2113
  %v3842 = vmul.f32 %v2753, %v2114
  %v3843 = vmul.f32 %v2758, %v2115
  %v3844 = vmul.f32 %v2763, %v2116
  %v3845 = vmul.f32 %v2768, %v2117
  %v3846 = vmul.f32 %v2773, %v2118
  %v3847 = vmul.f32 %v2778, %v2119
  %v3848 = vmul.f32 %v2783, %v2120
  %v3849 = vmul.f32 %v2788, %v2121
  %v3850 = vmul.f32 %v2793, %v2122
  %v3851 = vmul.f32 %v2798, %v2123
  %v3852 = vmul.f32 %v2803, %v2124
  %v3853 = vmul.f32 %v2808, %v2125
  %v3854 = vmul.f32 %v2813, %v2126
  %v3855 = vmul.f32 %v2818, %v2127
  %v3856 = vmul.f32 %v2823, %v2128
  %v3857 = vmul.f32 %v2828, %v2129
  %v3858 = vmul.f32 %v2833, %v2130
  %v3859 = vmul.f32 %v2838, %v2131
  %v3860 = vmul.f32 %v2843, %v2132
  %v3861 = vmul.f32 %v2848, %v2133
  %v3862 = vmul.f32 %v2853, %v2134
  %v3863 = vmul.f32 %v2858, %v2135
  %v3864 = vmul.f32 %v2863, %v2136
  %v3865 = vmul.f32 %v2868, %v2137
  %v3866 = vmul.f32 %v2873, %v2138
  %v3867 = vmul.f32 %v2878, %v2139
  %v3868 = vmul.f32 %v2883, %v2140
  %v3869 = vmul.f32 %v2888, %v2141
  %v3870 = vmul.f32 %v2893, %v2142
  %v3871 = vmul.f32 %v2898, %v2143
  %v3872 = vmul.f32 %v2903, %v2144
  %v3873 = vmul.f32 %v2908, %v2145
  %v3874 = vmul.f32 %v2913, %v2146
  %v3875 = vmul.f32 %v2918, %v2147
  %v3876 = vmul.f32 %v2923, %v2148
  %v3877 = vmul.f32 %v2928, %v2149
  %v3878 = vmul.f32 %v2933, %v2150
  %v3879 = vmul.f32 %v2938, %v2151
  %v3880 = vmul.f32 %v2943, %v2152
  %v3881 = vmul.f32 %v2948, %v2153
  %v3882 = vmul.f32 %v2953, %v2154
  %v3883 = vmul.f32 %v2958, %v2155
  %v3884 = vmul.f32 %v2963, %v2156
  %v3885 = vmul.f32 %v2968, %v2157
  %v3886 = vmul.f32 %v2973, %v2158
  %v3887 = vmul.f32 %v2978, %v2159
  %v3888 = vmul.f32 %v2983, %v2160
  %v3889 = vmul.f32 %v2988, %v2161
  %v3890 = vmul.f32 %v2993, %v2162
  %v3891 = vmul.f32 %v2998, %v2163
  %v3892 = vmul.f32 %v3003, %v2164
  %v3893 = vmul.f32 %v3008, %v2165
  %v3894 = vmul.f32 %v3013, %v2166
  %v3895 = vmul.f32 %v3018, %v2167
  %v3896 = vmul.f32 %v3023, %v2168
  %v3897 = vmul.f32 %v3028, %v2169
  %v3898 = vmul.f32 %v3033, %v2170
  %v3899 = vmul.f32 %v3038, %v2171
  %v3900 = vmul.f32 %v3043, %v2172
  %v3901 = vmul.f32 %v3048, %v2173
  %v3902 = vmul.f32 %v3053, %v2174
  %v3903 = vmul.f32 %v3058, %v2175
  %v3904 = vmul.f32 %v3063, %v2176
  %v3905 = vmul.f32 %v3068, %v2177
  %v3906 = vmul.f32 %v3073, %v2178
  %v3907 = vmul.f32 %v3078, %v2179
  %v3908 = vmul.f32 %v3083, %v2180
  %v3909 = vmul.f32 %v3088, %v2181
  %v3910 = vmul.f32 %v3093, %v2182
  %v3911 = vmul.f32 %v3098, %v2183
  %v3912 = vmul.f32 %v3103, %v2184
  %v3913 = vmul.f32 %v3108, %v2185
  %v3914 = vmul.f32 %v3113, %v2186
  %v3915 = vmul.f32 %v3118, %v2187
  %v3916 = vmul.f32 %v3123, %v2188
  %v3917 = vmul.f32 %v3128, %v2189
  %v3918 = vmul.f32 %v3133, %v2190
  %v3919 = vmul.f32 %v3138, %v2191
  %v3920 = vmul.f32 %v3143, %v2192
  %v3921 = vmul.f32 %v3148, %v2193
  %v3922 = vmul.f32 %v3153, %v2194
  %v3923 = vmul.f32 %v3158, %v2195
  %v3924 = vmul.f32 %v3163, %v2196
  %v3925 = vmul.f32 %v3168, %v2197
  %v3926 = vmul.f32 %v3173, %v2198
  %v3927 = vmul.f32 %v3178, %v2199
  %v3928 = vmul.f32 %v3183, %v2200
  %v3929 = vmul.f32 %v3188, %v2201
  %v3930 = vmul.f32 %v3193, %v2202
  %v3931 = vmul.f32 %v3198, %v2203
  %v3932 = vmul.f32 %v3203, %v2204
  %v3933 = vmul.f32 %v3208, %v2205
  %v3934 = vmul.f32 %v3213, %v2206
  %v3935 = vmul.f32 %v3218, %v2207
  %v3936 = vmul.f32 %v3223, %v2208
  %v3937 = vmul.f32 %v3228, %v2209
  %v3938 = vmul.f32 %v3233, %v2210
  %v3939 = vmul.f32 %v3238, %v2211
  %v3940 = vmul.f32 %v3243, %v2212
  %v3941 = vmul.f32 %v3248, %v2213
  %v3942 = vmul.f32 %v3253, %v2214
  %v3943 = vmul.f32 %v3258, %v2215
  %v3944 = vmul.f32 %v3263, %v2216
  %v3945 = vmul.f32 %v3268, %v2217
  %v3946 = vmul.f32 %v3273, %v2218
  %v3947 = vmul.f32 %v3278, %v2219
  %v3948 = vmul.f32 %v3283, %v2220
  %v3949 = vmul.f32 %v3288, %v2221
  %v3950 = vmul.f32 %v3293, %v2222
  %v3951 = vmul.f32 %v3298, %v2223
  %v3952 = vmul.f32 %v3303, %v2224
  %v3953 = vmul.f32 %v3308, %v2225
  %v3954 = vmul.f32 %v3313, %v2226
  %v3955 = vmul.f32 %v3318, %v2227
  %v3956 = vmul.f32 %v3323, %v2228
  %v3957 = vmul.f32 %v3328, %v2229
  %v3958 = vmul.f32 %v3333, %v2230
  %v3959 = vmul.f32 %v3338, %v2231
  %v3960 = vmul.f32 %v3343, %v2232
  %v3961 = vmul.f32 %v3348, %v2233
  %v3962 = vmul.f32 %v3353, %v2234
  %v3963 = vmul.f32 %v3358, %v2235
  %v3964 = vmul.f32 %v3363, %v2236
  %v3965 = vmul.f32 %v3368, %v2237
  %v3966 = vmul.f32 %v3373, %v2238
  %v3967 = vmul.f32 %v3378, %v2239
  %v3968 = vmul.f32 %v3383, %v2240
  %v3969 = vmul.f32 %v3388, %v2241
  %v3970 = vmul.f32 %v3393, %v2242
  %v3971 = vmul.f32 %v3398, %v2243
  %v3972 = vmul.f32 %v3403, %v2244
  %v3973 = vmul.f32 %v3408, %v2245
  %v3974 = vmul.f32 %v3413, %v2246
  %v3975 = vmul.f32 %v3418, %v2247
  %v3976 = vmul.f32 %v3423, %v2248
  %v3977 = vmul.f32 %v3428, %v2249
  %v3978 = vmul.f32 %v3433, %v2250
  %v3979 = vmul.f32 %v3438, %v2251
  %v3980 = vmul.f32 %v3443, %v2252
  %v3981 = vmul.f32 %v3448, %v2253
  %v3982 = vmul.f32 %v3453, %v2254
  %v3983 = vmul.f32 %v3458, %v2255
  %v3984 = vmul.f32 %v3463, %v2256
  %v3985 = vmul.f32 %v3468, %v2257
  %v3986 = vmul.f32 %v3473, %v2258
  %v3987 = vmul.f32 %v3478, %v2259
  %v3988 = vmul.f32 %v3483, %v2260
  %v3989 = vmul.f32 %v3488, %v2261
  %v3990 = vmul.f32 %v3493, %v2262
  %v3991 = vmul.f32 %v3498, %v2263
  %v3992 = vmul.f32 %v3503, %v2264
  %v3993 = vmul.f32 %v3508, %v2265
  %v3994 = vmul.f32 %v3513, %v2266
  %v3995 = vmul.f32 %v3518, %v2267
  %v3996 = vmul.f32 %v3523, %v2268
  %v3997 = vmul.f32 %v3528, %v2269
  %v3998 = vmul.f32 %v3533, %v2270
  %v3999 = vmul.f32 %v3538, %v2271
  %v4000 = vmul.f32 %v3543, %v2272
  %v4001 = vmul.f32 %v3548, %v2273
  %v4002 = vmul.f32 %v3553, %v2274
  %v4003 = vmul.f32 %v3558, %v2275
  %v4004 = vmul.f32 %v3563, %v2276
  %v4005 = vmul.f32 %v3568, %v2277
  %v4006 = vmul.f32 %v3573, %v2278
  %v4007 = vmul.f32 %v3578, %v2279
  %v4008 = vmul.f32 %v3583, %v2280
  %v4009 = vmul.f32 %v3588, %v2281
  %v4010 = vmul.f32 %v3593, %v2282
  %v4011 = vmul.f32 %v3598, %v2283
  %v4012 = vmul.f32 %v3603, %v2284
  %v4013 = vmul.f32 %v3608, %v2285
  %v4014 = vmul.f32 %v3613, %v2286
  %v4015 = vmul.f32 %v3618, %v2287
  %v4016 = vmul.f32 %v3623, %v2288
  %v4017 = vmul.f32 %v3628, %v2289
  %v4018 = vmul.f32 %v3633, %v2290
  %v4019 = vmul.f32 %v3638, %v2291
  %v4020 = vmul.f32 %v3643, %v2292
  %v4021 = vmul.f32 %v3648, %v2293
  %v4022 = vmul.f32 %v3653, %v2294
  %v4023 = vmul.f32 %v3658, %v2295
  %v4024 = vmul.f32 %v3663, %v2296
  %v4025 = vmul.f32 %v3668, %v2297
  %v4026 = vmul.f32 %v3673, %v2298
  %v4027 = vmul.f32 %v3678, %v2299
  %v4028 = vmul.f32 %v3683, %v2300
  %v4029 = vmul.f32 %v3688, %v2301
  %v4030 = vmul.f32 %v3693, %v2302
  %v4031 = vmul.f32 %v3698, %v2303
  %v4032 = vmul.f32 %v3703, %v2304
  %v4033 = vmul.f32 %v3708, %v2305
  %v4034 = vmul.f32 %v3713, %v2306
  %v4035 = vmul.f32 %v3718, %v2307
  %v4036 = vmul.f32 %v3723, %v2308
  %v4037 = vmul.f32 %v3728, %v2309
  %v4038 = vmul.f32 %v3733, %v2310
  %v4039 = vmul.f32 %v3738, %v2311
  %v4040 = vmul.f32 %v3743, %v2312
  %v4041 = vmul.f32 %v3748, %v2313
  %v4042 = vmul.f32 %v3753, %v2314
  %vm4043 = vcmask 400384
  %4044 = vst.msk [vmem:[%s2] sm:$0xff] %vm4043, %v3755
  %4045 = vst.msk [vmem:[%s2 + $0x8] sm:$0xff] %vm4043, %v3756
  %4046 = vst.msk [vmem:[%s2 + $0x10] sm:$0xff] %vm4043, %v3757
  %4047 = vst.msk [vmem:[%s2 + $0x18] sm:$0xff] %vm4043, %v3758
  %4048 = vst.msk [vmem:[%s2 + $0x20] sm:$0xff] %vm4043, %v3759
  %4049 = vst.msk [vmem:[%s2 + $0x28] sm:$0xff] %vm4043, %v3760
  %4050 = vst.msk [vmem:[%s2 + $0x30] sm:$0xff] %vm4043, %v3761
  %4051 = vst.msk [vmem:[%s2 + $0x38] sm:$0xff] %vm4043, %v3762
  %4052 = vst.msk [vmem:[%s2 + $0x40] sm:$0xff] %vm4043, %v3763
  %4053 = vst.msk [vmem:[%s2 + $0x48] sm:$0xff] %vm4043, %v3764
  %4054 = vst.msk [vmem:[%s2 + $0x50] sm:$0xff] %vm4043, %v3765
  %4055 = vst.msk [vmem:[%s2 + $0x58] sm:$0xff] %vm4043, %v3766
  %4056 = vst.msk [vmem:[%s2 + $0x60] sm:$0xff] %vm4043, %v3767
  %4057 = vst.msk [vmem:[%s2 + $0x68] sm:$0xff] %vm4043, %v3768
  %4058 = vst.msk [vmem:[%s2 + $0x70] sm:$0xff] %vm4043, %v3769
  %4059 = vst.msk [vmem:[%s2 + $0x78] sm:$0xff] %vm4043, %v3770
  %4060 = vst.msk [vmem:[%s2 + $0x80] sm:$0xff] %vm4043, %v3771
  %4061 = vst.msk [vmem:[%s2 + $0x88] sm:$0xff] %vm4043, %v3772
  %4062 = vst.msk [vmem:[%s2 + $0x90] sm:$0xff] %vm4043, %v3773
  %4063 = vst.msk [vmem:[%s2 + $0x98] sm:$0xff] %vm4043, %v3774
  %4064 = vst.msk [vmem:[%s2 + $0xa0] sm:$0xff] %vm4043, %v3775
  %4065 = vst.msk [vmem:[%s2 + $0xa8] sm:$0xff] %vm4043, %v3776
  %4066 = vst.msk [vmem:[%s2 + $0xb0] sm:$0xff] %vm4043, %v3777
  %4067 = vst.msk [vmem:[%s2 + $0xb8] sm:$0xff] %vm4043, %v3778
  %4068 = vst.msk [vmem:[%s2 + $0xc0] sm:$0xff] %vm4043, %v3779
  %4069 = vst.msk [vmem:[%s2 + $0xc8] sm:$0xff] %vm4043, %v3780
  %4070 = vst.msk [vmem:[%s2 + $0xd0] sm:$0xff] %vm4043, %v3781
  %4071 = vst.msk [vmem:[%s2 + $0xd8] sm:$0xff] %vm4043, %v3782
  %4072 = vst.msk [vmem:[%s2 + $0xe0] sm:$0xff] %vm4043, %v3783
  %4073 = vst.msk [vmem:[%s2 + $0xe8] sm:$0xff] %vm4043, %v3784
  %4074 = vst.msk [vmem:[%s2 + $0xf0] sm:$0xff] %vm4043, %v3785
  %4075 = vst.msk [vmem:[%s2 + $0xf8] sm:$0xff] %vm4043, %v3786
  %4076 = vst.msk [vmem:[%s2 + $0x100] sm:$0xff] %vm4043, %v3787
  %4077 = vst.msk [vmem:[%s2 + $0x108] sm:$0xff] %vm4043, %v3788
  %4078 = vst.msk [vmem:[%s2 + $0x110] sm:$0xff] %vm4043, %v3789
  %4079 = vst.msk [vmem:[%s2 + $0x118] sm:$0xff] %vm4043, %v3790
  %4080 = vst.msk [vmem:[%s2 + $0x120] sm:$0xff] %vm4043, %v3791
  %4081 = vst.msk [vmem:[%s2 + $0x128] sm:$0xff] %vm4043, %v3792
  %4082 = vst.msk [vmem:[%s2 + $0x130] sm:$0xff] %vm4043, %v3793
  %4083 = vst.msk [vmem:[%s2 + $0x138] sm:$0xff] %vm4043, %v3794
  %4084 = vst.msk [vmem:[%s2 + $0x140] sm:$0xff] %vm4043, %v3795
  %4085 = vst.msk [vmem:[%s2 + $0x148] sm:$0xff] %vm4043, %v3796
  %4086 = vst.msk [vmem:[%s2 + $0x150] sm:$0xff] %vm4043, %v3797
  %4087 = vst.msk [vmem:[%s2 + $0x158] sm:$0xff] %vm4043, %v3798
  %4088 = vst.msk [vmem:[%s2 + $0x160] sm:$0xff] %vm4043, %v3799
  %4089 = vst.msk [vmem:[%s2 + $0x168] sm:$0xff] %vm4043, %v3800
  %4090 = vst.msk [vmem:[%s2 + $0x170] sm:$0xff] %vm4043, %v3801
  %4091 = vst.msk [vmem:[%s2 + $0x178] sm:$0xff] %vm4043, %v3802
  %4092 = vst.msk [vmem:[%s2 + $0x180] sm:$0xff] %vm4043, %v3803
  %4093 = vst.msk [vmem:[%s2 + $0x188] sm:$0xff] %vm4043, %v3804
  %4094 = vst.msk [vmem:[%s2 + $0x190] sm:$0xff] %vm4043, %v3805
  %4095 = vst.msk [vmem:[%s2 + $0x198] sm:$0xff] %vm4043, %v3806
  %4096 = vst.msk [vmem:[%s2 + $0x1a0] sm:$0xff] %vm4043, %v3807
  %4097 = vst.msk [vmem:[%s2 + $0x1a8] sm:$0xff] %vm4043, %v3808
  %4098 = vst.msk [vmem:[%s2 + $0x1b0] sm:$0xff] %vm4043, %v3809
  %4099 = vst.msk [vmem:[%s2 + $0x1b8] sm:$0xff] %vm4043, %v3810
  %4100 = vst.msk [vmem:[%s2 + $0x1c0] sm:$0xff] %vm4043, %v3811
  %4101 = vst.msk [vmem:[%s2 + $0x1c8] sm:$0xff] %vm4043, %v3812
  %4102 = vst.msk [vmem:[%s2 + $0x1d0] sm:$0xff] %vm4043, %v3813
  %4103 = vst.msk [vmem:[%s2 + $0x1d8] sm:$0xff] %vm4043, %v3814
  %4104 = vst.msk [vmem:[%s2 + $0x1e0] sm:$0xff] %vm4043, %v3815
  %4105 = vst.msk [vmem:[%s2 + $0x1e8] sm:$0xff] %vm4043, %v3816
  %4106 = vst.msk [vmem:[%s2 + $0x1f0] sm:$0xff] %vm4043, %v3817
  %4107 = vst.msk [vmem:[%s2 + $0x1f8] sm:$0xff] %vm4043, %v3818
  %4108 = vst.msk [vmem:[%s2 + $0x200] sm:$0xff] %vm4043, %v3819
  %4109 = vst.msk [vmem:[%s2 + $0x208] sm:$0xff] %vm4043, %v3820
  %4110 = vst.msk [vmem:[%s2 + $0x210] sm:$0xff] %vm4043, %v3821
  %4111 = vst.msk [vmem:[%s2 + $0x218] sm:$0xff] %vm4043, %v3822
  %4112 = vst.msk [vmem:[%s2 + $0x220] sm:$0xff] %vm4043, %v3823
  %4113 = vst.msk [vmem:[%s2 + $0x228] sm:$0xff] %vm4043, %v3824
  %4114 = vst.msk [vmem:[%s2 + $0x230] sm:$0xff] %vm4043, %v3825
  %4115 = vst.msk [vmem:[%s2 + $0x238] sm:$0xff] %vm4043, %v3826
  %4116 = vst.msk [vmem:[%s2 + $0x240] sm:$0xff] %vm4043, %v3827
  %4117 = vst.msk [vmem:[%s2 + $0x248] sm:$0xff] %vm4043, %v3828
  %4118 = vst.msk [vmem:[%s2 + $0x250] sm:$0xff] %vm4043, %v3829
  %4119 = vst.msk [vmem:[%s2 + $0x258] sm:$0xff] %vm4043, %v3830
  %4120 = vst.msk [vmem:[%s2 + $0x260] sm:$0xff] %vm4043, %v3831
  %4121 = vst.msk [vmem:[%s2 + $0x268] sm:$0xff] %vm4043, %v3832
  %4122 = vst.msk [vmem:[%s2 + $0x270] sm:$0xff] %vm4043, %v3833
  %4123 = vst.msk [vmem:[%s2 + $0x278] sm:$0xff] %vm4043, %v3834
  %4124 = vst.msk [vmem:[%s2 + $0x280] sm:$0xff] %vm4043, %v3835
  %4125 = vst.msk [vmem:[%s2 + $0x288] sm:$0xff] %vm4043, %v3836
  %4126 = vst.msk [vmem:[%s2 + $0x290] sm:$0xff] %vm4043, %v3837
  %4127 = vst.msk [vmem:[%s2 + $0x298] sm:$0xff] %vm4043, %v3838
  %4128 = vst.msk [vmem:[%s2 + $0x2a0] sm:$0xff] %vm4043, %v3839
  %4129 = vst.msk [vmem:[%s2 + $0x2a8] sm:$0xff] %vm4043, %v3840
  %4130 = vst.msk [vmem:[%s2 + $0x2b0] sm:$0xff] %vm4043, %v3841
  %4131 = vst.msk [vmem:[%s2 + $0x2b8] sm:$0xff] %vm4043, %v3842
  %4132 = vst.msk [vmem:[%s2 + $0x2c0] sm:$0xff] %vm4043, %v3843
  %4133 = vst.msk [vmem:[%s2 + $0x2c8] sm:$0xff] %vm4043, %v3844
  %4134 = vst.msk [vmem:[%s2 + $0x2d0] sm:$0xff] %vm4043, %v3845
  %4135 = vst.msk [vmem:[%s2 + $0x2d8] sm:$0xff] %vm4043, %v3846
  %4136 = vst.msk [vmem:[%s2 + $0x2e0] sm:$0xff] %vm4043, %v3847
  %4137 = vst.msk [vmem:[%s2 + $0x2e8] sm:$0xff] %vm4043, %v3848
  %4138 = vst.msk [vmem:[%s2 + $0x2f0] sm:$0xff] %vm4043, %v3849
  %4139 = vst.msk [vmem:[%s2 + $0x2f8] sm:$0xff] %vm4043, %v3850
  %4140 = vst.msk [vmem:[%s2 + $0x300] sm:$0xff] %vm4043, %v3851
  %4141 = vst.msk [vmem:[%s2 + $0x308] sm:$0xff] %vm4043, %v3852
  %4142 = vst.msk [vmem:[%s2 + $0x310] sm:$0xff] %vm4043, %v3853
  %4143 = vst.msk [vmem:[%s2 + $0x318] sm:$0xff] %vm4043, %v3854
  %4144 = vst.msk [vmem:[%s2 + $0x320] sm:$0xff] %vm4043, %v3855
  %4145 = vst.msk [vmem:[%s2 + $0x328] sm:$0xff] %vm4043, %v3856
  %4146 = vst.msk [vmem:[%s2 + $0x330] sm:$0xff] %vm4043, %v3857
  %4147 = vst.msk [vmem:[%s2 + $0x338] sm:$0xff] %vm4043, %v3858
  %4148 = vst.msk [vmem:[%s2 + $0x340] sm:$0xff] %vm4043, %v3859
  %4149 = vst.msk [vmem:[%s2 + $0x348] sm:$0xff] %vm4043, %v3860
  %4150 = vst.msk [vmem:[%s2 + $0x350] sm:$0xff] %vm4043, %v3861
  %4151 = vst.msk [vmem:[%s2 + $0x358] sm:$0xff] %vm4043, %v3862
  %4152 = vst.msk [vmem:[%s2 + $0x360] sm:$0xff] %vm4043, %v3863
  %4153 = vst.msk [vmem:[%s2 + $0x368] sm:$0xff] %vm4043, %v3864
  %4154 = vst.msk [vmem:[%s2 + $0x370] sm:$0xff] %vm4043, %v3865
  %4155 = vst.msk [vmem:[%s2 + $0x378] sm:$0xff] %vm4043, %v3866
  %4156 = vst.msk [vmem:[%s2 + $0x380] sm:$0xff] %vm4043, %v3867
  %4157 = vst.msk [vmem:[%s2 + $0x388] sm:$0xff] %vm4043, %v3868
  %4158 = vst.msk [vmem:[%s2 + $0x390] sm:$0xff] %vm4043, %v3869
  %4159 = vst.msk [vmem:[%s2 + $0x398] sm:$0xff] %vm4043, %v3870
  %4160 = vst.msk [vmem:[%s2 + $0x3a0] sm:$0xff] %vm4043, %v3871
  %4161 = vst.msk [vmem:[%s2 + $0x3a8] sm:$0xff] %vm4043, %v3872
  %4162 = vst.msk [vmem:[%s2 + $0x3b0] sm:$0xff] %vm4043, %v3873
  %4163 = vst.msk [vmem:[%s2 + $0x3b8] sm:$0xff] %vm4043, %v3874
  %4164 = vst.msk [vmem:[%s2 + $0x3c0] sm:$0xff] %vm4043, %v3875
  %4165 = vst.msk [vmem:[%s2 + $0x3c8] sm:$0xff] %vm4043, %v3876
  %4166 = vst.msk [vmem:[%s2 + $0x3d0] sm:$0xff] %vm4043, %v3877
  %4167 = vst.msk [vmem:[%s2 + $0x3d8] sm:$0xff] %vm4043, %v3878
  %4168 = vst.msk [vmem:[%s2 + $0x3e0] sm:$0xff] %vm4043, %v3879
  %4169 = vst.msk [vmem:[%s2 + $0x3e8] sm:$0xff] %vm4043, %v3880
  %4170 = vst.msk [vmem:[%s2 + $0x3f0] sm:$0xff] %vm4043, %v3881
  %4171 = vst.msk [vmem:[%s2 + $0x3f8] sm:$0xff] %vm4043, %v3882
  %4172 = vst.msk [vmem:[%s2 + $0x400] sm:$0xff] %vm4043, %v3883
  %4173 = vst.msk [vmem:[%s2 + $0x408] sm:$0xff] %vm4043, %v3884
  %4174 = vst.msk [vmem:[%s2 + $0x410] sm:$0xff] %vm4043, %v3885
  %4175 = vst.msk [vmem:[%s2 + $0x418] sm:$0xff] %vm4043, %v3886
  %4176 = vst.msk [vmem:[%s2 + $0x420] sm:$0xff] %vm4043, %v3887
  %4177 = vst.msk [vmem:[%s2 + $0x428] sm:$0xff] %vm4043, %v3888
  %4178 = vst.msk [vmem:[%s2 + $0x430] sm:$0xff] %vm4043, %v3889
  %4179 = vst.msk [vmem:[%s2 + $0x438] sm:$0xff] %vm4043, %v3890
  %4180 = vst.msk [vmem:[%s2 + $0x440] sm:$0xff] %vm4043, %v3891
  %4181 = vst.msk [vmem:[%s2 + $0x448] sm:$0xff] %vm4043, %v3892
  %4182 = vst.msk [vmem:[%s2 + $0x450] sm:$0xff] %vm4043, %v3893
  %4183 = vst.msk [vmem:[%s2 + $0x458] sm:$0xff] %vm4043, %v3894
  %4184 = vst.msk [vmem:[%s2 + $0x460] sm:$0xff] %vm4043, %v3895
  %4185 = vst.msk [vmem:[%s2 + $0x468] sm:$0xff] %vm4043, %v3896
  %4186 = vst.msk [vmem:[%s2 + $0x470] sm:$0xff] %vm4043, %v3897
  %4187 = vst.msk [vmem:[%s2 + $0x478] sm:$0xff] %vm4043, %v3898
  %4188 = vst.msk [vmem:[%s2 + $0x480] sm:$0xff] %vm4043, %v3899
  %4189 = vst.msk [vmem:[%s2 + $0x488] sm:$0xff] %vm4043, %v3900
  %4190 = vst.msk [vmem:[%s2 + $0x490] sm:$0xff] %vm4043, %v3901
  %4191 = vst.msk [vmem:[%s2 + $0x498] sm:$0xff] %vm4043, %v3902
  %4192 = vst.msk [vmem:[%s2 + $0x4a0] sm:$0xff] %vm4043, %v3903
  %4193 = vst.msk [vmem:[%s2 + $0x4a8] sm:$0xff] %vm4043, %v3904
  %4194 = vst.msk [vmem:[%s2 + $0x4b0] sm:$0xff] %vm4043, %v3905
  %4195 = vst.msk [vmem:[%s2 + $0x4b8] sm:$0xff] %vm4043, %v3906
  %4196 = vst.msk [vmem:[%s2 + $0x4c0] sm:$0xff] %vm4043, %v3907
  %4197 = vst.msk [vmem:[%s2 + $0x4c8] sm:$0xff] %vm4043, %v3908
  %4198 = vst.msk [vmem:[%s2 + $0x4d0] sm:$0xff] %vm4043, %v3909
  %4199 = vst.msk [vmem:[%s2 + $0x4d8] sm:$0xff] %vm4043, %v3910
  %4200 = vst.msk [vmem:[%s2 + $0x4e0] sm:$0xff] %vm4043, %v3911
  %4201 = vst.msk [vmem:[%s2 + $0x4e8] sm:$0xff] %vm4043, %v3912
  %4202 = vst.msk [vmem:[%s2 + $0x4f0] sm:$0xff] %vm4043, %v3913
  %4203 = vst.msk [vmem:[%s2 + $0x4f8] sm:$0xff] %vm4043, %v3914
  %4204 = vst.msk [vmem:[%s2 + $0x500] sm:$0xff] %vm4043, %v3915
  %4205 = vst.msk [vmem:[%s2 + $0x508] sm:$0xff] %vm4043, %v3916
  %4206 = vst.msk [vmem:[%s2 + $0x510] sm:$0xff] %vm4043, %v3917
  %4207 = vst.msk [vmem:[%s2 + $0x518] sm:$0xff] %vm4043, %v3918
  %4208 = vst.msk [vmem:[%s2 + $0x520] sm:$0xff] %vm4043, %v3919
  %4209 = vst.msk [vmem:[%s2 + $0x528] sm:$0xff] %vm4043, %v3920
  %4210 = vst.msk [vmem:[%s2 + $0x530] sm:$0xff] %vm4043, %v3921
  %4211 = vst.msk [vmem:[%s2 + $0x538] sm:$0xff] %vm4043, %v3922
  %4212 = vst.msk [vmem:[%s2 + $0x540] sm:$0xff] %vm4043, %v3923
  %4213 = vst.msk [vmem:[%s2 + $0x548] sm:$0xff] %vm4043, %v3924
  %4214 = vst.msk [vmem:[%s2 + $0x550] sm:$0xff] %vm4043, %v3925
  %4215 = vst.msk [vmem:[%s2 + $0x558] sm:$0xff] %vm4043, %v3926
  %4216 = vst.msk [vmem:[%s2 + $0x560] sm:$0xff] %vm4043, %v3927
  %4217 = vst.msk [vmem:[%s2 + $0x568] sm:$0xff] %vm4043, %v3928
  %4218 = vst.msk [vmem:[%s2 + $0x570] sm:$0xff] %vm4043, %v3929
  %4219 = vst.msk [vmem:[%s2 + $0x578] sm:$0xff] %vm4043, %v3930
  %4220 = vst.msk [vmem:[%s2 + $0x580] sm:$0xff] %vm4043, %v3931
  %4221 = vst.msk [vmem:[%s2 + $0x588] sm:$0xff] %vm4043, %v3932
  %4222 = vst.msk [vmem:[%s2 + $0x590] sm:$0xff] %vm4043, %v3933
  %4223 = vst.msk [vmem:[%s2 + $0x598] sm:$0xff] %vm4043, %v3934
  %4224 = vst.msk [vmem:[%s2 + $0x5a0] sm:$0xff] %vm4043, %v3935
  %4225 = vst.msk [vmem:[%s2 + $0x5a8] sm:$0xff] %vm4043, %v3936
  %4226 = vst.msk [vmem:[%s2 + $0x5b0] sm:$0xff] %vm4043, %v3937
  %4227 = vst.msk [vmem:[%s2 + $0x5b8] sm:$0xff] %vm4043, %v3938
  %4228 = vst.msk [vmem:[%s2 + $0x5c0] sm:$0xff] %vm4043, %v3939
  %4229 = vst.msk [vmem:[%s2 + $0x5c8] sm:$0xff] %vm4043, %v3940
  %4230 = vst.msk [vmem:[%s2 + $0x5d0] sm:$0xff] %vm4043, %v3941
  %4231 = vst.msk [vmem:[%s2 + $0x5d8] sm:$0xff] %vm4043, %v3942
  %4232 = vst.msk [vmem:[%s2 + $0x5e0] sm:$0xff] %vm4043, %v3943
  %4233 = vst.msk [vmem:[%s2 + $0x5e8] sm:$0xff] %vm4043, %v3944
  %4234 = vst.msk [vmem:[%s2 + $0x5f0] sm:$0xff] %vm4043, %v3945
  %4235 = vst.msk [vmem:[%s2 + $0x5f8] sm:$0xff] %vm4043, %v3946
  %4236 = vst.msk [vmem:[%s2 + $0x600] sm:$0xff] %vm4043, %v3947
  %4237 = vst.msk [vmem:[%s2 + $0x608] sm:$0xff] %vm4043, %v3948
  %4238 = vst.msk [vmem:[%s2 + $0x610] sm:$0xff] %vm4043, %v3949
  %4239 = vst.msk [vmem:[%s2 + $0x618] sm:$0xff] %vm4043, %v3950
  %4240 = vst.msk [vmem:[%s2 + $0x620] sm:$0xff] %vm4043, %v3951
  %4241 = vst.msk [vmem:[%s2 + $0x628] sm:$0xff] %vm4043, %v3952
  %4242 = vst.msk [vmem:[%s2 + $0x630] sm:$0xff] %vm4043, %v3953
  %4243 = vst.msk [vmem:[%s2 + $0x638] sm:$0xff] %vm4043, %v3954
  %4244 = vst.msk [vmem:[%s2 + $0x640] sm:$0xff] %vm4043, %v3955
  %4245 = vst.msk [vmem:[%s2 + $0x648] sm:$0xff] %vm4043, %v3956
  %4246 = vst.msk [vmem:[%s2 + $0x650] sm:$0xff] %vm4043, %v3957
  %4247 = vst.msk [vmem:[%s2 + $0x658] sm:$0xff] %vm4043, %v3958
  %4248 = vst.msk [vmem:[%s2 + $0x660] sm:$0xff] %vm4043, %v3959
  %4249 = vst.msk [vmem:[%s2 + $0x668] sm:$0xff] %vm4043, %v3960
  %4250 = vst.msk [vmem:[%s2 + $0x670] sm:$0xff] %vm4043, %v3961
  %4251 = vst.msk [vmem:[%s2 + $0x678] sm:$0xff] %vm4043, %v3962
  %4252 = vst.msk [vmem:[%s2 + $0x680] sm:$0xff] %vm4043, %v3963
  %4253 = vst.msk [vmem:[%s2 + $0x688] sm:$0xff] %vm4043, %v3964
  %4254 = vst.msk [vmem:[%s2 + $0x690] sm:$0xff] %vm4043, %v3965
  %4255 = vst.msk [vmem:[%s2 + $0x698] sm:$0xff] %vm4043, %v3966
  %4256 = vst.msk [vmem:[%s2 + $0x6a0] sm:$0xff] %vm4043, %v3967
  %4257 = vst.msk [vmem:[%s2 + $0x6a8] sm:$0xff] %vm4043, %v3968
  %4258 = vst.msk [vmem:[%s2 + $0x6b0] sm:$0xff] %vm4043, %v3969
  %4259 = vst.msk [vmem:[%s2 + $0x6b8] sm:$0xff] %vm4043, %v3970
  %4260 = vst.msk [vmem:[%s2 + $0x6c0] sm:$0xff] %vm4043, %v3971
  %4261 = vst.msk [vmem:[%s2 + $0x6c8] sm:$0xff] %vm4043, %v3972
  %4262 = vst.msk [vmem:[%s2 + $0x6d0] sm:$0xff] %vm4043, %v3973
  %4263 = vst.msk [vmem:[%s2 + $0x6d8] sm:$0xff] %vm4043, %v3974
  %4264 = vst.msk [vmem:[%s2 + $0x6e0] sm:$0xff] %vm4043, %v3975
  %4265 = vst.msk [vmem:[%s2 + $0x6e8] sm:$0xff] %vm4043, %v3976
  %4266 = vst.msk [vmem:[%s2 + $0x6f0] sm:$0xff] %vm4043, %v3977
  %4267 = vst.msk [vmem:[%s2 + $0x6f8] sm:$0xff] %vm4043, %v3978
  %4268 = vst.msk [vmem:[%s2 + $0x700] sm:$0xff] %vm4043, %v3979
  %4269 = vst.msk [vmem:[%s2 + $0x708] sm:$0xff] %vm4043, %v3980
  %4270 = vst.msk [vmem:[%s2 + $0x710] sm:$0xff] %vm4043, %v3981
  %4271 = vst.msk [vmem:[%s2 + $0x718] sm:$0xff] %vm4043, %v3982
  %4272 = vst.msk [vmem:[%s2 + $0x720] sm:$0xff] %vm4043, %v3983
  %4273 = vst.msk [vmem:[%s2 + $0x728] sm:$0xff] %vm4043, %v3984
  %4274 = vst.msk [vmem:[%s2 + $0x730] sm:$0xff] %vm4043, %v3985
  %4275 = vst.msk [vmem:[%s2 + $0x738] sm:$0xff] %vm4043, %v3986
  %4276 = vst.msk [vmem:[%s2 + $0x740] sm:$0xff] %vm4043, %v3987
  %4277 = vst.msk [vmem:[%s2 + $0x748] sm:$0xff] %vm4043, %v3988
  %4278 = vst.msk [vmem:[%s2 + $0x750] sm:$0xff] %vm4043, %v3989
  %4279 = vst.msk [vmem:[%s2 + $0x758] sm:$0xff] %vm4043, %v3990
  %4280 = vst.msk [vmem:[%s2 + $0x760] sm:$0xff] %vm4043, %v3991
  %4281 = vst.msk [vmem:[%s2 + $0x768] sm:$0xff] %vm4043, %v3992
  %4282 = vst.msk [vmem:[%s2 + $0x770] sm:$0xff] %vm4043, %v3993
  %4283 = vst.msk [vmem:[%s2 + $0x778] sm:$0xff] %vm4043, %v3994
  %4284 = vst.msk [vmem:[%s2 + $0x780] sm:$0xff] %vm4043, %v3995
  %4285 = vst.msk [vmem:[%s2 + $0x788] sm:$0xff] %vm4043, %v3996
  %4286 = vst.msk [vmem:[%s2 + $0x790] sm:$0xff] %vm4043, %v3997
  %4287 = vst.msk [vmem:[%s2 + $0x798] sm:$0xff] %vm4043, %v3998
  %4288 = vst.msk [vmem:[%s2 + $0x7a0] sm:$0xff] %vm4043, %v3999
  %4289 = vst.msk [vmem:[%s2 + $0x7a8] sm:$0xff] %vm4043, %v4000
  %4290 = vst.msk [vmem:[%s2 + $0x7b0] sm:$0xff] %vm4043, %v4001
  %4291 = vst.msk [vmem:[%s2 + $0x7b8] sm:$0xff] %vm4043, %v4002
  %4292 = vst.msk [vmem:[%s2 + $0x7c0] sm:$0xff] %vm4043, %v4003
  %4293 = vst.msk [vmem:[%s2 + $0x7c8] sm:$0xff] %vm4043, %v4004
  %4294 = vst.msk [vmem:[%s2 + $0x7d0] sm:$0xff] %vm4043, %v4005
  %4295 = vst.msk [vmem:[%s2 + $0x7d8] sm:$0xff] %vm4043, %v4006
  %4296 = vst.msk [vmem:[%s2 + $0x7e0] sm:$0xff] %vm4043, %v4007
  %4297 = vst.msk [vmem:[%s2 + $0x7e8] sm:$0xff] %vm4043, %v4008
  %4298 = vst.msk [vmem:[%s2 + $0x7f0] sm:$0xff] %vm4043, %v4009
  %4299 = vst.msk [vmem:[%s2 + $0x7f8] sm:$0xff] %vm4043, %v4010
  %4300 = vst.msk [vmem:[%s2 + $0x800] sm:$0xff] %vm4043, %v4011
  %4301 = vst.msk [vmem:[%s2 + $0x808] sm:$0xff] %vm4043, %v4012
  %4302 = vst.msk [vmem:[%s2 + $0x810] sm:$0xff] %vm4043, %v4013
  %4303 = vst.msk [vmem:[%s2 + $0x818] sm:$0xff] %vm4043, %v4014
  %4304 = vst.msk [vmem:[%s2 + $0x820] sm:$0xff] %vm4043, %v4015
  %4305 = vst.msk [vmem:[%s2 + $0x828] sm:$0xff] %vm4043, %v4016
  %4306 = vst.msk [vmem:[%s2 + $0x830] sm:$0xff] %vm4043, %v4017
  %4307 = vst.msk [vmem:[%s2 + $0x838] sm:$0xff] %vm4043, %v4018
  %4308 = vst.msk [vmem:[%s2 + $0x840] sm:$0xff] %vm4043, %v4019
  %4309 = vst.msk [vmem:[%s2 + $0x848] sm:$0xff] %vm4043, %v4020
  %4310 = vst.msk [vmem:[%s2 + $0x850] sm:$0xff] %vm4043, %v4021
  %4311 = vst.msk [vmem:[%s2 + $0x858] sm:$0xff] %vm4043, %v4022
  %4312 = vst.msk [vmem:[%s2 + $0x860] sm:$0xff] %vm4043, %v4023
  %4313 = vst.msk [vmem:[%s2 + $0x868] sm:$0xff] %vm4043, %v4024
  %4314 = vst.msk [vmem:[%s2 + $0x870] sm:$0xff] %vm4043, %v4025
  %4315 = vst.msk [vmem:[%s2 + $0x878] sm:$0xff] %vm4043, %v4026
  %4316 = vst.msk [vmem:[%s2 + $0x880] sm:$0xff] %vm4043, %v4027
  %4317 = vst.msk [vmem:[%s2 + $0x888] sm:$0xff] %vm4043, %v4028
  %4318 = vst.msk [vmem:[%s2 + $0x890] sm:$0xff] %vm4043, %v4029
  %4319 = vst.msk [vmem:[%s2 + $0x898] sm:$0xff] %vm4043, %v4030
  %4320 = vst.msk [vmem:[%s2 + $0x8a0] sm:$0xff] %vm4043, %v4031
  %4321 = vst.msk [vmem:[%s2 + $0x8a8] sm:$0xff] %vm4043, %v4032
  %4322 = vst.msk [vmem:[%s2 + $0x8b0] sm:$0xff] %vm4043, %v4033
  %4323 = vst.msk [vmem:[%s2 + $0x8b8] sm:$0xff] %vm4043, %v4034
  %4324 = vst.msk [vmem:[%s2 + $0x8c0] sm:$0xff] %vm4043, %v4035
  %4325 = vst.msk [vmem:[%s2 + $0x8c8] sm:$0xff] %vm4043, %v4036
  %4326 = vst.msk [vmem:[%s2 + $0x8d0] sm:$0xff] %vm4043, %v4037
  %4327 = vst.msk [vmem:[%s2 + $0x8d8] sm:$0xff] %vm4043, %v4038
  %4328 = vst.msk [vmem:[%s2 + $0x8e0] sm:$0xff] %vm4043, %v4039
  %4329 = vst.msk [vmem:[%s2 + $0x8e8] sm:$0xff] %vm4043, %v4040
  %4330 = vst.msk [vmem:[%s2 + $0x8f0] sm:$0xff] %vm4043, %v4041
  %4331 = vst.msk [vmem:[%s2 + $0x8f8] sm:$0xff] %vm4043, %v4042
  // Predicated region
  $region10: #{tpu_custom_call.1} parent=0 // pred_check
    _
  $region11: #{tpu_custom_call.1} parent=0 // pred_check_branch
    %4333 = sbr.rel (0) target = $region13
  $region12: #{tpu_custom_call.1} parent=0 // pred_region
    _
  $region13: #{tpu_custom_call.1} parent=0 // pred_fallthru
    _
  // Predicated region
  $region14: #{tpu_custom_call.1} parent=0 // pred_check
    _
  $region15: #{tpu_custom_call.1} parent=0 // pred_check_branch
    %4335 = sbr.rel (0) target = $region17
  $region16: #{tpu_custom_call.1} parent=0 // pred_region
    _
  $region17: #{tpu_custom_call.1} parent=0 // pred_fallthru
    _

</llo_original>
